<compile_context>
chip_gen: v6e
topology: v6e:2x2x1
jax: 0.10.0
libtpu: 0.0.40
codegen_flags: <defaults>
</compile_context>

<pallas_src>
import math

import jax
import jax.numpy as jnp
from jax.experimental import pallas as pl
from jax.experimental.pallas import tpu as pltpu

# ----------------------------- config (small) -----------------------------
VOCAB = 128          # synthetic GPT-2 vocab (exactly one lane tile -> lane-dense logits)
E = 32               # gpt_embedding_size (wte.weight.shape[1])
N_HEAD = 2
HEAD_DIM = E // N_HEAD
N_LAYER = 2
MAX_POS = 64
PREFIX_LEN = 8       # <= 10  -> MLP clip_project path
PREFIX_SIZE = 32     # prefix_size
T_TOK = 8            # caption token length
B = 2                # batch
S_TOTAL = PREFIX_LEN + T_TOK
ROWS = B * S_TOTAL   # folded (batch, seq) row axis


# ------------------------------- helpers ----------------------------------
def _layernorm(v, g, b, eps=1e-5):
    mu = jnp.mean(v, axis=-1, keepdims=True)
    var = jnp.mean((v - mu) ** 2, axis=-1, keepdims=True)
    return (v - mu) * jax.lax.rsqrt(var + eps) * g + b


def _gelu_new(x):
    # GPT-2 "gelu_new" (tanh approximation), fp32
    c = math.sqrt(2.0 / math.pi)
    return 0.5 * x * (1.0 + jnp.tanh(c * (x + 0.044715 * x * x * x)))


# --------------------------- fused forward kernel ---------------------------
def _fused_forward_kernel(
    # inputs (VMEM)
    tok_ref,                                      # (B*S, 1) int32; -1 sentinel at prefix rows
    prefix_ref,                                   # (B, P) f32
    mask_ref,                                     # (B*S, B*S) f32 block-diagonal causal bias
    wpe_ref,                                      # (B*S, E) f32 (position embeddings, tiled)
    cw1_ref, cb1_ref, cw2_ref, cb2_ref,           # clip MLP (weights bf16, biases f32)
    wte_ref, wte_t_ref,                           # (V,E) bf16, (E,V) bf16 (tied head)
    ln1_g_ref, ln1_b_ref,                         # (NL,1,E) f32
    wqkv_ref, bqkv_ref,                           # (NL,E,3E) bf16 (q pre-scaled), (NL,1,3E) f32
    wproj_ref, bproj_ref,                         # (NL,H,D,E) bf16, (NL,1,E) f32
    ln2_g_ref, ln2_b_ref,                         # (NL,1,E) f32
    wfc_ref, bfc_ref, wmlp_ref, bmlp_ref,         # (NL,E,4E) bf16 ... (NL,1,E) f32
    lnf_g_ref, lnf_b_ref,                         # (1,E) f32
    # output
    logits_ref,                                   # (B*S, V) f32
    # scratch
    x_ref,                                        # VMEM (B*S, E) f32 (embedding staging only)
):
    # ---- clip_project MLP: Linear -> Tanh -> Linear, all batch rows at once ----
    pfx = prefix_ref[...].astype(jnp.bfloat16)                                # (B, P)
    h = jnp.dot(pfx, cw1_ref[...], preferred_element_type=jnp.float32) + cb1_ref[...]
    h = jnp.tanh(h)                                                           # fp32
    proj = jnp.dot(h.astype(jnp.bfloat16), cw2_ref[...],
                   preferred_element_type=jnp.float32) + cb2_ref[...]         # (B, L*E) f32

    # ---- wte(tokens) for ALL rows via one placed one-hot MXU matmul ----
    lanes = jax.lax.broadcasted_iota(jnp.int32, (ROWS, VOCAB), 1)
    onehot = (lanes == tok_ref[...]).astype(jnp.bfloat16)                     # (B*S, V)
    tok_contrib = jnp.dot(onehot, wte_ref[...],
                          preferred_element_type=jnp.float32)                 # (B*S, E)

    # ---- assemble embedding_cat once in the staging scratch ----
    x_ref[...] = tok_contrib            # prefix rows are zero (sentinel -1), overwritten below
    for b in range(B):                  # static unroll, done once per kernel (not per layer)
        base = b * S_TOTAL
        for l in range(PREFIX_LEN):
            x_ref[base + l:base + l + 1, :] = proj[b:b + 1, l * E:(l + 1) * E]

    # positions added; x is carried purely in vregs from here on
    x = x_ref[...] + wpe_ref[...]                                             # (B*S, E) f32
    mask_bias = mask_ref[...]                                                 # (B*S, B*S) f32

    for li in range(N_LAYER):           # static unroll over layers
        # -------- causal self-attention (batch folded, block-diagonal mask) --------
        h1 = _layernorm(x, ln1_g_ref[li], ln1_b_ref[li]).astype(jnp.bfloat16)
        qkv = jnp.dot(h1, wqkv_ref[li],
                      preferred_element_type=jnp.float32) + bqkv_ref[li]      # (B*S, 3E) f32

        attn = None
        for hd in range(N_HEAD):        # static unroll over heads (cheap lane slices)
            lo = hd * HEAD_DIM
            q_h = qkv[:, lo:lo + HEAD_DIM].astype(jnp.bfloat16)               # (B*S, D)
            k_h = qkv[:, E + lo:E + lo + HEAD_DIM].astype(jnp.bfloat16)
            v_h = qkv[:, 2 * E + lo:2 * E + lo + HEAD_DIM].astype(jnp.bfloat16)

            # q @ k^T, contraction over D (scale already folded into wq/bq)
            s = jax.lax.dot_general(q_h, k_h, (((1,), (1,)), ((), ())),
                                    preferred_element_type=jnp.float32)       # (B*S, B*S)
            s = s + mask_bias                                                 # fp32 mask math
            m = jnp.max(s, axis=-1, keepdims=True)
            p = jnp.exp(s - m)
            p = p * pl.reciprocal(jnp.sum(p, axis=-1, keepdims=True), approx=True)

            ctx_h = jnp.dot(p.astype(jnp.bfloat16), v_h,
                            preferred_element_type=jnp.float32)               # (B*S, D)
            # contract the head dim inside the output projection (no concat / (H,S,E) temp)
            part = jnp.dot(ctx_h.astype(jnp.bfloat16), wproj_ref[li, hd],
                           preferred_element_type=jnp.float32)                # (B*S, E)
            attn = part if attn is None else attn + part
        x = x + attn + bproj_ref[li]

        # -------- MLP --------
        h2 = _layernorm(x, ln2_g_ref[li], ln2_b_ref[li]).astype(jnp.bfloat16)
        fc = jnp.dot(h2, wfc_ref[li],
                     preferred_element_type=jnp.float32) + bfc_ref[li]        # (B*S, 4E) f32
        fc = _gelu_new(fc)
        mlp = jnp.dot(fc.astype(jnp.bfloat16), wmlp_ref[li],
                      preferred_element_type=jnp.float32) + bmlp_ref[li]      # (B*S, E)
        x = x + mlp

    # ---- final LN + tied LM head (logits = ln_f(x) @ wte^T), lane-dense store ----
    hf = _layernorm(x, lnf_g_ref[...], lnf_b_ref[...]).astype(jnp.bfloat16)
    logits_ref[...] = jnp.dot(hf, wte_t_ref[...],
                              preferred_element_type=jnp.float32)             # (B*S, V)


# ------------------------------ parameter init ------------------------------
def init_params(key):
    """HF-GPT-2-style parameter layout (synthetic, deterministic)."""
    ks = iter(jax.random.split(key, 64))
    nrm = lambda shape, s=0.02: (s * jax.random.normal(next(ks), shape)).astype(jnp.float32)

    hidden = E * PREFIX_LEN // 2
    params = {
        'wte': nrm((VOCAB, E)),
        'wpe': nrm((MAX_POS, E), 0.01),
        'clip_w1': nrm((PREFIX_SIZE, hidden)),
        'clip_b1': jnp.zeros((1, hidden), jnp.float32),
        'clip_w2': nrm((hidden, E * PREFIX_LEN)),
        'clip_b2': jnp.zeros((1, E * PREFIX_LEN), jnp.float32),
        'ln_f_g': jnp.ones((1, E), jnp.float32),
        'ln_f_b': jnp.zeros((1, E), jnp.float32),
        'blocks': [],
    }
    for _ in range(N_LAYER):
        params['blocks'].append({
            'ln1_g': jnp.ones((1, E), jnp.float32),
            'ln1_b': jnp.zeros((1, E), jnp.float32),
            'wqkv': nrm((E, 3 * E)),
            'bqkv': jnp.zeros((1, 3 * E), jnp.float32),
            'wproj': nrm((E, E)),
            'bproj': jnp.zeros((1, E), jnp.float32),
            'ln2_g': jnp.ones((1, E), jnp.float32),
            'ln2_b': jnp.zeros((1, E), jnp.float32),
            'wfc': nrm((E, 4 * E)),
            'bfc': jnp.zeros((1, 4 * E), jnp.float32),
            'wmlp': nrm((4 * E, E)),
            'bmlp': jnp.zeros((1, E), jnp.float32),
        })
    return params


def prepare_kernel_params(params):
    """Trace-time restructuring: fold attention scale into wq/bq, per-head wproj
    layout, stack layers, bf16-cast matmul weights, precompute mask / tiled wpe."""
    bf = lambda a: a.astype(jnp.bfloat16)
    inv_sqrt_d = 1.0 / math.sqrt(HEAD_DIM)

    acc = {k: [] for k in ('ln1_g', 'ln1_b', 'wqkv', 'bqkv', 'wproj', 'bproj',
                           'ln2_g', 'ln2_b', 'wfc', 'bfc', 'wmlp', 'bmlp')}
    for blk in params['blocks']:
        wqkv = jnp.concatenate([blk['wqkv'][:, :E] * inv_sqrt_d, blk['wqkv'][:, E:]], axis=1)
        bqkv = jnp.concatenate([blk['bqkv'][:, :E] * inv_sqrt_d, blk['bqkv'][:, E:]], axis=1)
        acc['wqkv'].append(wqkv)
        acc['bqkv'].append(bqkv)
        acc['wproj'].append(blk['wproj'].reshape(N_HEAD, HEAD_DIM, E))   # rows split per head
        for k in ('ln1_g', 'ln1_b', 'bproj', 'ln2_g', 'ln2_b', 'wfc', 'bfc', 'wmlp', 'bmlp'):
            acc[k].append(blk[k])
    st = {k: jnp.stack(v) for k, v in acc.items()}

    # block-diagonal causal mask over the folded (B*S) row axis
    idx = jnp.arange(ROWS)
    bi, si = idx // S_TOTAL, idx % S_TOTAL
    allowed = (bi[:, None] == bi[None, :]) & (si[:, None] >= si[None, :])
    mask_bias = jnp.where(allowed, 0.0, -1e9).astype(jnp.float32)

    wpe_tiled = jnp.tile(params['wpe'][:S_TOTAL], (B, 1))                # (B*S, E)

    return dict(
        clip_w1=bf(params['clip_w1']), clip_b1=params['clip_b1'],
        clip_w2=bf(params['clip_w2']), clip_b2=params['clip_b2'],
        wte=bf(params['wte']), wte_t=bf(params['wte'].T),
        wpe=wpe_tiled, mask_bias=mask_bias,
        ln1_g=st['ln1_g'], ln1_b=st['ln1_b'],
        wqkv=bf(st['wqkv']), bqkv=st['bqkv'],
        wproj=bf(st['wproj']), bproj=st['bproj'],
        ln2_g=st['ln2_g'], ln2_b=st['ln2_b'],
        wfc=bf(st['wfc']), bfc=st['bfc'], wmlp=bf(st['wmlp']), bmlp=st['bmlp'],
        ln_f_g=params['ln_f_g'], ln_f_b=params['ln_f_b'],
    )


# ------------------------------ model forward -------------------------------
def clipcap_forward(tokens, prefix, kp, mask=None, labels=None):
    # TODO(synk): labels -> cat(dummy_token, tokens) cross-entropy loss and
    #             attention_mask handling are not implemented (labels/mask = None path).
    Bsz, T = tokens.shape

    # Place token ids on the folded (B*S) row axis; prefix rows get a -1 sentinel
    # so the in-kernel one-hot produces zero rows there (layout plumbing only).
    tok_placed = jnp.concatenate(
        [jnp.full((Bsz, PREFIX_LEN), -1, dtype=jnp.int32), tokens.astype(jnp.int32)],
        axis=1).reshape(Bsz * S_TOTAL, 1)

    args = (tok_placed, prefix, kp['mask_bias'], kp['wpe'],
            kp['clip_w1'], kp['clip_b1'], kp['clip_w2'], kp['clip_b2'],
            kp['wte'], kp['wte_t'],
            kp['ln1_g'], kp['ln1_b'], kp['wqkv'], kp['bqkv'],
            kp['wproj'], kp['bproj'], kp['ln2_g'], kp['ln2_b'],
            kp['wfc'], kp['bfc'], kp['wmlp'], kp['bmlp'],
            kp['ln_f_g'], kp['ln_f_b'])

    def whole(a):
        nd = a.ndim
        return pl.BlockSpec(a.shape, lambda i, nd=nd: (0,) * nd)

    grid_spec = pltpu.PrefetchScalarGridSpec(
        num_scalar_prefetch=0,
        grid=(1,),                                    # single step: batch folded into rows
        in_specs=[whole(a) for a in args],
        out_specs=pl.BlockSpec((Bsz * S_TOTAL, VOCAB), lambda i: (0, 0)),
        scratch_shapes=[pltpu.VMEM((Bsz * S_TOTAL, E), jnp.float32)],
    )

    logits_flat = pl.pallas_call(
        _fused_forward_kernel,
        out_shape=jax.ShapeDtypeStruct((Bsz * S_TOTAL, VOCAB), jnp.float32),
        grid_spec=grid_spec,
        compiler_params=pltpu.CompilerParams(
            dimension_semantics=("arbitrary",),
            vmem_limit_bytes=16 * 1024 * 1024),
        cost_estimate=pl.CostEstimate(flops=2_500_000, transcendentals=15_000,
                                      bytes_accessed=200_000),
    )(*args)

    return logits_flat.reshape(Bsz, S_TOTAL, VOCAB)


# ----------------------------------- main ------------------------------------
if __name__ == "__main__":
    key = jax.random.PRNGKey(0)
    k_param, k_tok, k_pref = jax.random.split(key, 3)

    params = init_params(k_param)
    kparams = prepare_kernel_params(params)
    tokens = jax.random.randint(k_tok, (B, T_TOK), 0, VOCAB, dtype=jnp.int32)
    prefix = jax.random.normal(k_pref, (B, PREFIX_SIZE), dtype=jnp.float32)

    forward = jax.jit(clipcap_forward)
    logits = forward(tokens, prefix, kparams)
    jax.block_until_ready(logits)

    assert logits.shape == (B, S_TOTAL, VOCAB), logits.shape
    assert bool(jnp.all(jnp.isfinite(logits)))
    print("KERNEL_OK")
</pallas_src>

<mosaic_0001>
module attributes {stable_mosaic.version = 11 : i64} {
  func.func @_fused_forward_kernel(%arg0: i32, %arg1: memref<32x1xi32, #tpu.memory_space<vmem>>, %arg2: memref<2x32xf32, #tpu.memory_space<vmem>>, %arg3: memref<32x32xf32, #tpu.memory_space<vmem>>, %arg4: memref<32x32xf32, #tpu.memory_space<vmem>>, %arg5: memref<32x128xbf16, #tpu.memory_space<vmem>>, %arg6: memref<1x128xf32, #tpu.memory_space<vmem>>, %arg7: memref<128x256xbf16, #tpu.memory_space<vmem>>, %arg8: memref<1x256xf32, #tpu.memory_space<vmem>>, %arg9: memref<128x32xbf16, #tpu.memory_space<vmem>>, %arg10: memref<32x128xbf16, #tpu.memory_space<vmem>>, %arg11: memref<2x1x32xf32, #tpu.memory_space<vmem>>, %arg12: memref<2x1x32xf32, #tpu.memory_space<vmem>>, %arg13: memref<2x32x96xbf16, #tpu.memory_space<vmem>>, %arg14: memref<2x1x96xf32, #tpu.memory_space<vmem>>, %arg15: memref<2x2x16x32xbf16, #tpu.memory_space<vmem>>, %arg16: memref<2x1x32xf32, #tpu.memory_space<vmem>>, %arg17: memref<2x1x32xf32, #tpu.memory_space<vmem>>, %arg18: memref<2x1x32xf32, #tpu.memory_space<vmem>>, %arg19: memref<2x32x128xbf16, #tpu.memory_space<vmem>>, %arg20: memref<2x1x128xf32, #tpu.memory_space<vmem>>, %arg21: memref<2x128x32xbf16, #tpu.memory_space<vmem>>, %arg22: memref<2x1x32xf32, #tpu.memory_space<vmem>>, %arg23: memref<1x32xf32, #tpu.memory_space<vmem>>, %arg24: memref<1x32xf32, #tpu.memory_space<vmem>>, %arg25: memref<32x128xf32, #tpu.memory_space<vmem>>, %arg26: memref<32x32xf32, #tpu.memory_space<vmem>>) attributes {dimension_semantics = [#tpu.dimension_semantics<arbitrary>], iteration_bounds = array<i64: 1>, scalar_prefetch = 0 : i64, scratch_operands = 1 : i64, tpu.core_type = #tpu.core_type<tc>, window_params = [{pipeline_mode = #tpu.pipeline_mode<synchronous>, transform_indices = @transform_0, window_bounds = array<i64: 32, 1>}, {pipeline_mode = #tpu.pipeline_mode<synchronous>, transform_indices = @transform_1, window_bounds = array<i64: 2, 32>}, {pipeline_mode = #tpu.pipeline_mode<synchronous>, transform_indices = @transform_2, window_bounds = array<i64: 32, 32>}, {pipeline_mode = #tpu.pipeline_mode<synchronous>, transform_indices = @transform_3, window_bounds = array<i64: 32, 32>}, {pipeline_mode = #tpu.pipeline_mode<synchronous>, transform_indices = @transform_4, window_bounds = array<i64: 32, 128>}, {pipeline_mode = #tpu.pipeline_mode<synchronous>, transform_indices = @transform_5, window_bounds = array<i64: 1, 128>}, {pipeline_mode = #tpu.pipeline_mode<synchronous>, transform_indices = @transform_6, window_bounds = array<i64: 128, 256>}, {pipeline_mode = #tpu.pipeline_mode<synchronous>, transform_indices = @transform_7, window_bounds = array<i64: 1, 256>}, {pipeline_mode = #tpu.pipeline_mode<synchronous>, transform_indices = @transform_8, window_bounds = array<i64: 128, 32>}, {pipeline_mode = #tpu.pipeline_mode<synchronous>, transform_indices = @transform_9, window_bounds = array<i64: 32, 128>}, {pipeline_mode = #tpu.pipeline_mode<synchronous>, transform_indices = @transform_10, window_bounds = array<i64: 2, 1, 32>}, {pipeline_mode = #tpu.pipeline_mode<synchronous>, transform_indices = @transform_11, window_bounds = array<i64: 2, 1, 32>}, {pipeline_mode = #tpu.pipeline_mode<synchronous>, transform_indices = @transform_12, window_bounds = array<i64: 2, 32, 96>}, {pipeline_mode = #tpu.pipeline_mode<synchronous>, transform_indices = @transform_13, window_bounds = array<i64: 2, 1, 96>}, {pipeline_mode = #tpu.pipeline_mode<synchronous>, transform_indices = @transform_14, window_bounds = array<i64: 2, 2, 16, 32>}, {pipeline_mode = #tpu.pipeline_mode<synchronous>, transform_indices = @transform_15, window_bounds = array<i64: 2, 1, 32>}, {pipeline_mode = #tpu.pipeline_mode<synchronous>, transform_indices = @transform_16, window_bounds = array<i64: 2, 1, 32>}, {pipeline_mode = #tpu.pipeline_mode<synchronous>, transform_indices = @transform_17, window_bounds = array<i64: 2, 1, 32>}, {pipeline_mode = #tpu.pipeline_mode<synchronous>, transform_indices = @transform_18, window_bounds = array<i64: 2, 32, 128>}, {pipeline_mode = #tpu.pipeline_mode<synchronous>, transform_indices = @transform_19, window_bounds = array<i64: 2, 1, 128>}, {pipeline_mode = #tpu.pipeline_mode<synchronous>, transform_indices = @transform_20, window_bounds = array<i64: 2, 128, 32>}, {pipeline_mode = #tpu.pipeline_mode<synchronous>, transform_indices = @transform_21, window_bounds = array<i64: 2, 1, 32>}, {pipeline_mode = #tpu.pipeline_mode<synchronous>, transform_indices = @transform_22, window_bounds = array<i64: 1, 32>}, {pipeline_mode = #tpu.pipeline_mode<synchronous>, transform_indices = @transform_23, window_bounds = array<i64: 1, 32>}, {pipeline_mode = #tpu.pipeline_mode<synchronous>, transform_indices = @transform_24, window_bounds = array<i64: 32, 128>}]} {
    %c0 = arith.constant 0 : index
    %c0_0 = arith.constant 0 : index
    %0 = vector.load %arg2[%c0, %c0_0] : memref<2x32xf32, #tpu.memory_space<vmem>>, vector<2x32xf32>
    %1 = arith.truncf %0 : vector<2x32xf32> to vector<2x32xbf16>
    %c0_1 = arith.constant 0 : index
    %c0_2 = arith.constant 0 : index
    %2 = vector.load %arg5[%c0_1, %c0_2] : memref<32x128xbf16, #tpu.memory_space<vmem>>, vector<32x128xbf16>
    %cst = arith.constant dense<0.000000e+00> : vector<2x128xf32>
    %3 = tpu.matmul %1, %2, %cst {dimension_numbers = #tpu.dot_dimension_numbers<[1], [0], [0], [1], [0, 0, 1, 1], [], []>} : vector<2x32xbf16>, vector<32x128xbf16>, vector<2x128xf32> -> vector<2x128xf32>
    %c0_3 = arith.constant 0 : index
    %c0_4 = arith.constant 0 : index
    %4 = vector.load %arg6[%c0_3, %c0_4] : memref<1x128xf32, #tpu.memory_space<vmem>>, vector<1x128xf32>
    %5 = vector.broadcast %4 : vector<1x128xf32> to vector<2x128xf32>
    %6 = arith.addf %3, %5 : vector<2x128xf32>
    %7 = math.tanh %6 : vector<2x128xf32>
    %8 = arith.truncf %7 : vector<2x128xf32> to vector<2x128xbf16>
    %c0_5 = arith.constant 0 : index
    %c0_6 = arith.constant 0 : index
    %9 = vector.load %arg7[%c0_5, %c0_6] : memref<128x256xbf16, #tpu.memory_space<vmem>>, vector<128x256xbf16>
    %cst_7 = arith.constant dense<0.000000e+00> : vector<2x256xf32>
    %10 = tpu.matmul %8, %9, %cst_7 {dimension_numbers = #tpu.dot_dimension_numbers<[1], [0], [0], [1], [0, 0, 1, 1], [], []>} : vector<2x128xbf16>, vector<128x256xbf16>, vector<2x256xf32> -> vector<2x256xf32>
    %c0_8 = arith.constant 0 : index
    %c0_9 = arith.constant 0 : index
    %11 = vector.load %arg8[%c0_8, %c0_9] : memref<1x256xf32, #tpu.memory_space<vmem>>, vector<1x256xf32>
    %12 = vector.broadcast %11 : vector<1x256xf32> to vector<2x256xf32>
    %13 = arith.addf %10, %12 : vector<2x256xf32>
    %14 = tpu.iota {dimensions = array<i32: 1>} : vector<32x128xi32>
    %c0_10 = arith.constant 0 : index
    %c0_11 = arith.constant 0 : index
    %15 = vector.load %arg1[%c0_10, %c0_11] : memref<32x1xi32, #tpu.memory_space<vmem>>, vector<32x1xi32>
    %16 = vector.broadcast %15 : vector<32x1xi32> to vector<32x128xi32>
    %17 = arith.cmpi eq, %14, %16 : vector<32x128xi32>
    %18 = arith.extui %17 : vector<32x128xi1> to vector<32x128xi32>
    %19 = arith.sitofp %18 : vector<32x128xi32> to vector<32x128xf32>
    %20 = arith.truncf %19 : vector<32x128xf32> to vector<32x128xbf16>
    %c0_12 = arith.constant 0 : index
    %c0_13 = arith.constant 0 : index
    %21 = vector.load %arg9[%c0_12, %c0_13] : memref<128x32xbf16, #tpu.memory_space<vmem>>, vector<128x32xbf16>
    %cst_14 = arith.constant dense<0.000000e+00> : vector<32x32xf32>
    %22 = tpu.matmul %20, %21, %cst_14 {dimension_numbers = #tpu.dot_dimension_numbers<[1], [0], [0], [1], [0, 0, 1, 1], [], []>} : vector<32x128xbf16>, vector<128x32xbf16>, vector<32x32xf32> -> vector<32x32xf32>
    %c0_15 = arith.constant 0 : index
    %c0_16 = arith.constant 0 : index
    %23 = vector.load %arg26[%c0_15, %c0_16] : memref<32x32xf32, #tpu.memory_space<vmem>>, vector<32x32xf32>
    tpu.vector_store %arg26[%c0_15, %c0_16], %22 {strides = array<i32>} : memref<32x32xf32, #tpu.memory_space<vmem>>, vector<32x32xf32>,
    %24 = vector.extract_strided_slice %13 {offsets = [0, 0], sizes = [1, 32], strides = [1, 1]} : vector<2x256xf32> to vector<1x32xf32>
    %c0_17 = arith.constant 0 : index
    %c0_18 = arith.constant 0 : index
    %25 = vector.load %arg26[%c0_17, %c0_18] : memref<32x32xf32, #tpu.memory_space<vmem>>, vector<1x32xf32>
    tpu.vector_store %arg26[%c0_17, %c0_18], %24 {strides = array<i32>} : memref<32x32xf32, #tpu.memory_space<vmem>>, vector<1x32xf32>,
    %26 = vector.extract_strided_slice %13 {offsets = [0, 32], sizes = [1, 32], strides = [1, 1]} : vector<2x256xf32> to vector<1x32xf32>
    %c1 = arith.constant 1 : index
    %c0_19 = arith.constant 0 : index
    %27 = vector.load %arg26[%c1, %c0_19] : memref<32x32xf32, #tpu.memory_space<vmem>>, vector<1x32xf32>
    tpu.vector_store %arg26[%c1, %c0_19], %26 {strides = array<i32>} : memref<32x32xf32, #tpu.memory_space<vmem>>, vector<1x32xf32>,
    %28 = vector.extract_strided_slice %13 {offsets = [0, 64], sizes = [1, 32], strides = [1, 1]} : vector<2x256xf32> to vector<1x32xf32>
    %c2 = arith.constant 2 : index
    %c0_20 = arith.constant 0 : index
    %29 = vector.load %arg26[%c2, %c0_20] : memref<32x32xf32, #tpu.memory_space<vmem>>, vector<1x32xf32>
    tpu.vector_store %arg26[%c2, %c0_20], %28 {strides = array<i32>} : memref<32x32xf32, #tpu.memory_space<vmem>>, vector<1x32xf32>,
    %30 = vector.extract_strided_slice %13 {offsets = [0, 96], sizes = [1, 32], strides = [1, 1]} : vector<2x256xf32> to vector<1x32xf32>
    %c3 = arith.constant 3 : index
    %c0_21 = arith.constant 0 : index
    %31 = vector.load %arg26[%c3, %c0_21] : memref<32x32xf32, #tpu.memory_space<vmem>>, vector<1x32xf32>
    tpu.vector_store %arg26[%c3, %c0_21], %30 {strides = array<i32>} : memref<32x32xf32, #tpu.memory_space<vmem>>, vector<1x32xf32>,
    %32 = vector.extract_strided_slice %13 {offsets = [0, 128], sizes = [1, 32], strides = [1, 1]} : vector<2x256xf32> to vector<1x32xf32>
    %c4 = arith.constant 4 : index
    %c0_22 = arith.constant 0 : index
    %33 = vector.load %arg26[%c4, %c0_22] : memref<32x32xf32, #tpu.memory_space<vmem>>, vector<1x32xf32>
    tpu.vector_store %arg26[%c4, %c0_22], %32 {strides = array<i32>} : memref<32x32xf32, #tpu.memory_space<vmem>>, vector<1x32xf32>,
    %34 = vector.extract_strided_slice %13 {offsets = [0, 160], sizes = [1, 32], strides = [1, 1]} : vector<2x256xf32> to vector<1x32xf32>
    %c5 = arith.constant 5 : index
    %c0_23 = arith.constant 0 : index
    %35 = vector.load %arg26[%c5, %c0_23] : memref<32x32xf32, #tpu.memory_space<vmem>>, vector<1x32xf32>
    tpu.vector_store %arg26[%c5, %c0_23], %34 {strides = array<i32>} : memref<32x32xf32, #tpu.memory_space<vmem>>, vector<1x32xf32>,
    %36 = vector.extract_strided_slice %13 {offsets = [0, 192], sizes = [1, 32], strides = [1, 1]} : vector<2x256xf32> to vector<1x32xf32>
    %c6 = arith.constant 6 : index
    %c0_24 = arith.constant 0 : index
    %37 = vector.load %arg26[%c6, %c0_24] : memref<32x32xf32, #tpu.memory_space<vmem>>, vector<1x32xf32>
    tpu.vector_store %arg26[%c6, %c0_24], %36 {strides = array<i32>} : memref<32x32xf32, #tpu.memory_space<vmem>>, vector<1x32xf32>,
    %38 = vector.extract_strided_slice %13 {offsets = [0, 224], sizes = [1, 32], strides = [1, 1]} : vector<2x256xf32> to vector<1x32xf32>
    %c7 = arith.constant 7 : index
    %c0_25 = arith.constant 0 : index
    %39 = vector.load %arg26[%c7, %c0_25] : memref<32x32xf32, #tpu.memory_space<vmem>>, vector<1x32xf32>
    tpu.vector_store %arg26[%c7, %c0_25], %38 {strides = array<i32>} : memref<32x32xf32, #tpu.memory_space<vmem>>, vector<1x32xf32>,
    %40 = vector.extract_strided_slice %13 {offsets = [1, 0], sizes = [1, 32], strides = [1, 1]} : vector<2x256xf32> to vector<1x32xf32>
    %c16 = arith.constant 16 : index
    %c0_26 = arith.constant 0 : index
    %41 = vector.load %arg26[%c16, %c0_26] : memref<32x32xf32, #tpu.memory_space<vmem>>, vector<1x32xf32>
    tpu.vector_store %arg26[%c16, %c0_26], %40 {strides = array<i32>} : memref<32x32xf32, #tpu.memory_space<vmem>>, vector<1x32xf32>,
    %42 = vector.extract_strided_slice %13 {offsets = [1, 32], sizes = [1, 32], strides = [1, 1]} : vector<2x256xf32> to vector<1x32xf32>
    %c17 = arith.constant 17 : index
    %c0_27 = arith.constant 0 : index
    %43 = vector.load %arg26[%c17, %c0_27] : memref<32x32xf32, #tpu.memory_space<vmem>>, vector<1x32xf32>
    tpu.vector_store %arg26[%c17, %c0_27], %42 {strides = array<i32>} : memref<32x32xf32, #tpu.memory_space<vmem>>, vector<1x32xf32>,
    %44 = vector.extract_strided_slice %13 {offsets = [1, 64], sizes = [1, 32], strides = [1, 1]} : vector<2x256xf32> to vector<1x32xf32>
    %c18 = arith.constant 18 : index
    %c0_28 = arith.constant 0 : index
    %45 = vector.load %arg26[%c18, %c0_28] : memref<32x32xf32, #tpu.memory_space<vmem>>, vector<1x32xf32>
    tpu.vector_store %arg26[%c18, %c0_28], %44 {strides = array<i32>} : memref<32x32xf32, #tpu.memory_space<vmem>>, vector<1x32xf32>,
    %46 = vector.extract_strided_slice %13 {offsets = [1, 96], sizes = [1, 32], strides = [1, 1]} : vector<2x256xf32> to vector<1x32xf32>
    %c19 = arith.constant 19 : index
    %c0_29 = arith.constant 0 : index
    %47 = vector.load %arg26[%c19, %c0_29] : memref<32x32xf32, #tpu.memory_space<vmem>>, vector<1x32xf32>
    tpu.vector_store %arg26[%c19, %c0_29], %46 {strides = array<i32>} : memref<32x32xf32, #tpu.memory_space<vmem>>, vector<1x32xf32>,
    %48 = vector.extract_strided_slice %13 {offsets = [1, 128], sizes = [1, 32], strides = [1, 1]} : vector<2x256xf32> to vector<1x32xf32>
    %c20 = arith.constant 20 : index
    %c0_30 = arith.constant 0 : index
    %49 = vector.load %arg26[%c20, %c0_30] : memref<32x32xf32, #tpu.memory_space<vmem>>, vector<1x32xf32>
    tpu.vector_store %arg26[%c20, %c0_30], %48 {strides = array<i32>} : memref<32x32xf32, #tpu.memory_space<vmem>>, vector<1x32xf32>,
    %50 = vector.extract_strided_slice %13 {offsets = [1, 160], sizes = [1, 32], strides = [1, 1]} : vector<2x256xf32> to vector<1x32xf32>
    %c21 = arith.constant 21 : index
    %c0_31 = arith.constant 0 : index
    %51 = vector.load %arg26[%c21, %c0_31] : memref<32x32xf32, #tpu.memory_space<vmem>>, vector<1x32xf32>
    tpu.vector_store %arg26[%c21, %c0_31], %50 {strides = array<i32>} : memref<32x32xf32, #tpu.memory_space<vmem>>, vector<1x32xf32>,
    %52 = vector.extract_strided_slice %13 {offsets = [1, 192], sizes = [1, 32], strides = [1, 1]} : vector<2x256xf32> to vector<1x32xf32>
    %c22 = arith.constant 22 : index
    %c0_32 = arith.constant 0 : index
    %53 = vector.load %arg26[%c22, %c0_32] : memref<32x32xf32, #tpu.memory_space<vmem>>, vector<1x32xf32>
    tpu.vector_store %arg26[%c22, %c0_32], %52 {strides = array<i32>} : memref<32x32xf32, #tpu.memory_space<vmem>>, vector<1x32xf32>,
    %54 = vector.extract_strided_slice %13 {offsets = [1, 224], sizes = [1, 32], strides = [1, 1]} : vector<2x256xf32> to vector<1x32xf32>
    %c23 = arith.constant 23 : index
    %c0_33 = arith.constant 0 : index
    %55 = vector.load %arg26[%c23, %c0_33] : memref<32x32xf32, #tpu.memory_space<vmem>>, vector<1x32xf32>
    tpu.vector_store %arg26[%c23, %c0_33], %54 {strides = array<i32>} : memref<32x32xf32, #tpu.memory_space<vmem>>, vector<1x32xf32>,
    %c0_34 = arith.constant 0 : index
    %c0_35 = arith.constant 0 : index
    %56 = vector.load %arg26[%c0_34, %c0_35] : memref<32x32xf32, #tpu.memory_space<vmem>>, vector<32x32xf32>
    %c0_36 = arith.constant 0 : index
    %c0_37 = arith.constant 0 : index
    %57 = vector.load %arg4[%c0_36, %c0_37] : memref<32x32xf32, #tpu.memory_space<vmem>>, vector<32x32xf32>
    %58 = arith.addf %56, %57 : vector<32x32xf32>
    %c0_38 = arith.constant 0 : index
    %c0_39 = arith.constant 0 : index
    %59 = vector.load %arg3[%c0_38, %c0_39] : memref<32x32xf32, #tpu.memory_space<vmem>>, vector<32x32xf32>
    %c0_40 = arith.constant 0 : index
    %c0_41 = arith.constant 0 : index
    %c0_42 = arith.constant 0 : index
    %60 = vector.load %arg11[%c0_40, %c0_41, %c0_42] : memref<2x1x32xf32, #tpu.memory_space<vmem>>, vector<1x1x32xf32>
    %61 = vector.shape_cast %60 : vector<1x1x32xf32> to vector<1x32xf32>
    %c0_43 = arith.constant 0 : index
    %c0_44 = arith.constant 0 : index
    %c0_45 = arith.constant 0 : index
    %62 = vector.load %arg12[%c0_43, %c0_44, %c0_45] : memref<2x1x32xf32, #tpu.memory_space<vmem>>, vector<1x1x32xf32>
    %63 = vector.shape_cast %62 : vector<1x1x32xf32> to vector<1x32xf32>
    %cst_46 = arith.constant dense<0.000000e+00> : vector<32xf32>
    %64 = vector.multi_reduction <add>, %58, %cst_46 [1] : vector<32x32xf32> to vector<32xf32>
    %65 = vector.shape_cast %64 : vector<32xf32> to vector<32x1xf32>
    %cst_47 = arith.constant 3.200000e+01 : f32
    %66 = vector.broadcast %cst_47 : f32 to vector<32x1xf32>
    %67 = arith.divf %65, %66 : vector<32x1xf32>
    %68 = vector.broadcast %67 : vector<32x1xf32> to vector<32x32xf32>
    %69 = arith.subf %58, %68 : vector<32x32xf32>
    %70 = arith.mulf %69, %69 : vector<32x32xf32>
    %cst_48 = arith.constant dense<0.000000e+00> : vector<32xf32>
    %71 = vector.multi_reduction <add>, %70, %cst_48 [1] : vector<32x32xf32> to vector<32xf32>
    %72 = vector.shape_cast %71 : vector<32xf32> to vector<32x1xf32>
    %cst_49 = arith.constant 3.200000e+01 : f32
    %73 = vector.broadcast %cst_49 : f32 to vector<32x1xf32>
    %74 = arith.divf %72, %73 : vector<32x1xf32>
    %75 = vector.broadcast %67 : vector<32x1xf32> to vector<32x32xf32>
    %76 = arith.subf %58, %75 : vector<32x32xf32>
    %cst_50 = arith.constant 9.99999974E-6 : f32
    %77 = vector.broadcast %cst_50 : f32 to vector<32x1xf32>
    %78 = arith.addf %74, %77 : vector<32x1xf32>
    %79 = math.rsqrt %78 : vector<32x1xf32>
    %80 = vector.broadcast %79 : vector<32x1xf32> to vector<32x32xf32>
    %81 = arith.mulf %76, %80 : vector<32x32xf32>
    %82 = vector.broadcast %61 : vector<1x32xf32> to vector<32x32xf32>
    %83 = arith.mulf %81, %82 : vector<32x32xf32>
    %84 = vector.broadcast %63 : vector<1x32xf32> to vector<32x32xf32>
    %85 = arith.addf %83, %84 : vector<32x32xf32>
    %86 = arith.truncf %85 : vector<32x32xf32> to vector<32x32xbf16>
    %c0_51 = arith.constant 0 : index
    %c0_52 = arith.constant 0 : index
    %c0_53 = arith.constant 0 : index
    %87 = vector.load %arg13[%c0_51, %c0_52, %c0_53] : memref<2x32x96xbf16, #tpu.memory_space<vmem>>, vector<1x32x96xbf16>
    %88 = vector.shape_cast %87 : vector<1x32x96xbf16> to vector<32x96xbf16>
    %cst_54 = arith.constant dense<0.000000e+00> : vector<32x96xf32>
    %89 = tpu.matmul %86, %88, %cst_54 {dimension_numbers = #tpu.dot_dimension_numbers<[1], [0], [0], [1], [0, 0, 1, 1], [], []>} : vector<32x32xbf16>, vector<32x96xbf16>, vector<32x96xf32> -> vector<32x96xf32>
    %c0_55 = arith.constant 0 : index
    %c0_56 = arith.constant 0 : index
    %c0_57 = arith.constant 0 : index
    %90 = vector.load %arg14[%c0_55, %c0_56, %c0_57] : memref<2x1x96xf32, #tpu.memory_space<vmem>>, vector<1x1x96xf32>
    %91 = vector.shape_cast %90 : vector<1x1x96xf32> to vector<1x96xf32>
    %92 = vector.broadcast %91 : vector<1x96xf32> to vector<32x96xf32>
    %93 = arith.addf %89, %92 : vector<32x96xf32>
    %94 = vector.extract_strided_slice %93 {offsets = [0, 0], sizes = [32, 16], strides = [1, 1]} : vector<32x96xf32> to vector<32x16xf32>
    %95 = arith.truncf %94 : vector<32x16xf32> to vector<32x16xbf16>
    %96 = vector.extract_strided_slice %93 {offsets = [0, 32], sizes = [32, 16], strides = [1, 1]} : vector<32x96xf32> to vector<32x16xf32>
    %97 = arith.truncf %96 : vector<32x16xf32> to vector<32x16xbf16>
    %98 = vector.extract_strided_slice %93 {offsets = [0, 64], sizes = [32, 16], strides = [1, 1]} : vector<32x96xf32> to vector<32x16xf32>
    %99 = arith.truncf %98 : vector<32x16xf32> to vector<32x16xbf16>
    %cst_58 = arith.constant dense<0.000000e+00> : vector<32x32xf32>
    %100 = tpu.matmul %95, %97, %cst_58 {dimension_numbers = #tpu.dot_dimension_numbers<[1], [1], [0], [0], [0, 0, 1, 0], [], []>} : vector<32x16xbf16>, vector<32x16xbf16>, vector<32x32xf32> -> vector<32x32xf32>
    %101 = arith.addf %100, %59 : vector<32x32xf32>
    %cst_59 = arith.constant dense<0xFF800000> : vector<32xf32>
    %102 = vector.multi_reduction <maximumf>, %101, %cst_59 [1] : vector<32x32xf32> to vector<32xf32>
    %103 = vector.shape_cast %102 : vector<32xf32> to vector<32x1xf32>
    %104 = vector.broadcast %103 : vector<32x1xf32> to vector<32x32xf32>
    %105 = arith.subf %101, %104 : vector<32x32xf32>
    %106 = math.exp %105 : vector<32x32xf32>
    %cst_60 = arith.constant dense<0.000000e+00> : vector<32xf32>
    %107 = vector.multi_reduction <add>, %106, %cst_60 [1] : vector<32x32xf32> to vector<32xf32>
    %108 = vector.shape_cast %107 : vector<32xf32> to vector<32x1xf32>
    %109 = tpu.reciprocal %108 {approx = true} : vector<32x1xf32> -> vector<32x1xf32>
    %110 = vector.broadcast %109 : vector<32x1xf32> to vector<32x32xf32>
    %111 = arith.mulf %106, %110 : vector<32x32xf32>
    %112 = arith.truncf %111 : vector<32x32xf32> to vector<32x32xbf16>
    %cst_61 = arith.constant dense<0.000000e+00> : vector<32x16xf32>
    %113 = tpu.matmul %112, %99, %cst_61 {dimension_numbers = #tpu.dot_dimension_numbers<[1], [0], [0], [1], [0, 0, 1, 1], [], []>} : vector<32x32xbf16>, vector<32x16xbf16>, vector<32x16xf32> -> vector<32x16xf32>
    %114 = arith.truncf %113 : vector<32x16xf32> to vector<32x16xbf16>
    %c0_62 = arith.constant 0 : index
    %c0_63 = arith.constant 0 : index
    %c0_64 = arith.constant 0 : index
    %c0_65 = arith.constant 0 : index
    %115 = vector.load %arg15[%c0_62, %c0_63, %c0_64, %c0_65] : memref<2x2x16x32xbf16, #tpu.memory_space<vmem>>, vector<1x1x16x32xbf16>
    %116 = vector.shape_cast %115 : vector<1x1x16x32xbf16> to vector<16x32xbf16>
    %cst_66 = arith.constant dense<0.000000e+00> : vector<32x32xf32>
    %117 = tpu.matmul %114, %116, %cst_66 {dimension_numbers = #tpu.dot_dimension_numbers<[1], [0], [0], [1], [0, 0, 1, 1], [], []>} : vector<32x16xbf16>, vector<16x32xbf16>, vector<32x32xf32> -> vector<32x32xf32>
    %118 = vector.extract_strided_slice %93 {offsets = [0, 16], sizes = [32, 16], strides = [1, 1]} : vector<32x96xf32> to vector<32x16xf32>
    %119 = arith.truncf %118 : vector<32x16xf32> to vector<32x16xbf16>
    %120 = vector.extract_strided_slice %93 {offsets = [0, 48], sizes = [32, 16], strides = [1, 1]} : vector<32x96xf32> to vector<32x16xf32>
    %121 = arith.truncf %120 : vector<32x16xf32> to vector<32x16xbf16>
    %122 = vector.extract_strided_slice %93 {offsets = [0, 80], sizes = [32, 16], strides = [1, 1]} : vector<32x96xf32> to vector<32x16xf32>
    %123 = arith.truncf %122 : vector<32x16xf32> to vector<32x16xbf16>
    %cst_67 = arith.constant dense<0.000000e+00> : vector<32x32xf32>
    %124 = tpu.matmul %119, %121, %cst_67 {dimension_numbers = #tpu.dot_dimension_numbers<[1], [1], [0], [0], [0, 0, 1, 0], [], []>} : vector<32x16xbf16>, vector<32x16xbf16>, vector<32x32xf32> -> vector<32x32xf32>
    %125 = arith.addf %124, %59 : vector<32x32xf32>
    %cst_68 = arith.constant dense<0xFF800000> : vector<32xf32>
    %126 = vector.multi_reduction <maximumf>, %125, %cst_68 [1] : vector<32x32xf32> to vector<32xf32>
    %127 = vector.shape_cast %126 : vector<32xf32> to vector<32x1xf32>
    %128 = vector.broadcast %127 : vector<32x1xf32> to vector<32x32xf32>
    %129 = arith.subf %125, %128 : vector<32x32xf32>
    %130 = math.exp %129 : vector<32x32xf32>
    %cst_69 = arith.constant dense<0.000000e+00> : vector<32xf32>
    %131 = vector.multi_reduction <add>, %130, %cst_69 [1] : vector<32x32xf32> to vector<32xf32>
    %132 = vector.shape_cast %131 : vector<32xf32> to vector<32x1xf32>
    %133 = tpu.reciprocal %132 {approx = true} : vector<32x1xf32> -> vector<32x1xf32>
    %134 = vector.broadcast %133 : vector<32x1xf32> to vector<32x32xf32>
    %135 = arith.mulf %130, %134 : vector<32x32xf32>
    %136 = arith.truncf %135 : vector<32x32xf32> to vector<32x32xbf16>
    %cst_70 = arith.constant dense<0.000000e+00> : vector<32x16xf32>
    %137 = tpu.matmul %136, %123, %cst_70 {dimension_numbers = #tpu.dot_dimension_numbers<[1], [0], [0], [1], [0, 0, 1, 1], [], []>} : vector<32x32xbf16>, vector<32x16xbf16>, vector<32x16xf32> -> vector<32x16xf32>
    %138 = arith.truncf %137 : vector<32x16xf32> to vector<32x16xbf16>
    %c0_71 = arith.constant 0 : index
    %c1_72 = arith.constant 1 : index
    %c0_73 = arith.constant 0 : index
    %c0_74 = arith.constant 0 : index
    %139 = vector.load %arg15[%c0_71, %c1_72, %c0_73, %c0_74] : memref<2x2x16x32xbf16, #tpu.memory_space<vmem>>, vector<1x1x16x32xbf16>
    %140 = vector.shape_cast %139 : vector<1x1x16x32xbf16> to vector<16x32xbf16>
    %cst_75 = arith.constant dense<0.000000e+00> : vector<32x32xf32>
    %141 = tpu.matmul %138, %140, %cst_75 {dimension_numbers = #tpu.dot_dimension_numbers<[1], [0], [0], [1], [0, 0, 1, 1], [], []>} : vector<32x16xbf16>, vector<16x32xbf16>, vector<32x32xf32> -> vector<32x32xf32>
    %142 = arith.addf %117, %141 : vector<32x32xf32>
    %143 = arith.addf %58, %142 : vector<32x32xf32>
    %c0_76 = arith.constant 0 : index
    %c0_77 = arith.constant 0 : index
    %c0_78 = arith.constant 0 : index
    %144 = vector.load %arg16[%c0_76, %c0_77, %c0_78] : memref<2x1x32xf32, #tpu.memory_space<vmem>>, vector<1x1x32xf32>
    %145 = vector.shape_cast %144 : vector<1x1x32xf32> to vector<1x32xf32>
    %146 = vector.broadcast %145 : vector<1x32xf32> to vector<32x32xf32>
    %147 = arith.addf %143, %146 : vector<32x32xf32>
    %c0_79 = arith.constant 0 : index
    %c0_80 = arith.constant 0 : index
    %c0_81 = arith.constant 0 : index
    %148 = vector.load %arg17[%c0_79, %c0_80, %c0_81] : memref<2x1x32xf32, #tpu.memory_space<vmem>>, vector<1x1x32xf32>
    %149 = vector.shape_cast %148 : vector<1x1x32xf32> to vector<1x32xf32>
    %c0_82 = arith.constant 0 : index
    %c0_83 = arith.constant 0 : index
    %c0_84 = arith.constant 0 : index
    %150 = vector.load %arg18[%c0_82, %c0_83, %c0_84] : memref<2x1x32xf32, #tpu.memory_space<vmem>>, vector<1x1x32xf32>
    %151 = vector.shape_cast %150 : vector<1x1x32xf32> to vector<1x32xf32>
    %cst_85 = arith.constant dense<0.000000e+00> : vector<32xf32>
    %152 = vector.multi_reduction <add>, %147, %cst_85 [1] : vector<32x32xf32> to vector<32xf32>
    %153 = vector.shape_cast %152 : vector<32xf32> to vector<32x1xf32>
    %cst_86 = arith.constant 3.200000e+01 : f32
    %154 = vector.broadcast %cst_86 : f32 to vector<32x1xf32>
    %155 = arith.divf %153, %154 : vector<32x1xf32>
    %156 = vector.broadcast %155 : vector<32x1xf32> to vector<32x32xf32>
    %157 = arith.subf %147, %156 : vector<32x32xf32>
    %158 = arith.mulf %157, %157 : vector<32x32xf32>
    %cst_87 = arith.constant dense<0.000000e+00> : vector<32xf32>
    %159 = vector.multi_reduction <add>, %158, %cst_87 [1] : vector<32x32xf32> to vector<32xf32>
    %160 = vector.shape_cast %159 : vector<32xf32> to vector<32x1xf32>
    %cst_88 = arith.constant 3.200000e+01 : f32
    %161 = vector.broadcast %cst_88 : f32 to vector<32x1xf32>
    %162 = arith.divf %160, %161 : vector<32x1xf32>
    %163 = vector.broadcast %155 : vector<32x1xf32> to vector<32x32xf32>
    %164 = arith.subf %147, %163 : vector<32x32xf32>
    %cst_89 = arith.constant 9.99999974E-6 : f32
    %165 = vector.broadcast %cst_89 : f32 to vector<32x1xf32>
    %166 = arith.addf %162, %165 : vector<32x1xf32>
    %167 = math.rsqrt %166 : vector<32x1xf32>
    %168 = vector.broadcast %167 : vector<32x1xf32> to vector<32x32xf32>
    %169 = arith.mulf %164, %168 : vector<32x32xf32>
    %170 = vector.broadcast %149 : vector<1x32xf32> to vector<32x32xf32>
    %171 = arith.mulf %169, %170 : vector<32x32xf32>
    %172 = vector.broadcast %151 : vector<1x32xf32> to vector<32x32xf32>
    %173 = arith.addf %171, %172 : vector<32x32xf32>
    %174 = arith.truncf %173 : vector<32x32xf32> to vector<32x32xbf16>
    %c0_90 = arith.constant 0 : index
    %c0_91 = arith.constant 0 : index
    %c0_92 = arith.constant 0 : index
    %175 = vector.load %arg19[%c0_90, %c0_91, %c0_92] : memref<2x32x128xbf16, #tpu.memory_space<vmem>>, vector<1x32x128xbf16>
    %176 = vector.shape_cast %175 : vector<1x32x128xbf16> to vector<32x128xbf16>
    %cst_93 = arith.constant dense<0.000000e+00> : vector<32x128xf32>
    %177 = tpu.matmul %174, %176, %cst_93 {dimension_numbers = #tpu.dot_dimension_numbers<[1], [0], [0], [1], [0, 0, 1, 1], [], []>} : vector<32x32xbf16>, vector<32x128xbf16>, vector<32x128xf32> -> vector<32x128xf32>
    %c0_94 = arith.constant 0 : index
    %c0_95 = arith.constant 0 : index
    %c0_96 = arith.constant 0 : index
    %178 = vector.load %arg20[%c0_94, %c0_95, %c0_96] : memref<2x1x128xf32, #tpu.memory_space<vmem>>, vector<1x1x128xf32>
    %179 = vector.shape_cast %178 : vector<1x1x128xf32> to vector<1x128xf32>
    %180 = vector.broadcast %179 : vector<1x128xf32> to vector<32x128xf32>
    %181 = arith.addf %177, %180 : vector<32x128xf32>
    %cst_97 = arith.constant 5.000000e-01 : f32
    %182 = vector.broadcast %cst_97 : f32 to vector<32x128xf32>
    %183 = arith.mulf %182, %181 : vector<32x128xf32>
    %cst_98 = arith.constant 4.471500e-02 : f32
    %184 = vector.broadcast %cst_98 : f32 to vector<32x128xf32>
    %185 = arith.mulf %184, %181 : vector<32x128xf32>
    %186 = arith.mulf %185, %181 : vector<32x128xf32>
    %187 = arith.mulf %186, %181 : vector<32x128xf32>
    %188 = arith.addf %181, %187 : vector<32x128xf32>
    %cst_99 = arith.constant 0.797884583 : f32
    %189 = vector.broadcast %cst_99 : f32 to vector<32x128xf32>
    %190 = arith.mulf %189, %188 : vector<32x128xf32>
    %191 = math.tanh %190 : vector<32x128xf32>
    %cst_100 = arith.constant 1.000000e+00 : f32
    %192 = vector.broadcast %cst_100 : f32 to vector<32x128xf32>
    %193 = arith.addf %192, %191 : vector<32x128xf32>
    %194 = arith.mulf %183, %193 : vector<32x128xf32>
    %195 = arith.truncf %194 : vector<32x128xf32> to vector<32x128xbf16>
    %c0_101 = arith.constant 0 : index
    %c0_102 = arith.constant 0 : index
    %c0_103 = arith.constant 0 : index
    %196 = vector.load %arg21[%c0_101, %c0_102, %c0_103] : memref<2x128x32xbf16, #tpu.memory_space<vmem>>, vector<1x128x32xbf16>
    %197 = vector.shape_cast %196 : vector<1x128x32xbf16> to vector<128x32xbf16>
    %cst_104 = arith.constant dense<0.000000e+00> : vector<32x32xf32>
    %198 = tpu.matmul %195, %197, %cst_104 {dimension_numbers = #tpu.dot_dimension_numbers<[1], [0], [0], [1], [0, 0, 1, 1], [], []>} : vector<32x128xbf16>, vector<128x32xbf16>, vector<32x32xf32> -> vector<32x32xf32>
    %c0_105 = arith.constant 0 : index
    %c0_106 = arith.constant 0 : index
    %c0_107 = arith.constant 0 : index
    %199 = vector.load %arg22[%c0_105, %c0_106, %c0_107] : memref<2x1x32xf32, #tpu.memory_space<vmem>>, vector<1x1x32xf32>
    %200 = vector.shape_cast %199 : vector<1x1x32xf32> to vector<1x32xf32>
    %201 = vector.broadcast %200 : vector<1x32xf32> to vector<32x32xf32>
    %202 = arith.addf %198, %201 : vector<32x32xf32>
    %203 = arith.addf %147, %202 : vector<32x32xf32>
    %c1_108 = arith.constant 1 : index
    %c0_109 = arith.constant 0 : index
    %c0_110 = arith.constant 0 : index
    %204 = vector.load %arg11[%c1_108, %c0_109, %c0_110] : memref<2x1x32xf32, #tpu.memory_space<vmem>>, vector<1x1x32xf32>
    %205 = vector.shape_cast %204 : vector<1x1x32xf32> to vector<1x32xf32>
    %c1_111 = arith.constant 1 : index
    %c0_112 = arith.constant 0 : index
    %c0_113 = arith.constant 0 : index
    %206 = vector.load %arg12[%c1_111, %c0_112, %c0_113] : memref<2x1x32xf32, #tpu.memory_space<vmem>>, vector<1x1x32xf32>
    %207 = vector.shape_cast %206 : vector<1x1x32xf32> to vector<1x32xf32>
    %cst_114 = arith.constant dense<0.000000e+00> : vector<32xf32>
    %208 = vector.multi_reduction <add>, %203, %cst_114 [1] : vector<32x32xf32> to vector<32xf32>
    %209 = vector.shape_cast %208 : vector<32xf32> to vector<32x1xf32>
    %cst_115 = arith.constant 3.200000e+01 : f32
    %210 = vector.broadcast %cst_115 : f32 to vector<32x1xf32>
    %211 = arith.divf %209, %210 : vector<32x1xf32>
    %212 = vector.broadcast %211 : vector<32x1xf32> to vector<32x32xf32>
    %213 = arith.subf %203, %212 : vector<32x32xf32>
    %214 = arith.mulf %213, %213 : vector<32x32xf32>
    %cst_116 = arith.constant dense<0.000000e+00> : vector<32xf32>
    %215 = vector.multi_reduction <add>, %214, %cst_116 [1] : vector<32x32xf32> to vector<32xf32>
    %216 = vector.shape_cast %215 : vector<32xf32> to vector<32x1xf32>
    %cst_117 = arith.constant 3.200000e+01 : f32
    %217 = vector.broadcast %cst_117 : f32 to vector<32x1xf32>
    %218 = arith.divf %216, %217 : vector<32x1xf32>
    %219 = vector.broadcast %211 : vector<32x1xf32> to vector<32x32xf32>
    %220 = arith.subf %203, %219 : vector<32x32xf32>
    %cst_118 = arith.constant 9.99999974E-6 : f32
    %221 = vector.broadcast %cst_118 : f32 to vector<32x1xf32>
    %222 = arith.addf %218, %221 : vector<32x1xf32>
    %223 = math.rsqrt %222 : vector<32x1xf32>
    %224 = vector.broadcast %223 : vector<32x1xf32> to vector<32x32xf32>
    %225 = arith.mulf %220, %224 : vector<32x32xf32>
    %226 = vector.broadcast %205 : vector<1x32xf32> to vector<32x32xf32>
    %227 = arith.mulf %225, %226 : vector<32x32xf32>
    %228 = vector.broadcast %207 : vector<1x32xf32> to vector<32x32xf32>
    %229 = arith.addf %227, %228 : vector<32x32xf32>
    %230 = arith.truncf %229 : vector<32x32xf32> to vector<32x32xbf16>
    %c1_119 = arith.constant 1 : index
    %c0_120 = arith.constant 0 : index
    %c0_121 = arith.constant 0 : index
    %231 = vector.load %arg13[%c1_119, %c0_120, %c0_121] : memref<2x32x96xbf16, #tpu.memory_space<vmem>>, vector<1x32x96xbf16>
    %232 = vector.shape_cast %231 : vector<1x32x96xbf16> to vector<32x96xbf16>
    %cst_122 = arith.constant dense<0.000000e+00> : vector<32x96xf32>
    %233 = tpu.matmul %230, %232, %cst_122 {dimension_numbers = #tpu.dot_dimension_numbers<[1], [0], [0], [1], [0, 0, 1, 1], [], []>} : vector<32x32xbf16>, vector<32x96xbf16>, vector<32x96xf32> -> vector<32x96xf32>
    %c1_123 = arith.constant 1 : index
    %c0_124 = arith.constant 0 : index
    %c0_125 = arith.constant 0 : index
    %234 = vector.load %arg14[%c1_123, %c0_124, %c0_125] : memref<2x1x96xf32, #tpu.memory_space<vmem>>, vector<1x1x96xf32>
    %235 = vector.shape_cast %234 : vector<1x1x96xf32> to vector<1x96xf32>
    %236 = vector.broadcast %235 : vector<1x96xf32> to vector<32x96xf32>
    %237 = arith.addf %233, %236 : vector<32x96xf32>
    %238 = vector.extract_strided_slice %237 {offsets = [0, 0], sizes = [32, 16], strides = [1, 1]} : vector<32x96xf32> to vector<32x16xf32>
    %239 = arith.truncf %238 : vector<32x16xf32> to vector<32x16xbf16>
    %240 = vector.extract_strided_slice %237 {offsets = [0, 32], sizes = [32, 16], strides = [1, 1]} : vector<32x96xf32> to vector<32x16xf32>
    %241 = arith.truncf %240 : vector<32x16xf32> to vector<32x16xbf16>
    %242 = vector.extract_strided_slice %237 {offsets = [0, 64], sizes = [32, 16], strides = [1, 1]} : vector<32x96xf32> to vector<32x16xf32>
    %243 = arith.truncf %242 : vector<32x16xf32> to vector<32x16xbf16>
    %cst_126 = arith.constant dense<0.000000e+00> : vector<32x32xf32>
    %244 = tpu.matmul %239, %241, %cst_126 {dimension_numbers = #tpu.dot_dimension_numbers<[1], [1], [0], [0], [0, 0, 1, 0], [], []>} : vector<32x16xbf16>, vector<32x16xbf16>, vector<32x32xf32> -> vector<32x32xf32>
    %245 = arith.addf %244, %59 : vector<32x32xf32>
    %cst_127 = arith.constant dense<0xFF800000> : vector<32xf32>
    %246 = vector.multi_reduction <maximumf>, %245, %cst_127 [1] : vector<32x32xf32> to vector<32xf32>
    %247 = vector.shape_cast %246 : vector<32xf32> to vector<32x1xf32>
    %248 = vector.broadcast %247 : vector<32x1xf32> to vector<32x32xf32>
    %249 = arith.subf %245, %248 : vector<32x32xf32>
    %250 = math.exp %249 : vector<32x32xf32>
    %cst_128 = arith.constant dense<0.000000e+00> : vector<32xf32>
    %251 = vector.multi_reduction <add>, %250, %cst_128 [1] : vector<32x32xf32> to vector<32xf32>
    %252 = vector.shape_cast %251 : vector<32xf32> to vector<32x1xf32>
    %253 = tpu.reciprocal %252 {approx = true} : vector<32x1xf32> -> vector<32x1xf32>
    %254 = vector.broadcast %253 : vector<32x1xf32> to vector<32x32xf32>
    %255 = arith.mulf %250, %254 : vector<32x32xf32>
    %256 = arith.truncf %255 : vector<32x32xf32> to vector<32x32xbf16>
    %cst_129 = arith.constant dense<0.000000e+00> : vector<32x16xf32>
    %257 = tpu.matmul %256, %243, %cst_129 {dimension_numbers = #tpu.dot_dimension_numbers<[1], [0], [0], [1], [0, 0, 1, 1], [], []>} : vector<32x32xbf16>, vector<32x16xbf16>, vector<32x16xf32> -> vector<32x16xf32>
    %258 = arith.truncf %257 : vector<32x16xf32> to vector<32x16xbf16>
    %c1_130 = arith.constant 1 : index
    %c0_131 = arith.constant 0 : index
    %c0_132 = arith.constant 0 : index
    %c0_133 = arith.constant 0 : index
    %259 = vector.load %arg15[%c1_130, %c0_131, %c0_132, %c0_133] : memref<2x2x16x32xbf16, #tpu.memory_space<vmem>>, vector<1x1x16x32xbf16>
    %260 = vector.shape_cast %259 : vector<1x1x16x32xbf16> to vector<16x32xbf16>
    %cst_134 = arith.constant dense<0.000000e+00> : vector<32x32xf32>
    %261 = tpu.matmul %258, %260, %cst_134 {dimension_numbers = #tpu.dot_dimension_numbers<[1], [0], [0], [1], [0, 0, 1, 1], [], []>} : vector<32x16xbf16>, vector<16x32xbf16>, vector<32x32xf32> -> vector<32x32xf32>
    %262 = vector.extract_strided_slice %237 {offsets = [0, 16], sizes = [32, 16], strides = [1, 1]} : vector<32x96xf32> to vector<32x16xf32>
    %263 = arith.truncf %262 : vector<32x16xf32> to vector<32x16xbf16>
    %264 = vector.extract_strided_slice %237 {offsets = [0, 48], sizes = [32, 16], strides = [1, 1]} : vector<32x96xf32> to vector<32x16xf32>
    %265 = arith.truncf %264 : vector<32x16xf32> to vector<32x16xbf16>
    %266 = vector.extract_strided_slice %237 {offsets = [0, 80], sizes = [32, 16], strides = [1, 1]} : vector<32x96xf32> to vector<32x16xf32>
    %267 = arith.truncf %266 : vector<32x16xf32> to vector<32x16xbf16>
    %cst_135 = arith.constant dense<0.000000e+00> : vector<32x32xf32>
    %268 = tpu.matmul %263, %265, %cst_135 {dimension_numbers = #tpu.dot_dimension_numbers<[1], [1], [0], [0], [0, 0, 1, 0], [], []>} : vector<32x16xbf16>, vector<32x16xbf16>, vector<32x32xf32> -> vector<32x32xf32>
    %269 = arith.addf %268, %59 : vector<32x32xf32>
    %cst_136 = arith.constant dense<0xFF800000> : vector<32xf32>
    %270 = vector.multi_reduction <maximumf>, %269, %cst_136 [1] : vector<32x32xf32> to vector<32xf32>
    %271 = vector.shape_cast %270 : vector<32xf32> to vector<32x1xf32>
    %272 = vector.broadcast %271 : vector<32x1xf32> to vector<32x32xf32>
    %273 = arith.subf %269, %272 : vector<32x32xf32>
    %274 = math.exp %273 : vector<32x32xf32>
    %cst_137 = arith.constant dense<0.000000e+00> : vector<32xf32>
    %275 = vector.multi_reduction <add>, %274, %cst_137 [1] : vector<32x32xf32> to vector<32xf32>
    %276 = vector.shape_cast %275 : vector<32xf32> to vector<32x1xf32>
    %277 = tpu.reciprocal %276 {approx = true} : vector<32x1xf32> -> vector<32x1xf32>
    %278 = vector.broadcast %277 : vector<32x1xf32> to vector<32x32xf32>
    %279 = arith.mulf %274, %278 : vector<32x32xf32>
    %280 = arith.truncf %279 : vector<32x32xf32> to vector<32x32xbf16>
    %cst_138 = arith.constant dense<0.000000e+00> : vector<32x16xf32>
    %281 = tpu.matmul %280, %267, %cst_138 {dimension_numbers = #tpu.dot_dimension_numbers<[1], [0], [0], [1], [0, 0, 1, 1], [], []>} : vector<32x32xbf16>, vector<32x16xbf16>, vector<32x16xf32> -> vector<32x16xf32>
    %282 = arith.truncf %281 : vector<32x16xf32> to vector<32x16xbf16>
    %c1_139 = arith.constant 1 : index
    %c1_140 = arith.constant 1 : index
    %c0_141 = arith.constant 0 : index
    %c0_142 = arith.constant 0 : index
    %283 = vector.load %arg15[%c1_139, %c1_140, %c0_141, %c0_142] : memref<2x2x16x32xbf16, #tpu.memory_space<vmem>>, vector<1x1x16x32xbf16>
    %284 = vector.shape_cast %283 : vector<1x1x16x32xbf16> to vector<16x32xbf16>
    %cst_143 = arith.constant dense<0.000000e+00> : vector<32x32xf32>
    %285 = tpu.matmul %282, %284, %cst_143 {dimension_numbers = #tpu.dot_dimension_numbers<[1], [0], [0], [1], [0, 0, 1, 1], [], []>} : vector<32x16xbf16>, vector<16x32xbf16>, vector<32x32xf32> -> vector<32x32xf32>
    %286 = arith.addf %261, %285 : vector<32x32xf32>
    %287 = arith.addf %203, %286 : vector<32x32xf32>
    %c1_144 = arith.constant 1 : index
    %c0_145 = arith.constant 0 : index
    %c0_146 = arith.constant 0 : index
    %288 = vector.load %arg16[%c1_144, %c0_145, %c0_146] : memref<2x1x32xf32, #tpu.memory_space<vmem>>, vector<1x1x32xf32>
    %289 = vector.shape_cast %288 : vector<1x1x32xf32> to vector<1x32xf32>
    %290 = vector.broadcast %289 : vector<1x32xf32> to vector<32x32xf32>
    %291 = arith.addf %287, %290 : vector<32x32xf32>
    %c1_147 = arith.constant 1 : index
    %c0_148 = arith.constant 0 : index
    %c0_149 = arith.constant 0 : index
    %292 = vector.load %arg17[%c1_147, %c0_148, %c0_149] : memref<2x1x32xf32, #tpu.memory_space<vmem>>, vector<1x1x32xf32>
    %293 = vector.shape_cast %292 : vector<1x1x32xf32> to vector<1x32xf32>
    %c1_150 = arith.constant 1 : index
    %c0_151 = arith.constant 0 : index
    %c0_152 = arith.constant 0 : index
    %294 = vector.load %arg18[%c1_150, %c0_151, %c0_152] : memref<2x1x32xf32, #tpu.memory_space<vmem>>, vector<1x1x32xf32>
    %295 = vector.shape_cast %294 : vector<1x1x32xf32> to vector<1x32xf32>
    %cst_153 = arith.constant dense<0.000000e+00> : vector<32xf32>
    %296 = vector.multi_reduction <add>, %291, %cst_153 [1] : vector<32x32xf32> to vector<32xf32>
    %297 = vector.shape_cast %296 : vector<32xf32> to vector<32x1xf32>
    %cst_154 = arith.constant 3.200000e+01 : f32
    %298 = vector.broadcast %cst_154 : f32 to vector<32x1xf32>
    %299 = arith.divf %297, %298 : vector<32x1xf32>
    %300 = vector.broadcast %299 : vector<32x1xf32> to vector<32x32xf32>
    %301 = arith.subf %291, %300 : vector<32x32xf32>
    %302 = arith.mulf %301, %301 : vector<32x32xf32>
    %cst_155 = arith.constant dense<0.000000e+00> : vector<32xf32>
    %303 = vector.multi_reduction <add>, %302, %cst_155 [1] : vector<32x32xf32> to vector<32xf32>
    %304 = vector.shape_cast %303 : vector<32xf32> to vector<32x1xf32>
    %cst_156 = arith.constant 3.200000e+01 : f32
    %305 = vector.broadcast %cst_156 : f32 to vector<32x1xf32>
    %306 = arith.divf %304, %305 : vector<32x1xf32>
    %307 = vector.broadcast %299 : vector<32x1xf32> to vector<32x32xf32>
    %308 = arith.subf %291, %307 : vector<32x32xf32>
    %cst_157 = arith.constant 9.99999974E-6 : f32
    %309 = vector.broadcast %cst_157 : f32 to vector<32x1xf32>
    %310 = arith.addf %306, %309 : vector<32x1xf32>
    %311 = math.rsqrt %310 : vector<32x1xf32>
    %312 = vector.broadcast %311 : vector<32x1xf32> to vector<32x32xf32>
    %313 = arith.mulf %308, %312 : vector<32x32xf32>
    %314 = vector.broadcast %293 : vector<1x32xf32> to vector<32x32xf32>
    %315 = arith.mulf %313, %314 : vector<32x32xf32>
    %316 = vector.broadcast %295 : vector<1x32xf32> to vector<32x32xf32>
    %317 = arith.addf %315, %316 : vector<32x32xf32>
    %318 = arith.truncf %317 : vector<32x32xf32> to vector<32x32xbf16>
    %c1_158 = arith.constant 1 : index
    %c0_159 = arith.constant 0 : index
    %c0_160 = arith.constant 0 : index
    %319 = vector.load %arg19[%c1_158, %c0_159, %c0_160] : memref<2x32x128xbf16, #tpu.memory_space<vmem>>, vector<1x32x128xbf16>
    %320 = vector.shape_cast %319 : vector<1x32x128xbf16> to vector<32x128xbf16>
    %cst_161 = arith.constant dense<0.000000e+00> : vector<32x128xf32>
    %321 = tpu.matmul %318, %320, %cst_161 {dimension_numbers = #tpu.dot_dimension_numbers<[1], [0], [0], [1], [0, 0, 1, 1], [], []>} : vector<32x32xbf16>, vector<32x128xbf16>, vector<32x128xf32> -> vector<32x128xf32>
    %c1_162 = arith.constant 1 : index
    %c0_163 = arith.constant 0 : index
    %c0_164 = arith.constant 0 : index
    %322 = vector.load %arg20[%c1_162, %c0_163, %c0_164] : memref<2x1x128xf32, #tpu.memory_space<vmem>>, vector<1x1x128xf32>
    %323 = vector.shape_cast %322 : vector<1x1x128xf32> to vector<1x128xf32>
    %324 = vector.broadcast %323 : vector<1x128xf32> to vector<32x128xf32>
    %325 = arith.addf %321, %324 : vector<32x128xf32>
    %cst_165 = arith.constant 5.000000e-01 : f32
    %326 = vector.broadcast %cst_165 : f32 to vector<32x128xf32>
    %327 = arith.mulf %326, %325 : vector<32x128xf32>
    %cst_166 = arith.constant 4.471500e-02 : f32
    %328 = vector.broadcast %cst_166 : f32 to vector<32x128xf32>
    %329 = arith.mulf %328, %325 : vector<32x128xf32>
    %330 = arith.mulf %329, %325 : vector<32x128xf32>
    %331 = arith.mulf %330, %325 : vector<32x128xf32>
    %332 = arith.addf %325, %331 : vector<32x128xf32>
    %cst_167 = arith.constant 0.797884583 : f32
    %333 = vector.broadcast %cst_167 : f32 to vector<32x128xf32>
    %334 = arith.mulf %333, %332 : vector<32x128xf32>
    %335 = math.tanh %334 : vector<32x128xf32>
    %cst_168 = arith.constant 1.000000e+00 : f32
    %336 = vector.broadcast %cst_168 : f32 to vector<32x128xf32>
    %337 = arith.addf %336, %335 : vector<32x128xf32>
    %338 = arith.mulf %327, %337 : vector<32x128xf32>
    %339 = arith.truncf %338 : vector<32x128xf32> to vector<32x128xbf16>
    %c1_169 = arith.constant 1 : index
    %c0_170 = arith.constant 0 : index
    %c0_171 = arith.constant 0 : index
    %340 = vector.load %arg21[%c1_169, %c0_170, %c0_171] : memref<2x128x32xbf16, #tpu.memory_space<vmem>>, vector<1x128x32xbf16>
    %341 = vector.shape_cast %340 : vector<1x128x32xbf16> to vector<128x32xbf16>
    %cst_172 = arith.constant dense<0.000000e+00> : vector<32x32xf32>
    %342 = tpu.matmul %339, %341, %cst_172 {dimension_numbers = #tpu.dot_dimension_numbers<[1], [0], [0], [1], [0, 0, 1, 1], [], []>} : vector<32x128xbf16>, vector<128x32xbf16>, vector<32x32xf32> -> vector<32x32xf32>
    %c1_173 = arith.constant 1 : index
    %c0_174 = arith.constant 0 : index
    %c0_175 = arith.constant 0 : index
    %343 = vector.load %arg22[%c1_173, %c0_174, %c0_175] : memref<2x1x32xf32, #tpu.memory_space<vmem>>, vector<1x1x32xf32>
    %344 = vector.shape_cast %343 : vector<1x1x32xf32> to vector<1x32xf32>
    %345 = vector.broadcast %344 : vector<1x32xf32> to vector<32x32xf32>
    %346 = arith.addf %342, %345 : vector<32x32xf32>
    %347 = arith.addf %291, %346 : vector<32x32xf32>
    %c0_176 = arith.constant 0 : index
    %c0_177 = arith.constant 0 : index
    %348 = vector.load %arg23[%c0_176, %c0_177] : memref<1x32xf32, #tpu.memory_space<vmem>>, vector<1x32xf32>
    %c0_178 = arith.constant 0 : index
    %c0_179 = arith.constant 0 : index
    %349 = vector.load %arg24[%c0_178, %c0_179] : memref<1x32xf32, #tpu.memory_space<vmem>>, vector<1x32xf32>
    %cst_180 = arith.constant dense<0.000000e+00> : vector<32xf32>
    %350 = vector.multi_reduction <add>, %347, %cst_180 [1] : vector<32x32xf32> to vector<32xf32>
    %351 = vector.shape_cast %350 : vector<32xf32> to vector<32x1xf32>
    %cst_181 = arith.constant 3.200000e+01 : f32
    %352 = vector.broadcast %cst_181 : f32 to vector<32x1xf32>
    %353 = arith.divf %351, %352 : vector<32x1xf32>
    %354 = vector.broadcast %353 : vector<32x1xf32> to vector<32x32xf32>
    %355 = arith.subf %347, %354 : vector<32x32xf32>
    %356 = arith.mulf %355, %355 : vector<32x32xf32>
    %cst_182 = arith.constant dense<0.000000e+00> : vector<32xf32>
    %357 = vector.multi_reduction <add>, %356, %cst_182 [1] : vector<32x32xf32> to vector<32xf32>
    %358 = vector.shape_cast %357 : vector<32xf32> to vector<32x1xf32>
    %cst_183 = arith.constant 3.200000e+01 : f32
    %359 = vector.broadcast %cst_183 : f32 to vector<32x1xf32>
    %360 = arith.divf %358, %359 : vector<32x1xf32>
    %361 = vector.broadcast %353 : vector<32x1xf32> to vector<32x32xf32>
    %362 = arith.subf %347, %361 : vector<32x32xf32>
    %cst_184 = arith.constant 9.99999974E-6 : f32
    %363 = vector.broadcast %cst_184 : f32 to vector<32x1xf32>
    %364 = arith.addf %360, %363 : vector<32x1xf32>
    %365 = math.rsqrt %364 : vector<32x1xf32>
    %366 = vector.broadcast %365 : vector<32x1xf32> to vector<32x32xf32>
    %367 = arith.mulf %362, %366 : vector<32x32xf32>
    %368 = vector.broadcast %348 : vector<1x32xf32> to vector<32x32xf32>
    %369 = arith.mulf %367, %368 : vector<32x32xf32>
    %370 = vector.broadcast %349 : vector<1x32xf32> to vector<32x32xf32>
    %371 = arith.addf %369, %370 : vector<32x32xf32>
    %372 = arith.truncf %371 : vector<32x32xf32> to vector<32x32xbf16>
    %c0_185 = arith.constant 0 : index
    %c0_186 = arith.constant 0 : index
    %373 = vector.load %arg10[%c0_185, %c0_186] : memref<32x128xbf16, #tpu.memory_space<vmem>>, vector<32x128xbf16>
    %cst_187 = arith.constant dense<0.000000e+00> : vector<32x128xf32>
    %374 = tpu.matmul %372, %373, %cst_187 {dimension_numbers = #tpu.dot_dimension_numbers<[1], [0], [0], [1], [0, 0, 1, 1], [], []>} : vector<32x32xbf16>, vector<32x128xbf16>, vector<32x128xf32> -> vector<32x128xf32>
    %c0_188 = arith.constant 0 : index
    %c0_189 = arith.constant 0 : index
    %375 = vector.load %arg25[%c0_188, %c0_189] : memref<32x128xf32, #tpu.memory_space<vmem>>, vector<32x128xf32>
    tpu.vector_store %arg25[%c0_188, %c0_189], %374 {strides = array<i32>} : memref<32x128xf32, #tpu.memory_space<vmem>>, vector<32x128xf32>,
    return
  }
  func.func @transform_0(%arg0: i32) -> (i32, i32) {
    %c0_i32 = arith.constant 0 : i32
    %c0_i32_0 = arith.constant 0 : i32
    %c0_i32_1 = arith.constant 0 : i32
    return %c0_i32, %c0_i32_0 : i32, i32
  }
  func.func @transform_1(%arg0: i32) -> (i32, i32) {
    %c0_i32 = arith.constant 0 : i32
    %c0_i32_0 = arith.constant 0 : i32
    %c0_i32_1 = arith.constant 0 : i32
    return %c0_i32, %c0_i32_0 : i32, i32
  }
  func.func @transform_2(%arg0: i32) -> (i32, i32) {
    %c0_i32 = arith.constant 0 : i32
    %c0_i32_0 = arith.constant 0 : i32
    %c0_i32_1 = arith.constant 0 : i32
    return %c0_i32, %c0_i32_0 : i32, i32
  }
  func.func @transform_3(%arg0: i32) -> (i32, i32) {
    %c0_i32 = arith.constant 0 : i32
    %c0_i32_0 = arith.constant 0 : i32
    %c0_i32_1 = arith.constant 0 : i32
    return %c0_i32, %c0_i32_0 : i32, i32
  }
  func.func @transform_4(%arg0: i32) -> (i32, i32) {
    %c0_i32 = arith.constant 0 : i32
    %c0_i32_0 = arith.constant 0 : i32
    %c0_i32_1 = arith.constant 0 : i32
    return %c0_i32, %c0_i32_0 : i32, i32
  }
  func.func @transform_5(%arg0: i32) -> (i32, i32) {
    %c0_i32 = arith.constant 0 : i32
    %c0_i32_0 = arith.constant 0 : i32
    %c0_i32_1 = arith.constant 0 : i32
    return %c0_i32, %c0_i32_0 : i32, i32
  }
  func.func @transform_6(%arg0: i32) -> (i32, i32) {
    %c0_i32 = arith.constant 0 : i32
    %c0_i32_0 = arith.constant 0 : i32
    %c0_i32_1 = arith.constant 0 : i32
    return %c0_i32, %c0_i32_0 : i32, i32
  }
  func.func @transform_7(%arg0: i32) -> (i32, i32) {
    %c0_i32 = arith.constant 0 : i32
    %c0_i32_0 = arith.constant 0 : i32
    %c0_i32_1 = arith.constant 0 : i32
    return %c0_i32, %c0_i32_0 : i32, i32
  }
  func.func @transform_8(%arg0: i32) -> (i32, i32) {
    %c0_i32 = arith.constant 0 : i32
    %c0_i32_0 = arith.constant 0 : i32
    %c0_i32_1 = arith.constant 0 : i32
    return %c0_i32, %c0_i32_0 : i32, i32
  }
  func.func @transform_9(%arg0: i32) -> (i32, i32) {
    %c0_i32 = arith.constant 0 : i32
    %c0_i32_0 = arith.constant 0 : i32
    %c0_i32_1 = arith.constant 0 : i32
    return %c0_i32, %c0_i32_0 : i32, i32
  }
  func.func @transform_10(%arg0: i32) -> (i32, i32, i32) {
    %c0_i32 = arith.constant 0 : i32
    %c0_i32_0 = arith.constant 0 : i32
    %c0_i32_1 = arith.constant 0 : i32
    %c0_i32_2 = arith.constant 0 : i32
    return %c0_i32, %c0_i32_0, %c0_i32_1 : i32, i32, i32
  }
  func.func @transform_11(%arg0: i32) -> (i32, i32, i32) {
    %c0_i32 = arith.constant 0 : i32
    %c0_i32_0 = arith.constant 0 : i32
    %c0_i32_1 = arith.constant 0 : i32
    %c0_i32_2 = arith.constant 0 : i32
    return %c0_i32, %c0_i32_0, %c0_i32_1 : i32, i32, i32
  }
  func.func @transform_12(%arg0: i32) -> (i32, i32, i32) {
    %c0_i32 = arith.constant 0 : i32
    %c0_i32_0 = arith.constant 0 : i32
    %c0_i32_1 = arith.constant 0 : i32
    %c0_i32_2 = arith.constant 0 : i32
    return %c0_i32, %c0_i32_0, %c0_i32_1 : i32, i32, i32
  }
  func.func @transform_13(%arg0: i32) -> (i32, i32, i32) {
    %c0_i32 = arith.constant 0 : i32
    %c0_i32_0 = arith.constant 0 : i32
    %c0_i32_1 = arith.constant 0 : i32
    %c0_i32_2 = arith.constant 0 : i32
    return %c0_i32, %c0_i32_0, %c0_i32_1 : i32, i32, i32
  }
  func.func @transform_14(%arg0: i32) -> (i32, i32, i32, i32) {
    %c0_i32 = arith.constant 0 : i32
    %c0_i32_0 = arith.constant 0 : i32
    %c0_i32_1 = arith.constant 0 : i32
    %c0_i32_2 = arith.constant 0 : i32
    %c0_i32_3 = arith.constant 0 : i32
    return %c0_i32, %c0_i32_0, %c0_i32_1, %c0_i32_2 : i32, i32, i32, i32
  }
  func.func @transform_15(%arg0: i32) -> (i32, i32, i32) {
    %c0_i32 = arith.constant 0 : i32
    %c0_i32_0 = arith.constant 0 : i32
    %c0_i32_1 = arith.constant 0 : i32
    %c0_i32_2 = arith.constant 0 : i32
    return %c0_i32, %c0_i32_0, %c0_i32_1 : i32, i32, i32
  }
  func.func @transform_16(%arg0: i32) -> (i32, i32, i32) {
    %c0_i32 = arith.constant 0 : i32
    %c0_i32_0 = arith.constant 0 : i32
    %c0_i32_1 = arith.constant 0 : i32
    %c0_i32_2 = arith.constant 0 : i32
    return %c0_i32, %c0_i32_0, %c0_i32_1 : i32, i32, i32
  }
  func.func @transform_17(%arg0: i32) -> (i32, i32, i32) {
    %c0_i32 = arith.constant 0 : i32
    %c0_i32_0 = arith.constant 0 : i32
    %c0_i32_1 = arith.constant 0 : i32
    %c0_i32_2 = arith.constant 0 : i32
    return %c0_i32, %c0_i32_0, %c0_i32_1 : i32, i32, i32
  }
  func.func @transform_18(%arg0: i32) -> (i32, i32, i32) {
    %c0_i32 = arith.constant 0 : i32
    %c0_i32_0 = arith.constant 0 : i32
    %c0_i32_1 = arith.constant 0 : i32
    %c0_i32_2 = arith.constant 0 : i32
    return %c0_i32, %c0_i32_0, %c0_i32_1 : i32, i32, i32
  }
  func.func @transform_19(%arg0: i32) -> (i32, i32, i32) {
    %c0_i32 = arith.constant 0 : i32
    %c0_i32_0 = arith.constant 0 : i32
    %c0_i32_1 = arith.constant 0 : i32
    %c0_i32_2 = arith.constant 0 : i32
    return %c0_i32, %c0_i32_0, %c0_i32_1 : i32, i32, i32
  }
  func.func @transform_20(%arg0: i32) -> (i32, i32, i32) {
    %c0_i32 = arith.constant 0 : i32
    %c0_i32_0 = arith.constant 0 : i32
    %c0_i32_1 = arith.constant 0 : i32
    %c0_i32_2 = arith.constant 0 : i32
    return %c0_i32, %c0_i32_0, %c0_i32_1 : i32, i32, i32
  }
  func.func @transform_21(%arg0: i32) -> (i32, i32, i32) {
    %c0_i32 = arith.constant 0 : i32
    %c0_i32_0 = arith.constant 0 : i32
    %c0_i32_1 = arith.constant 0 : i32
    %c0_i32_2 = arith.constant 0 : i32
    return %c0_i32, %c0_i32_0, %c0_i32_1 : i32, i32, i32
  }
  func.func @transform_22(%arg0: i32) -> (i32, i32) {
    %c0_i32 = arith.constant 0 : i32
    %c0_i32_0 = arith.constant 0 : i32
    %c0_i32_1 = arith.constant 0 : i32
    return %c0_i32, %c0_i32_0 : i32, i32
  }
  func.func @transform_23(%arg0: i32) -> (i32, i32) {
    %c0_i32 = arith.constant 0 : i32
    %c0_i32_0 = arith.constant 0 : i32
    %c0_i32_1 = arith.constant 0 : i32
    return %c0_i32, %c0_i32_0 : i32, i32
  }
  func.func @transform_24(%arg0: i32) -> (i32, i32) {
    %c0_i32 = arith.constant 0 : i32
    %c0_i32_0 = arith.constant 0 : i32
    %c0_i32_1 = arith.constant 0 : i32
    return %c0_i32, %c0_i32_0 : i32, i32
  }
}

</mosaic_0001>

<llo_original>
// kernel: clipcap_forward.1
$region0: #{clipcap_forward.1}
  #allocation0 [shape = 'u32[]', space=smem, size = 0x4, offset = 0x4, fixed_abs, tag = 'smem constant byte address 0x4 - core index']
  #allocation1 [shape = 'u32[144,128]{1,0:T(1,128)}', space=vmem, size = 0x12000, scoped, tag = 'internal scratch']
  #allocation2 [shape = 'f32[32,32]{1,0:T(8,128)}', space=vmem, size = 0x4000, scoped, tag = 'scratch operand']
  %s0 = inlined_call_operand.vmem [shape: s32[32,1], index: 0, kind: input, shape index: {}]
  %s1 = inlined_call_operand.hbm [shape: f32[2,32], index: 1, kind: input, shape index: {}]
  %s2 = inlined_call_operand.vmem [shape: f32[32,32], index: 2, kind: input, shape index: {}]
  %s3 = inlined_call_operand.vmem [shape: f32[32,32], index: 3, kind: input, shape index: {}]
  %s4 = inlined_call_operand.hbm [shape: bf16[32,128], index: 4, kind: input, shape index: {}]
  %s5 = inlined_call_operand.hbm [shape: f32[1,128], index: 5, kind: input, shape index: {}]
  %s6 = inlined_call_operand.vmem [shape: bf16[128,256], index: 6, kind: input, shape index: {}]
  %s7 = inlined_call_operand.hbm [shape: f32[1,256], index: 7, kind: input, shape index: {}]
  %s8 = inlined_call_operand.vmem [shape: bf16[128,32], index: 8, kind: input, shape index: {}]
  %s9 = inlined_call_operand.hbm [shape: bf16[32,128], index: 9, kind: input, shape index: {}]
  %s10 = inlined_call_operand.hbm [shape: f32[2,1,32], index: 10, kind: input, shape index: {}]
  %s11 = inlined_call_operand.hbm [shape: f32[2,1,32], index: 11, kind: input, shape index: {}]
  %s12 = inlined_call_operand.vmem [shape: bf16[2,32,96], index: 12, kind: input, shape index: {}]
  %s13 = inlined_call_operand.hbm [shape: f32[2,1,96], index: 13, kind: input, shape index: {}]
  %s14 = inlined_call_operand.vmem [shape: bf16[2,2,16,32], index: 14, kind: input, shape index: {}]
  %s15 = inlined_call_operand.hbm [shape: f32[2,1,32], index: 15, kind: input, shape index: {}]
  %s16 = inlined_call_operand.hbm [shape: f32[2,1,32], index: 16, kind: input, shape index: {}]
  %s17 = inlined_call_operand.hbm [shape: f32[2,1,32], index: 17, kind: input, shape index: {}]
  %s18 = inlined_call_operand.hbm [shape: bf16[2,32,128], index: 18, kind: input, shape index: {}]
  %s19 = inlined_call_operand.hbm [shape: f32[2,1,128], index: 19, kind: input, shape index: {}]
  %s20 = inlined_call_operand.vmem [shape: bf16[2,128,32], index: 20, kind: input, shape index: {}]
  %s21 = inlined_call_operand.hbm [shape: f32[2,1,32], index: 21, kind: input, shape index: {}]
  %s22 = inlined_call_operand.hbm [shape: f32[1,32], index: 22, kind: input, shape index: {}]
  %s23 = inlined_call_operand.hbm [shape: f32[1,32], index: 23, kind: input, shape index: {}]
  %s24 = inlined_call_operand.hbm [shape: f32[32,128], index: 24, kind: output, shape index: {}]
  %s25 = sld [smem:[#allocation0]]
  $region170: #{clipcap_forward.1} parent=0
    _
  %s27 = ssub.s32 1, %s25
  %s28 = scalar_select 0, %s27, %s25
  $region1: #{clipcap_forward.1} parent=0
    #allocation3 [shape = 'u8[1024]{0}', space=vmem, size = 0x400, scoped, tag = 'input window, operand 1, single buffered']
    #allocation4 [shape = 's32[1]{0}', space=sflag, size = 0x4, scoped, tag = 'scoped memory for clipcap_forward.1']
    #allocation5 [shape = 's32[1]{0}', space=sflag, size = 0x4, scoped, tag = 'scoped memory for clipcap_forward.1']
    #allocation6 [shape = 'u8[8192]{0}', space=vmem, size = 0x2000, scoped, tag = 'input window, operand 4, single buffered']
    #allocation7 [shape = 's32[1]{0}', space=sflag, size = 0x4, scoped, tag = 'scoped memory for clipcap_forward.1']
    #allocation8 [shape = 'u8[512]{0}', space=vmem, size = 0x400, scoped, tag = 'input window, operand 5, single buffered']
    #allocation9 [shape = 'u8[1024]{0}', space=vmem, size = 0x400, scoped, tag = 'input window, operand 7, single buffered']
    #allocation10 [shape = 's32[1]{0}', space=sflag, size = 0x4, scoped, tag = 'scoped memory for clipcap_forward.1']
    #allocation11 [shape = 'u8[8192]{0}', space=vmem, size = 0x2000, scoped, tag = 'input window, operand 9, single buffered']
    #allocation12 [shape = 'u8[1024]{0}', space=vmem, size = 0x400, scoped, tag = 'input window, operand 10, single buffered']
    #allocation13 [shape = 's32[1]{0}', space=sflag, size = 0x4, scoped, tag = 'scoped memory for clipcap_forward.1']
    #allocation14 [shape = 'u8[1024]{0}', space=vmem, size = 0x400, scoped, tag = 'input window, operand 11, single buffered']
    #allocation15 [shape = 'u8[1024]{0}', space=vmem, size = 0x400, scoped, tag = 'input window, operand 13, single buffered']
    #allocation16 [shape = 's32[1]{0}', space=sflag, size = 0x4, scoped, tag = 'scoped memory for clipcap_forward.1']
    #allocation17 [shape = 'u8[1024]{0}', space=vmem, size = 0x400, scoped, tag = 'input window, operand 15, single buffered']
    #allocation18 [shape = 'u8[1024]{0}', space=vmem, size = 0x400, scoped, tag = 'input window, operand 16, single buffered']
    #allocation19 [shape = 's32[1]{0}', space=sflag, size = 0x4, scoped, tag = 'scoped memory for clipcap_forward.1']
    #allocation20 [shape = 'u8[1024]{0}', space=vmem, size = 0x400, scoped, tag = 'input window, operand 17, single buffered']
    #allocation21 [shape = 'u8[16384]{0}', space=vmem, size = 0x4000, scoped, tag = 'input window, operand 18, single buffered']
    #allocation22 [shape = 's32[1]{0}', space=sflag, size = 0x4, scoped, tag = 'scoped memory for clipcap_forward.1']
    #allocation23 [shape = 'u8[1024]{0}', space=vmem, size = 0x400, scoped, tag = 'input window, operand 19, single buffered']
    #allocation24 [shape = 'u8[1024]{0}', space=vmem, size = 0x400, scoped, tag = 'input window, operand 21, single buffered']
    #allocation25 [shape = 's32[1]{0}', space=sflag, size = 0x4, scoped, tag = 'scoped memory for clipcap_forward.1']
    #allocation26 [shape = 'u8[512]{0}', space=vmem, size = 0x400, scoped, tag = 'input window, operand 22, single buffered']
    #allocation27 [shape = 'u8[512]{0}', space=vmem, size = 0x400, scoped, tag = 'input window, operand 23, single buffered']
    #allocation28 [shape = 's32[1]{0}', space=sflag, size = 0x4, scoped, tag = 'scoped memory for clipcap_forward.1']
    #allocation29 [shape = 'u8[16384]{0}', space=vmem, size = 0x4000, scoped, tag = 'output window, operand 0, single buffered']
    %29 = vsyncpa [#allocation4], 0
    %30 = vsyncpa [#allocation7], 0
    %31 = vsyncpa [#allocation10], 0
    %32 = vsyncpa [#allocation13], 0
    %33 = vsyncpa [#allocation16], 0
    %34 = vsyncpa [#allocation19], 0
    %35 = vsyncpa [#allocation22], 0
    %36 = vsyncpa [#allocation25], 0
    %37 = vsyncpa [#allocation28], 0
    %38 = vsyncpa [#allocation5], 0
    // Predicated region
    $region2: #{clipcap_forward.1} parent=1 // pred_check
      _
    $region3: #{clipcap_forward.1} parent=1 // pred_check_branch
      %40 = sbr.rel (0) target = $region5
    $region4: #{clipcap_forward.1} parent=1 // pred_region
      _
    $region5: #{clipcap_forward.1} parent=1 // pred_fallthru
      _
    // Predicated region
    $region6: #{clipcap_forward.1} parent=1 // pred_check
      _
    $region7: #{clipcap_forward.1} parent=1 // pred_check_branch
      %42 = sbr.rel (0) target = $region9
    $region8: #{clipcap_forward.1} parent=1 // pred_region
      %s44 = ssub.s32 32, 32
      %45 = vsyncadd [#allocation4], %s44
      %s47 = sshll.u32 [#allocation3], 4
      %s48 = int_to_ptr.vmem [resolvable:$true] %s47
      %50 = dma.hbm_to_vmem [thread:$0]  %s1, 32, %s48, [#allocation4]
    $region9: #{clipcap_forward.1} parent=1 // pred_fallthru
      _
    // Predicated region
    $region10: #{clipcap_forward.1} parent=1 // pred_check
      _
    $region11: #{clipcap_forward.1} parent=1 // pred_check_branch
      %52 = sbr.rel (0) target = $region13
    $region12: #{clipcap_forward.1} parent=1 // pred_region
      _
    $region13: #{clipcap_forward.1} parent=1 // pred_fallthru
      _
    // Predicated region
    $region14: #{clipcap_forward.1} parent=1 // pred_check
      _
    $region15: #{clipcap_forward.1} parent=1 // pred_check_branch
      %54 = sbr.rel (0) target = $region17
    $region16: #{clipcap_forward.1} parent=1 // pred_region
      _
    $region17: #{clipcap_forward.1} parent=1 // pred_fallthru
      _
    // Predicated region
    $region18: #{clipcap_forward.1} parent=1 // pred_check
      _
    $region19: #{clipcap_forward.1} parent=1 // pred_check_branch
      %56 = sbr.rel (0) target = $region21
    $region20: #{clipcap_forward.1} parent=1 // pred_region
      %s58 = ssub.s32 256, 256
      %59 = vsyncadd [#allocation7], %s58
      %s60 = sshll.u32 [#allocation6], 4
      %s61 = int_to_ptr.vmem [resolvable:$true] %s60
      %66 = dma.hbm_to_vmem [thread:$0]  %s4, 256, %s61, [#allocation7], 64, 64, 4
    $region21: #{clipcap_forward.1} parent=1 // pred_fallthru
      _
    // Predicated region
    $region22: #{clipcap_forward.1} parent=1 // pred_check
      _
    $region23: #{clipcap_forward.1} parent=1 // pred_check_branch
      %68 = sbr.rel (0) target = $region25
    $region24: #{clipcap_forward.1} parent=1 // pred_region
      %s70 = ssub.s32 16, 16
      %71 = vsyncadd [#allocation7], %s70
      %s73 = sshll.u32 [#allocation8], 4
      %s74 = int_to_ptr.vmem [resolvable:$true] %s73
      %76 = dma.hbm_to_vmem [thread:$0]  %s5, 16, %s74, [#allocation7]
    $region25: #{clipcap_forward.1} parent=1 // pred_fallthru
      _
    // Predicated region
    $region26: #{clipcap_forward.1} parent=1 // pred_check
      _
    $region27: #{clipcap_forward.1} parent=1 // pred_check_branch
      %78 = sbr.rel (0) target = $region29
    $region28: #{clipcap_forward.1} parent=1 // pred_region
      _
    $region29: #{clipcap_forward.1} parent=1 // pred_fallthru
      _
    // Predicated region
    $region30: #{clipcap_forward.1} parent=1 // pred_check
      _
    $region31: #{clipcap_forward.1} parent=1 // pred_check_branch
      %80 = sbr.rel (0) target = $region33
    $region32: #{clipcap_forward.1} parent=1 // pred_region
      %s82 = ssub.s32 32, 32
      %83 = vsyncadd [#allocation10], %s82
      %s85 = sshll.u32 [#allocation9], 4
      %s86 = int_to_ptr.vmem [resolvable:$true] %s85
      %88 = dma.hbm_to_vmem [thread:$0]  %s7, 32, %s86, [#allocation10]
    $region33: #{clipcap_forward.1} parent=1 // pred_fallthru
      _
    // Predicated region
    $region34: #{clipcap_forward.1} parent=1 // pred_check
      _
    $region35: #{clipcap_forward.1} parent=1 // pred_check_branch
      %90 = sbr.rel (0) target = $region37
    $region36: #{clipcap_forward.1} parent=1 // pred_region
      _
    $region37: #{clipcap_forward.1} parent=1 // pred_fallthru
      _
    // Predicated region
    $region38: #{clipcap_forward.1} parent=1 // pred_check
      _
    $region39: #{clipcap_forward.1} parent=1 // pred_check_branch
      %92 = sbr.rel (0) target = $region41
    $region40: #{clipcap_forward.1} parent=1 // pred_region
      %s94 = ssub.s32 256, 256
      %95 = vsyncadd [#allocation10], %s94
      %s96 = sshll.u32 [#allocation11], 4
      %s97 = int_to_ptr.vmem [resolvable:$true] %s96
      %102 = dma.hbm_to_vmem [thread:$0]  %s9, 256, %s97, [#allocation10], 64, 64, 4
    $region41: #{clipcap_forward.1} parent=1 // pred_fallthru
      _
    // Predicated region
    $region42: #{clipcap_forward.1} parent=1 // pred_check
      _
    $region43: #{clipcap_forward.1} parent=1 // pred_check_branch
      %104 = sbr.rel (0) target = $region45
    $region44: #{clipcap_forward.1} parent=1 // pred_region
      %s106 = ssub.s32 32, 32
      %107 = vsyncadd [#allocation13], %s106
      %s108 = sshll.u32 [#allocation12], 4
      %s109 = int_to_ptr.vmem [resolvable:$true] %s108
      %114 = dma.hbm_to_vmem [thread:$0]  %s10, 32, %s109, [#allocation13], 16, 16, 1
    $region45: #{clipcap_forward.1} parent=1 // pred_fallthru
      _
    // Predicated region
    $region46: #{clipcap_forward.1} parent=1 // pred_check
      _
    $region47: #{clipcap_forward.1} parent=1 // pred_check_branch
      %116 = sbr.rel (0) target = $region49
    $region48: #{clipcap_forward.1} parent=1 // pred_region
      %s118 = ssub.s32 32, 32
      %119 = vsyncadd [#allocation13], %s118
      %s120 = sshll.u32 [#allocation14], 4
      %s121 = int_to_ptr.vmem [resolvable:$true] %s120
      %126 = dma.hbm_to_vmem [thread:$0]  %s11, 32, %s121, [#allocation13], 16, 16, 1
    $region49: #{clipcap_forward.1} parent=1 // pred_fallthru
      _
    // Predicated region
    $region50: #{clipcap_forward.1} parent=1 // pred_check
      _
    $region51: #{clipcap_forward.1} parent=1 // pred_check_branch
      %128 = sbr.rel (0) target = $region53
    $region52: #{clipcap_forward.1} parent=1 // pred_region
      _
    $region53: #{clipcap_forward.1} parent=1 // pred_fallthru
      _
    // Predicated region
    $region54: #{clipcap_forward.1} parent=1 // pred_check
      _
    $region55: #{clipcap_forward.1} parent=1 // pred_check_branch
      %130 = sbr.rel (0) target = $region57
    $region56: #{clipcap_forward.1} parent=1 // pred_region
      %s132 = ssub.s32 32, 32
      %133 = vsyncadd [#allocation16], %s132
      %s134 = sshll.u32 [#allocation15], 4
      %s135 = int_to_ptr.vmem [resolvable:$true] %s134
      %140 = dma.hbm_to_vmem [thread:$0]  %s13, 32, %s135, [#allocation16], 16, 16, 1
    $region57: #{clipcap_forward.1} parent=1 // pred_fallthru
      _
    // Predicated region
    $region58: #{clipcap_forward.1} parent=1 // pred_check
      _
    $region59: #{clipcap_forward.1} parent=1 // pred_check_branch
      %142 = sbr.rel (0) target = $region61
    $region60: #{clipcap_forward.1} parent=1 // pred_region
      _
    $region61: #{clipcap_forward.1} parent=1 // pred_fallthru
      _
    // Predicated region
    $region62: #{clipcap_forward.1} parent=1 // pred_check
      _
    $region63: #{clipcap_forward.1} parent=1 // pred_check_branch
      %144 = sbr.rel (0) target = $region65
    $region64: #{clipcap_forward.1} parent=1 // pred_region
      %s146 = ssub.s32 32, 32
      %147 = vsyncadd [#allocation16], %s146
      %s148 = sshll.u32 [#allocation17], 4
      %s149 = int_to_ptr.vmem [resolvable:$true] %s148
      %154 = dma.hbm_to_vmem [thread:$0]  %s15, 32, %s149, [#allocation16], 16, 16, 1
    $region65: #{clipcap_forward.1} parent=1 // pred_fallthru
      _
    // Predicated region
    $region66: #{clipcap_forward.1} parent=1 // pred_check
      _
    $region67: #{clipcap_forward.1} parent=1 // pred_check_branch
      %156 = sbr.rel (0) target = $region69
    $region68: #{clipcap_forward.1} parent=1 // pred_region
      %s158 = ssub.s32 32, 32
      %159 = vsyncadd [#allocation19], %s158
      %s160 = sshll.u32 [#allocation18], 4
      %s161 = int_to_ptr.vmem [resolvable:$true] %s160
      %166 = dma.hbm_to_vmem [thread:$0]  %s16, 32, %s161, [#allocation19], 16, 16, 1
    $region69: #{clipcap_forward.1} parent=1 // pred_fallthru
      _
    // Predicated region
    $region70: #{clipcap_forward.1} parent=1 // pred_check
      _
    $region71: #{clipcap_forward.1} parent=1 // pred_check_branch
      %168 = sbr.rel (0) target = $region73
    $region72: #{clipcap_forward.1} parent=1 // pred_region
      %s170 = ssub.s32 32, 32
      %171 = vsyncadd [#allocation19], %s170
      %s172 = sshll.u32 [#allocation20], 4
      %s173 = int_to_ptr.vmem [resolvable:$true] %s172
      %178 = dma.hbm_to_vmem [thread:$0]  %s17, 32, %s173, [#allocation19], 16, 16, 1
    $region73: #{clipcap_forward.1} parent=1 // pred_fallthru
      _
    // Predicated region
    $region74: #{clipcap_forward.1} parent=1 // pred_check
      _
    $region75: #{clipcap_forward.1} parent=1 // pred_check_branch
      %180 = sbr.rel (0) target = $region77
    $region76: #{clipcap_forward.1} parent=1 // pred_region
      %s182 = ssub.s32 512, 512
      %183 = vsyncadd [#allocation22], %s182
      %s184 = sshll.u32 [#allocation21], 4
      %s185 = int_to_ptr.vmem [resolvable:$true] %s184
      %190 = dma.hbm_to_vmem [thread:$0]  %s18, 512, %s185, [#allocation22], 64, 64, 4
    $region77: #{clipcap_forward.1} parent=1 // pred_fallthru
      _
    // Predicated region
    $region78: #{clipcap_forward.1} parent=1 // pred_check
      _
    $region79: #{clipcap_forward.1} parent=1 // pred_check_branch
      %192 = sbr.rel (0) target = $region81
    $region80: #{clipcap_forward.1} parent=1 // pred_region
      %s194 = ssub.s32 32, 32
      %195 = vsyncadd [#allocation22], %s194
      %s196 = sshll.u32 [#allocation23], 4
      %s197 = int_to_ptr.vmem [resolvable:$true] %s196
      %202 = dma.hbm_to_vmem [thread:$0]  %s19, 32, %s197, [#allocation22], 16, 16, 1
    $region81: #{clipcap_forward.1} parent=1 // pred_fallthru
      _
    // Predicated region
    $region82: #{clipcap_forward.1} parent=1 // pred_check
      _
    $region83: #{clipcap_forward.1} parent=1 // pred_check_branch
      %204 = sbr.rel (0) target = $region85
    $region84: #{clipcap_forward.1} parent=1 // pred_region
      _
    $region85: #{clipcap_forward.1} parent=1 // pred_fallthru
      _
    // Predicated region
    $region86: #{clipcap_forward.1} parent=1 // pred_check
      _
    $region87: #{clipcap_forward.1} parent=1 // pred_check_branch
      %206 = sbr.rel (0) target = $region89
    $region88: #{clipcap_forward.1} parent=1 // pred_region
      %s208 = ssub.s32 32, 32
      %209 = vsyncadd [#allocation25], %s208
      %s210 = sshll.u32 [#allocation24], 4
      %s211 = int_to_ptr.vmem [resolvable:$true] %s210
      %216 = dma.hbm_to_vmem [thread:$0]  %s21, 32, %s211, [#allocation25], 16, 16, 1
    $region89: #{clipcap_forward.1} parent=1 // pred_fallthru
      _
    // Predicated region
    $region90: #{clipcap_forward.1} parent=1 // pred_check
      _
    $region91: #{clipcap_forward.1} parent=1 // pred_check_branch
      %218 = sbr.rel (0) target = $region93
    $region92: #{clipcap_forward.1} parent=1 // pred_region
      %s220 = ssub.s32 16, 16
      %221 = vsyncadd [#allocation25], %s220
      %s223 = sshll.u32 [#allocation26], 4
      %s224 = int_to_ptr.vmem [resolvable:$true] %s223
      %226 = dma.hbm_to_vmem [thread:$0]  %s22, 16, %s224, [#allocation25]
    $region93: #{clipcap_forward.1} parent=1 // pred_fallthru
      _
    // Predicated region
    $region94: #{clipcap_forward.1} parent=1 // pred_check
      _
    $region95: #{clipcap_forward.1} parent=1 // pred_check_branch
      %228 = sbr.rel (0) target = $region97
    $region96: #{clipcap_forward.1} parent=1 // pred_region
      %s230 = ssub.s32 16, 16
      %231 = vsyncadd [#allocation28], %s230
      %s233 = sshll.u32 [#allocation27], 4
      %s234 = int_to_ptr.vmem [resolvable:$true] %s233
      %236 = dma.hbm_to_vmem [thread:$0]  %s23, 16, %s234, [#allocation28]
    $region97: #{clipcap_forward.1} parent=1 // pred_fallthru
      _
    // Predicated region
    $region98: #{clipcap_forward.1} parent=1 // pred_check
      _
    $region99: #{clipcap_forward.1} parent=1 // pred_check_branch
      %238 = sbr.rel (0) target = $region101
    $region100: #{clipcap_forward.1} parent=1 // pred_region
      %239 = dma.done [#allocation4], 32
    $region101: #{clipcap_forward.1} parent=1 // pred_fallthru
      _
    // Predicated region
    $region102: #{clipcap_forward.1} parent=1 // pred_check
      _
    $region103: #{clipcap_forward.1} parent=1 // pred_check_branch
      %241 = sbr.rel (0) target = $region105
    $region104: #{clipcap_forward.1} parent=1 // pred_region
      %242 = dma.done [#allocation7], 256
    $region105: #{clipcap_forward.1} parent=1 // pred_fallthru
      _
    // Predicated region
    $region106: #{clipcap_forward.1} parent=1 // pred_check
      _
    $region107: #{clipcap_forward.1} parent=1 // pred_check_branch
      %244 = sbr.rel (0) target = $region109
    $region108: #{clipcap_forward.1} parent=1 // pred_region
      %245 = dma.done [#allocation7], 16
    $region109: #{clipcap_forward.1} parent=1 // pred_fallthru
      _
    // Predicated region
    $region110: #{clipcap_forward.1} parent=1 // pred_check
      _
    $region111: #{clipcap_forward.1} parent=1 // pred_check_branch
      %247 = sbr.rel (0) target = $region113
    $region112: #{clipcap_forward.1} parent=1 // pred_region
      %248 = dma.done [#allocation10], 32
    $region113: #{clipcap_forward.1} parent=1 // pred_fallthru
      _
    // Predicated region
    $region114: #{clipcap_forward.1} parent=1 // pred_check
      _
    $region115: #{clipcap_forward.1} parent=1 // pred_check_branch
      %250 = sbr.rel (0) target = $region117
    $region116: #{clipcap_forward.1} parent=1 // pred_region
      %251 = dma.done [#allocation10], 256
    $region117: #{clipcap_forward.1} parent=1 // pred_fallthru
      _
    // Predicated region
    $region118: #{clipcap_forward.1} parent=1 // pred_check
      _
    $region119: #{clipcap_forward.1} parent=1 // pred_check_branch
      %253 = sbr.rel (0) target = $region121
    $region120: #{clipcap_forward.1} parent=1 // pred_region
      %254 = dma.done [#allocation13], 32
    $region121: #{clipcap_forward.1} parent=1 // pred_fallthru
      _
    // Predicated region
    $region122: #{clipcap_forward.1} parent=1 // pred_check
      _
    $region123: #{clipcap_forward.1} parent=1 // pred_check_branch
      %256 = sbr.rel (0) target = $region125
    $region124: #{clipcap_forward.1} parent=1 // pred_region
      %257 = dma.done [#allocation13], 32
    $region125: #{clipcap_forward.1} parent=1 // pred_fallthru
      _
    // Predicated region
    $region126: #{clipcap_forward.1} parent=1 // pred_check
      _
    $region127: #{clipcap_forward.1} parent=1 // pred_check_branch
      %259 = sbr.rel (0) target = $region129
    $region128: #{clipcap_forward.1} parent=1 // pred_region
      %260 = dma.done [#allocation16], 32
    $region129: #{clipcap_forward.1} parent=1 // pred_fallthru
      _
    // Predicated region
    $region130: #{clipcap_forward.1} parent=1 // pred_check
      _
    $region131: #{clipcap_forward.1} parent=1 // pred_check_branch
      %262 = sbr.rel (0) target = $region133
    $region132: #{clipcap_forward.1} parent=1 // pred_region
      %263 = dma.done [#allocation16], 32
    $region133: #{clipcap_forward.1} parent=1 // pred_fallthru
      _
    // Predicated region
    $region134: #{clipcap_forward.1} parent=1 // pred_check
      _
    $region135: #{clipcap_forward.1} parent=1 // pred_check_branch
      %265 = sbr.rel (0) target = $region137
    $region136: #{clipcap_forward.1} parent=1 // pred_region
      %266 = dma.done [#allocation19], 32
    $region137: #{clipcap_forward.1} parent=1 // pred_fallthru
      _
    // Predicated region
    $region138: #{clipcap_forward.1} parent=1 // pred_check
      _
    $region139: #{clipcap_forward.1} parent=1 // pred_check_branch
      %268 = sbr.rel (0) target = $region141
    $region140: #{clipcap_forward.1} parent=1 // pred_region
      %269 = dma.done [#allocation19], 32
    $region141: #{clipcap_forward.1} parent=1 // pred_fallthru
      _
    // Predicated region
    $region142: #{clipcap_forward.1} parent=1 // pred_check
      _
    $region143: #{clipcap_forward.1} parent=1 // pred_check_branch
      %271 = sbr.rel (0) target = $region145
    $region144: #{clipcap_forward.1} parent=1 // pred_region
      %272 = dma.done [#allocation22], 512
    $region145: #{clipcap_forward.1} parent=1 // pred_fallthru
      _
    // Predicated region
    $region146: #{clipcap_forward.1} parent=1 // pred_check
      _
    $region147: #{clipcap_forward.1} parent=1 // pred_check_branch
      %274 = sbr.rel (0) target = $region149
    $region148: #{clipcap_forward.1} parent=1 // pred_region
      %275 = dma.done [#allocation22], 32
    $region149: #{clipcap_forward.1} parent=1 // pred_fallthru
      _
    // Predicated region
    $region150: #{clipcap_forward.1} parent=1 // pred_check
      _
    $region151: #{clipcap_forward.1} parent=1 // pred_check_branch
      %277 = sbr.rel (0) target = $region153
    $region152: #{clipcap_forward.1} parent=1 // pred_region
      %278 = dma.done [#allocation25], 32
    $region153: #{clipcap_forward.1} parent=1 // pred_fallthru
      _
    // Predicated region
    $region154: #{clipcap_forward.1} parent=1 // pred_check
      _
    $region155: #{clipcap_forward.1} parent=1 // pred_check_branch
      %280 = sbr.rel (0) target = $region157
    $region156: #{clipcap_forward.1} parent=1 // pred_region
      %281 = dma.done [#allocation25], 16
    $region157: #{clipcap_forward.1} parent=1 // pred_fallthru
      _
    // Predicated region
    $region158: #{clipcap_forward.1} parent=1 // pred_check
      _
    $region159: #{clipcap_forward.1} parent=1 // pred_check_branch
      %283 = sbr.rel (0) target = $region161
    $region160: #{clipcap_forward.1} parent=1 // pred_region
      %284 = dma.done [#allocation28], 16
    $region161: #{clipcap_forward.1} parent=1 // pred_fallthru
      _
    %v286 = vld [vmem:[#allocation3] sm:$0x3]
    %v287 = vpack.c.bf16 %v286, %v286
    %v288 = vld [vmem:[#allocation6] sm:$0xf]
    %v289 = vld [vmem:[#allocation6 + $0x4] sm:$0xf]
    %v290 = vld [vmem:[#allocation6 + $0x8] sm:$0xf]
    %v291 = vld [vmem:[#allocation6 + $0xc] sm:$0xf]
    %v292 = vld [vmem:[#allocation8] sm:$0x1]
    %v294 = vlaneseq
    %v295 = vshrl.u32 %v294, 7
    %v296 = vsub.s32 0, %v295
    %v297 = vrot.slane %v292, %v296
    %v303 = vunpack.c.l.b16 %v288
    %v304 = vunpack.c.l.b16 %v289
    %v305 = vunpack.c.l.b16 %v290
    %v306 = vunpack.c.l.b16 %v291
    %v307 = vpack.c.b16 %v304, %v303
    %v308 = vpack.c.b16 %v306, %v305
    %vm311 = vcmask 261120
    %v313 = vsel %vm311, %v287, 0
    %315 = vmatprep.subr.bf16.mxu0 0
    %316 = vmatpush1.bf16.msra.mxu0 0
    %317 = vmatprep.subr.bf16.mxu0 0
    %318 = vmatpush1.bf16.msra.mxu0 0
    %319 = vmatprep.subr.bf16.mxu0 0
    %320 = vmatpush1.bf16.msra.mxu0 0
    %321 = vmatprep.subr.bf16.mxu0 0
    %322 = vmatpush1.bf16.msra.mxu0 0
    %323 = vmatprep.subr.bf16.mxu0 0
    %324 = vmatpush1.bf16.msra.mxu0 0
    %325 = vmatprep.subr.bf16.mxu0 0
    %326 = vmatpush1.bf16.msra.mxu0 0
    %327 = vmatprep.subr.bf16.mxu0 0
    %328 = vmatpush1.bf16.msra.mxu0 %v308
    %329 = vmatprep.subr.bf16.mxu0 0
    %330 = vmatpush1.bf16.msra.mxu0 %v307
    %331 = vmatprep.subr.bf16.mxu0 0
    %332 = vmatpush2.bf16.msra.mxu0 0
    %333 = vmatprep.subr.bf16.mxu0 0
    %334 = vmatpush2.bf16.msra.mxu0 0
    %335 = vmatprep.subr.bf16.mxu0 0
    %336 = vmatpush2.bf16.msra.mxu0 0
    %337 = vmatprep.subr.bf16.mxu0 0
    %338 = vmatpush2.bf16.msra.mxu0 0
    %339 = vmatprep.subr.bf16.mxu0 0
    %340 = vmatpush2.bf16.msra.mxu0 0
    %341 = vmatprep.subr.bf16.mxu0 0
    %342 = vmatpush2.bf16.msra.mxu0 0
    %343 = vmatprep.subr.bf16.mxu0 0
    %344 = vmatpush2.bf16.msra.mxu0 0
    %345 = vmatprep.subr.bf16.mxu0 0
    %346 = vmatpush2.bf16.msra.mxu0 0
    %347 = vmatprep.mubr.bf16.mxu0 0
    %348 = vmatmul.mubr.bf16.gmra.mxu0 %v313
    %v349 = vpop.f32.mrf.mxu0
    %v350 = vadd.f32 %v297, %v349
    %v351 = vpop.f32.mrf.mxu0
    %v352 = vpop.f32.mrf.mxu0
    %v353 = vpop.f32.mrf.mxu0
    %354 = vdwg.mxu0
    %v355 = vtanh.pop %v350
    %v356 = vpack.c.bf16 %v355, %v355
    %v357 = vld [vmem:[%s6] sm:$0xff]
    %v358 = vld [vmem:[%s6 + $0x8] sm:$0xff]
    %v359 = vld [vmem:[%s6 + $0x10] sm:$0xff]
    %v360 = vld [vmem:[%s6 + $0x18] sm:$0xff]
    %v361 = vld [vmem:[%s6 + $0x20] sm:$0xff]
    %v362 = vld [vmem:[%s6 + $0x28] sm:$0xff]
    %v363 = vld [vmem:[%s6 + $0x30] sm:$0xff]
    %v364 = vld [vmem:[%s6 + $0x38] sm:$0xff]
    %v365 = vld [vmem:[%s6 + $0x40] sm:$0xff]
    %v366 = vld [vmem:[%s6 + $0x48] sm:$0xff]
    %v367 = vld [vmem:[%s6 + $0x50] sm:$0xff]
    %v368 = vld [vmem:[%s6 + $0x58] sm:$0xff]
    %v369 = vld [vmem:[%s6 + $0x60] sm:$0xff]
    %v370 = vld [vmem:[%s6 + $0x68] sm:$0xff]
    %v371 = vld [vmem:[%s6 + $0x70] sm:$0xff]
    %v372 = vld [vmem:[%s6 + $0x78] sm:$0xff]
    %v373 = vld [vmem:[#allocation9] sm:$0x3]
    %v375 = vlaneseq
    %v376 = vshrl.u32 %v375, 7
    %v377 = vsub.s32 0, %v376
    %v378 = vrot.slane %v373, %v377
    %v379 = vlaneseq
    %v380 = vshrl.u32 %v379, 7
    %v381 = vsub.s32 1, %v380
    %v382 = vrot.slane %v373, %v381
    %v401 = vunpack.c.l.b16 %v357
    %v402 = vunpack.c.h.b16 %v357
    %v403 = vunpack.c.l.b16 %v358
    %v404 = vunpack.c.h.b16 %v358
    %v405 = vunpack.c.l.b16 %v359
    %v406 = vunpack.c.h.b16 %v359
    %v407 = vunpack.c.l.b16 %v360
    %v408 = vunpack.c.h.b16 %v360
    %v409 = vunpack.c.l.b16 %v361
    %v410 = vunpack.c.h.b16 %v361
    %v411 = vunpack.c.l.b16 %v362
    %v412 = vunpack.c.h.b16 %v362
    %v413 = vunpack.c.l.b16 %v363
    %v414 = vunpack.c.h.b16 %v363
    %v415 = vunpack.c.l.b16 %v364
    %v416 = vunpack.c.h.b16 %v364
    %v417 = vunpack.c.l.b16 %v365
    %v418 = vunpack.c.h.b16 %v365
    %v419 = vunpack.c.l.b16 %v366
    %v420 = vunpack.c.h.b16 %v366
    %v421 = vunpack.c.l.b16 %v367
    %v422 = vunpack.c.h.b16 %v367
    %v423 = vunpack.c.l.b16 %v368
    %v424 = vunpack.c.h.b16 %v368
    %v425 = vunpack.c.l.b16 %v369
    %v426 = vunpack.c.h.b16 %v369
    %v427 = vunpack.c.l.b16 %v370
    %v428 = vunpack.c.h.b16 %v370
    %v429 = vunpack.c.l.b16 %v371
    %v430 = vunpack.c.h.b16 %v371
    %v431 = vunpack.c.l.b16 %v372
    %v432 = vunpack.c.h.b16 %v372
    %v433 = vpack.c.b16 %v403, %v401
    %v434 = vpack.c.b16 %v404, %v402
    %v435 = vpack.c.b16 %v407, %v405
    %v436 = vpack.c.b16 %v408, %v406
    %v437 = vpack.c.b16 %v411, %v409
    %v438 = vpack.c.b16 %v412, %v410
    %v439 = vpack.c.b16 %v415, %v413
    %v440 = vpack.c.b16 %v416, %v414
    %v441 = vpack.c.b16 %v419, %v417
    %v442 = vpack.c.b16 %v420, %v418
    %v443 = vpack.c.b16 %v423, %v421
    %v444 = vpack.c.b16 %v424, %v422
    %v445 = vpack.c.b16 %v427, %v425
    %v446 = vpack.c.b16 %v428, %v426
    %v447 = vpack.c.b16 %v431, %v429
    %v448 = vpack.c.b16 %v432, %v430
    %465 = vmatprep.subr.bf16.mxu0 %v448
    %466 = vmatpush1.bf16.msra.mxu0 %v447
    %467 = vmatprep.subr.bf16.mxu0 %v446
    %468 = vmatpush1.bf16.msra.mxu0 %v445
    %469 = vmatprep.subr.bf16.mxu0 %v444
    %470 = vmatpush1.bf16.msra.mxu0 %v443
    %471 = vmatprep.subr.bf16.mxu0 %v442
    %472 = vmatpush1.bf16.msra.mxu0 %v441
    %473 = vmatprep.subr.bf16.mxu0 %v440
    %474 = vmatpush1.bf16.msra.mxu0 %v439
    %475 = vmatprep.subr.bf16.mxu0 %v438
    %476 = vmatpush1.bf16.msra.mxu0 %v437
    %477 = vmatprep.subr.bf16.mxu0 %v436
    %478 = vmatpush1.bf16.msra.mxu0 %v435
    %479 = vmatprep.subr.bf16.mxu0 %v434
    %480 = vmatpush1.bf16.msra.mxu0 %v433
    %481 = vmatprep.subr.bf16.mxu0 0
    %482 = vmatpush2.bf16.msra.mxu0 0
    %483 = vmatprep.subr.bf16.mxu0 0
    %484 = vmatpush2.bf16.msra.mxu0 0
    %485 = vmatprep.subr.bf16.mxu0 0
    %486 = vmatpush2.bf16.msra.mxu0 0
    %487 = vmatprep.subr.bf16.mxu0 0
    %488 = vmatpush2.bf16.msra.mxu0 0
    %489 = vmatprep.subr.bf16.mxu0 0
    %490 = vmatpush2.bf16.msra.mxu0 0
    %491 = vmatprep.subr.bf16.mxu0 0
    %492 = vmatpush2.bf16.msra.mxu0 0
    %493 = vmatprep.subr.bf16.mxu0 0
    %494 = vmatpush2.bf16.msra.mxu0 0
    %495 = vmatprep.subr.bf16.mxu0 0
    %496 = vmatpush2.bf16.msra.mxu0 0
    %497 = vmatprep.mubr.bf16.mxu0 0
    %498 = vmatmul.mubr.bf16.gmra.mxu0 %v356
    %v499 = vpop.f32.mrf.mxu0
    %v500 = vadd.f32 %v378, %v499
    %v501 = vpop.f32.mrf.mxu0
    %v502 = vadd.f32 %v382, %v501
    %v503 = vpop.f32.mrf.mxu0
    %v504 = vpop.f32.mrf.mxu0
    %505 = vdwg.mxu0
    %v506 = vlaneseq
    %v507 = vand.u32 %v506, 127
    %v508 = vld [vmem:[%s0] sm:$0xff]
    %v509 = vld [vmem:[%s0 + $0x8] sm:$0xff]
    %v510 = vld [vmem:[%s0 + $0x10] sm:$0xff]
    %v511 = vld [vmem:[%s0 + $0x18] sm:$0xff]
    %512 = vset.pattern.permute.xlu0 0
    %513 = vperm.xlu0 %512, %v508
    %v514 = vpop.permute.xlu0 %513
    %515 = vset.pattern.permute.xlu0 0
    %516 = vperm.xlu0 %515, %v509
    %v517 = vpop.permute.xlu0 %516
    %518 = vset.pattern.permute.xlu0 0
    %519 = vperm.xlu0 %518, %v510
    %v520 = vpop.permute.xlu0 %519
    %521 = vset.pattern.permute.xlu0 0
    %522 = vperm.xlu0 %521, %v511
    %v523 = vpop.permute.xlu0 %522
    %vm524 = vcmp.eq.s32.totalorder %v507, %v514
    %vm525 = vcmp.eq.s32.totalorder %v507, %v517
    %vm526 = vcmp.eq.s32.totalorder %v507, %v520
    %vm527 = vcmp.eq.s32.totalorder %v507, %v523
    %v528 = vsel %vm524, 1, 0
    %v529 = vsel %vm525, 1, 0
    %v530 = vsel %vm526, 1, 0
    %v531 = vsel %vm527, 1, 0
    %v532 = vcvt.s32.f32 %v528
    %v533 = vcvt.s32.f32 %v529
    %v534 = vcvt.s32.f32 %v530
    %v535 = vcvt.s32.f32 %v531
    %v536 = vpack.c.bf16 %v533, %v532
    %v537 = vpack.c.bf16 %v535, %v534
    %v538 = vld [vmem:[%s8] sm:$0xf]
    %v539 = vld [vmem:[%s8 + $0x4] sm:$0xf]
    %v540 = vld [vmem:[%s8 + $0x8] sm:$0xf]
    %v541 = vld [vmem:[%s8 + $0xc] sm:$0xf]
    %v542 = vld [vmem:[%s8 + $0x10] sm:$0xf]
    %v543 = vld [vmem:[%s8 + $0x14] sm:$0xf]
    %v544 = vld [vmem:[%s8 + $0x18] sm:$0xf]
    %v545 = vld [vmem:[%s8 + $0x1c] sm:$0xf]
    %v546 = vld [vmem:[%s8 + $0x20] sm:$0xf]
    %v547 = vld [vmem:[%s8 + $0x24] sm:$0xf]
    %v548 = vld [vmem:[%s8 + $0x28] sm:$0xf]
    %v549 = vld [vmem:[%s8 + $0x2c] sm:$0xf]
    %v550 = vld [vmem:[%s8 + $0x30] sm:$0xf]
    %v551 = vld [vmem:[%s8 + $0x34] sm:$0xf]
    %v552 = vld [vmem:[%s8 + $0x38] sm:$0xf]
    %v553 = vld [vmem:[%s8 + $0x3c] sm:$0xf]
    %v570 = vunpack.c.l.b16 %v538
    %v571 = vunpack.c.l.b16 %v539
    %v572 = vunpack.c.l.b16 %v540
    %v573 = vunpack.c.l.b16 %v541
    %v574 = vunpack.c.l.b16 %v542
    %v575 = vunpack.c.l.b16 %v543
    %v576 = vunpack.c.l.b16 %v544
    %v577 = vunpack.c.l.b16 %v545
    %v578 = vunpack.c.l.b16 %v546
    %v579 = vunpack.c.l.b16 %v547
    %v580 = vunpack.c.l.b16 %v548
    %v581 = vunpack.c.l.b16 %v549
    %v582 = vunpack.c.l.b16 %v550
    %v583 = vunpack.c.l.b16 %v551
    %v584 = vunpack.c.l.b16 %v552
    %v585 = vunpack.c.l.b16 %v553
    %v586 = vpack.c.b16 %v571, %v570
    %v587 = vpack.c.b16 %v573, %v572
    %v588 = vpack.c.b16 %v575, %v574
    %v589 = vpack.c.b16 %v577, %v576
    %v590 = vpack.c.b16 %v579, %v578
    %v591 = vpack.c.b16 %v581, %v580
    %v592 = vpack.c.b16 %v583, %v582
    %v593 = vpack.c.b16 %v585, %v584
    %602 = vmatprep.subr.bf16.mxu0 0
    %603 = vmatpush1.bf16.msra.mxu0 %v593
    %604 = vmatprep.subr.bf16.mxu0 0
    %605 = vmatpush1.bf16.msra.mxu0 %v592
    %606 = vmatprep.subr.bf16.mxu0 0
    %607 = vmatpush1.bf16.msra.mxu0 %v591
    %608 = vmatprep.subr.bf16.mxu0 0
    %609 = vmatpush1.bf16.msra.mxu0 %v590
    %610 = vmatprep.subr.bf16.mxu0 0
    %611 = vmatpush1.bf16.msra.mxu0 %v589
    %612 = vmatprep.subr.bf16.mxu0 0
    %613 = vmatpush1.bf16.msra.mxu0 %v588
    %614 = vmatprep.subr.bf16.mxu0 0
    %615 = vmatpush1.bf16.msra.mxu0 %v587
    %616 = vmatprep.subr.bf16.mxu0 0
    %617 = vmatpush1.bf16.msra.mxu0 %v586
    %618 = vmatprep.subr.bf16.mxu0 0
    %619 = vmatpush2.bf16.msra.mxu0 0
    %620 = vmatprep.subr.bf16.mxu0 0
    %621 = vmatpush2.bf16.msra.mxu0 0
    %622 = vmatprep.subr.bf16.mxu0 0
    %623 = vmatpush2.bf16.msra.mxu0 0
    %624 = vmatprep.subr.bf16.mxu0 0
    %625 = vmatpush2.bf16.msra.mxu0 0
    %626 = vmatprep.subr.bf16.mxu0 0
    %627 = vmatpush2.bf16.msra.mxu0 0
    %628 = vmatprep.subr.bf16.mxu0 0
    %629 = vmatpush2.bf16.msra.mxu0 0
    %630 = vmatprep.subr.bf16.mxu0 0
    %631 = vmatpush2.bf16.msra.mxu0 0
    %632 = vmatprep.subr.bf16.mxu0 0
    %633 = vmatpush2.bf16.msra.mxu0 0
    %634 = vmatprep.mubr.bf16.mxu0 0
    %635 = vmatmul.mubr.bf16.gmra.mxu0 %v536
    %v636 = vpop.f32.mrf.mxu0
    %v637 = vadd.f32 0.0, %v636
    %v638 = vpop.f32.mrf.mxu0
    %v639 = vpop.f32.mrf.mxu0
    %v640 = vadd.f32 0.0, %v639
    %v641 = vpop.f32.mrf.mxu0
    %642 = vmatprep.mubr.bf16.mxu0 0
    %643 = vmatmul.mubr.bf16.gmra.mxu0 %v537
    %v644 = vpop.f32.mrf.mxu0
    %v645 = vadd.f32 0.0, %v644
    %v646 = vpop.f32.mrf.mxu0
    %v647 = vpop.f32.mrf.mxu0
    %v648 = vadd.f32 0.0, %v647
    %v649 = vpop.f32.mrf.mxu0
    %650 = vdwg.mxu0
    %651 = vst.msk [vmem:[#allocation2] sm:$0xff] %vm311, %v637
    %652 = vst.msk [vmem:[#allocation2 + $0x8] sm:$0xff] %vm311, %v640
    %653 = vst.msk [vmem:[#allocation2 + $0x10] sm:$0xff] %vm311, %v645
    %654 = vst.msk [vmem:[#allocation2 + $0x18] sm:$0xff] %vm311, %v648
    %vm655 = vcmask 253952
    %656 = vst.msk [vmem:[#allocation2] sm:$0x1] %vm655, %v500
    %658 = vrot.lane.b32.xlu0 %v500, 96
    %v659 = vpop.permute.xlu0 %658
    %661 = vst.msk [vmem:[#allocation2 + $0x1] sm:$0x1] %vm655, %v659
    %662 = vrot.lane.b32.xlu0 %v500, 64
    %v663 = vpop.permute.xlu0 %662
    %665 = vst.msk [vmem:[#allocation2 + $0x2] sm:$0x1] %vm655, %v663
    %666 = vrot.lane.b32.xlu0 %v500, 32
    %v667 = vpop.permute.xlu0 %666
    %669 = vst.msk [vmem:[#allocation2 + $0x3] sm:$0x1] %vm655, %v667
    %670 = vst.msk [vmem:[#allocation2 + $0x4] sm:$0x1] %vm655, %v502
    %672 = vrot.lane.b32.xlu0 %v502, 96
    %v673 = vpop.permute.xlu0 %672
    %675 = vst.msk [vmem:[#allocation2 + $0x5] sm:$0x1] %vm655, %v673
    %676 = vrot.lane.b32.xlu0 %v502, 64
    %v677 = vpop.permute.xlu0 %676
    %679 = vst.msk [vmem:[#allocation2 + $0x6] sm:$0x1] %vm655, %v677
    %680 = vrot.lane.b32.xlu0 %v502, 32
    %v681 = vpop.permute.xlu0 %680
    %683 = vst.msk [vmem:[#allocation2 + $0x7] sm:$0x1] %vm655, %v681
    %vm684 = vcmask 254977
    %685 = vst.msk [vmem:[#allocation2 + $0xf] sm:$0x2] %vm684, %v500
    %686 = vst.msk [vmem:[#allocation2 + $0x10] sm:$0x2] %vm684, %v659
    %687 = vst.msk [vmem:[#allocation2 + $0x11] sm:$0x2] %vm684, %v663
    %688 = vst.msk [vmem:[#allocation2 + $0x12] sm:$0x2] %vm684, %v667
    %689 = vst.msk [vmem:[#allocation2 + $0x13] sm:$0x2] %vm684, %v502
    %690 = vst.msk [vmem:[#allocation2 + $0x14] sm:$0x2] %vm684, %v673
    %691 = vst.msk [vmem:[#allocation2 + $0x15] sm:$0x2] %vm684, %v677
    %692 = vst.msk [vmem:[#allocation2 + $0x16] sm:$0x2] %vm684, %v681
    %v693 = vld [vmem:[#allocation2] sm:$0xff]
    %v694 = vld [vmem:[#allocation2 + $0x8] sm:$0xff]
    %v695 = vld [vmem:[#allocation2 + $0x10] sm:$0xff]
    %v696 = vld [vmem:[#allocation2 + $0x18] sm:$0xff]
    %v697 = vld [vmem:[%s3] sm:$0xff]
    %v698 = vld [vmem:[%s3 + $0x8] sm:$0xff]
    %v699 = vld [vmem:[%s3 + $0x10] sm:$0xff]
    %v700 = vld [vmem:[%s3 + $0x18] sm:$0xff]
    %v701 = vadd.f32 %v693, %v697
    %v702 = vadd.f32 %v694, %v698
    %v703 = vadd.f32 %v695, %v699
    %v704 = vadd.f32 %v696, %v700
    %v705 = vld [vmem:[%s2] sm:$0xff]
    %v706 = vld [vmem:[%s2 + $0x8] sm:$0xff]
    %v707 = vld [vmem:[%s2 + $0x10] sm:$0xff]
    %v708 = vld [vmem:[%s2 + $0x18] sm:$0xff]
    %v709 = vld [vmem:[#allocation12] sm:$0x1]
    %v710 = vld [vmem:[#allocation14] sm:$0x1]
    %v711 = vsel %vm311, %v701, 0.0
    %712 = vadd.xlane.f32.xlu0 %v711
    %v713 = vpop.xlane.xlu0 %712
    %v714 = vsel %vm311, %v702, 0.0
    %715 = vadd.xlane.f32.xlu0 %v714
    %v716 = vpop.xlane.xlu0 %715
    %v717 = vsel %vm311, %v703, 0.0
    %718 = vadd.xlane.f32.xlu0 %v717
    %v719 = vpop.xlane.xlu0 %718
    %v720 = vsel %vm311, %v704, 0.0
    %721 = vadd.xlane.f32.xlu0 %v720
    %v722 = vpop.xlane.xlu0 %721
    %v723 = vrcp.pop 32.0
    %v724 = vmul.f32 %v713, %v723
    %v725 = vmul.f32 %v716, %v723
    %v726 = vmul.f32 %v719, %v723
    %v727 = vmul.f32 %v722, %v723
    %v728 = vsub.f32 %v701, %v724
    %v729 = vsub.f32 %v702, %v725
    %v730 = vsub.f32 %v703, %v726
    %v731 = vsub.f32 %v704, %v727
    %v732 = vmul.f32 %v728, %v728
    %v733 = vmul.f32 %v729, %v729
    %v734 = vmul.f32 %v730, %v730
    %v735 = vmul.f32 %v731, %v731
    %v736 = vsel %vm311, %v732, 0.0
    %737 = vadd.xlane.f32.xlu0 %v736
    %v738 = vpop.xlane.xlu0 %737
    %v739 = vsel %vm311, %v733, 0.0
    %740 = vadd.xlane.f32.xlu0 %v739
    %v741 = vpop.xlane.xlu0 %740
    %v742 = vsel %vm311, %v734, 0.0
    %743 = vadd.xlane.f32.xlu0 %v742
    %v744 = vpop.xlane.xlu0 %743
    %v745 = vsel %vm311, %v735, 0.0
    %746 = vadd.xlane.f32.xlu0 %v745
    %v747 = vpop.xlane.xlu0 %746
    %v748 = vmul.f32 %v738, %v723
    %v749 = vmul.f32 %v741, %v723
    %v750 = vmul.f32 %v744, %v723
    %v751 = vmul.f32 %v747, %v723
    %v752 = vadd.f32 %v748, 1e-05
    %v753 = vadd.f32 %v749, 1e-05
    %v754 = vadd.f32 %v750, 1e-05
    %v755 = vadd.f32 %v751, 1e-05
    %v756 = vrsqrt.pop %v752
    %v757 = vrsqrt.pop %v753
    %v758 = vrsqrt.pop %v754
    %v759 = vrsqrt.pop %v755
    %v760 = vmul.f32 %v728, %v756
    %v761 = vmul.f32 %v729, %v757
    %v762 = vmul.f32 %v730, %v758
    %v763 = vmul.f32 %v731, %v759
    %v765 = vlaneseq
    %v766 = vshrl.u32 %v765, 7
    %v767 = vsub.s32 0, %v766
    %v768 = vrot.slane %v709, %v767
    %v770 = vmul.f32 %v760, %v768
    %v771 = vmul.f32 %v761, %v768
    %v772 = vmul.f32 %v762, %v768
    %v773 = vmul.f32 %v763, %v768
    %v775 = vlaneseq
    %v776 = vshrl.u32 %v775, 7
    %v777 = vsub.s32 0, %v776
    %v778 = vrot.slane %v710, %v777
    %v780 = vadd.f32 %v770, %v778
    %v781 = vadd.f32 %v771, %v778
    %v782 = vadd.f32 %v772, %v778
    %v783 = vadd.f32 %v773, %v778
    %v784 = vpack.c.bf16 %v781, %v780
    %v785 = vpack.c.bf16 %v783, %v782
    %v786 = vld [vmem:[%s12] sm:$0xf]
    %v787 = vld [vmem:[%s12 + $0x4] sm:$0xf]
    %v788 = vld [vmem:[%s12 + $0x8] sm:$0xf]
    %v789 = vld [vmem:[%s12 + $0xc] sm:$0xf]
    %v790 = vld [vmem:[#allocation15] sm:$0x1]
    %v792 = vlaneseq
    %v793 = vshrl.u32 %v792, 7
    %v794 = vsub.s32 0, %v793
    %v795 = vrot.slane %v790, %v794
    %v801 = vunpack.c.l.b16 %v786
    %v802 = vunpack.c.l.b16 %v787
    %v803 = vunpack.c.l.b16 %v788
    %v804 = vunpack.c.l.b16 %v789
    %v805 = vpack.c.b16 %v802, %v801
    %v806 = vpack.c.b16 %v804, %v803
    %v810 = vsel %vm311, %v784, 0
    %v813 = vsel %vm311, %v785, 0
    %815 = vmatprep.subr.bf16.mxu0 0
    %816 = vmatpush1.bf16.msra.mxu0 0
    %817 = vmatprep.subr.bf16.mxu0 0
    %818 = vmatpush1.bf16.msra.mxu0 0
    %819 = vmatprep.subr.bf16.mxu0 0
    %820 = vmatpush1.bf16.msra.mxu0 0
    %821 = vmatprep.subr.bf16.mxu0 0
    %822 = vmatpush1.bf16.msra.mxu0 0
    %823 = vmatprep.subr.bf16.mxu0 0
    %824 = vmatpush1.bf16.msra.mxu0 0
    %825 = vmatprep.subr.bf16.mxu0 0
    %826 = vmatpush1.bf16.msra.mxu0 0
    %827 = vmatprep.subr.bf16.mxu0 0
    %828 = vmatpush1.bf16.msra.mxu0 %v806
    %829 = vmatprep.subr.bf16.mxu0 0
    %830 = vmatpush1.bf16.msra.mxu0 %v805
    %831 = vmatprep.subr.bf16.mxu0 0
    %832 = vmatpush2.bf16.msra.mxu0 0
    %833 = vmatprep.subr.bf16.mxu0 0
    %834 = vmatpush2.bf16.msra.mxu0 0
    %835 = vmatprep.subr.bf16.mxu0 0
    %836 = vmatpush2.bf16.msra.mxu0 0
    %837 = vmatprep.subr.bf16.mxu0 0
    %838 = vmatpush2.bf16.msra.mxu0 0
    %839 = vmatprep.subr.bf16.mxu0 0
    %840 = vmatpush2.bf16.msra.mxu0 0
    %841 = vmatprep.subr.bf16.mxu0 0
    %842 = vmatpush2.bf16.msra.mxu0 0
    %843 = vmatprep.subr.bf16.mxu0 0
    %844 = vmatpush2.bf16.msra.mxu0 0
    %845 = vmatprep.subr.bf16.mxu0 0
    %846 = vmatpush2.bf16.msra.mxu0 0
    %847 = vmatprep.mubr.bf16.mxu0 0
    %848 = vmatmul.mubr.bf16.gmra.mxu0 %v810
    %v849 = vpop.f32.mrf.mxu0
    %v850 = vadd.f32 %v795, %v849
    %v851 = vpop.f32.mrf.mxu0
    %v852 = vpop.f32.mrf.mxu0
    %v853 = vadd.f32 %v795, %v852
    %v854 = vpop.f32.mrf.mxu0
    %855 = vmatprep.mubr.bf16.mxu0 0
    %856 = vmatmul.mubr.bf16.gmra.mxu0 %v813
    %v857 = vpop.f32.mrf.mxu0
    %v858 = vadd.f32 %v795, %v857
    %v859 = vpop.f32.mrf.mxu0
    %v860 = vpop.f32.mrf.mxu0
    %v861 = vadd.f32 %v795, %v860
    %v862 = vpop.f32.mrf.mxu0
    %863 = vdwg.mxu0
    %v864 = vpack.c.bf16 %v853, %v850
    %v865 = vpack.c.bf16 %v861, %v858
    %868 = vrot.lane.b32.xlu0 %v864, 96
    %v869 = vpop.permute.xlu0 %868
    %870 = vrot.lane.b32.xlu0 %v865, 96
    %v871 = vpop.permute.xlu0 %870
    %vm872 = vcmask 130048
    %v874 = vsel %vm872, %v864, 0
    %v877 = vsel %vm872, %v865, 0
    %v880 = vsel %vm872, %v869, 0
    %v883 = vsel %vm872, %v871, 0
    %885 = vmatprep.subr.bf16.mxu0 0
    %886 = vmatpush1.bf16.xpose.msra.mxu0 0
    %887 = vmatprep.subr.bf16.mxu0 0
    %888 = vmatpush1.bf16.xpose.msra.mxu0 0
    %889 = vmatprep.subr.bf16.mxu0 0
    %890 = vmatpush1.bf16.xpose.msra.mxu0 0
    %891 = vmatprep.subr.bf16.mxu0 0
    %892 = vmatpush1.bf16.xpose.msra.mxu0 0
    %893 = vmatprep.subr.bf16.mxu0 0
    %894 = vmatpush1.bf16.xpose.msra.mxu0 0
    %895 = vmatprep.subr.bf16.mxu0 0
    %896 = vmatpush1.bf16.xpose.msra.mxu0 0
    %897 = vmatprep.subr.bf16.mxu0 0
    %898 = vmatpush1.bf16.xpose.msra.mxu0 %v883
    %899 = vmatprep.subr.bf16.mxu0 0
    %900 = vmatpush1.bf16.xpose.msra.mxu0 %v880
    %901 = vmatprep.subr.bf16.mxu0 0
    %902 = vmatpush2.bf16.xpose.msra.mxu0 0
    %903 = vmatprep.subr.bf16.mxu0 0
    %904 = vmatpush2.bf16.xpose.msra.mxu0 0
    %905 = vmatprep.subr.bf16.mxu0 0
    %906 = vmatpush2.bf16.xpose.msra.mxu0 0
    %907 = vmatprep.subr.bf16.mxu0 0
    %908 = vmatpush2.bf16.xpose.msra.mxu0 0
    %909 = vmatprep.subr.bf16.mxu0 0
    %910 = vmatpush2.bf16.xpose.msra.mxu0 0
    %911 = vmatprep.subr.bf16.mxu0 0
    %912 = vmatpush2.bf16.xpose.msra.mxu0 0
    %913 = vmatprep.subr.bf16.mxu0 0
    %914 = vmatpush2.bf16.xpose.msra.mxu0 0
    %915 = vmatprep.subr.bf16.mxu0 0
    %916 = vmatpush2.bf16.xpose.msra.mxu0 0
    %917 = vmatprep.mubr.bf16.mxu0 0
    %918 = vmatmul.mubr.bf16.gmra.mxu0 %v874
    %v919 = vpop.f32.mrf.mxu0
    %v920 = vadd.f32 %v705, %v919
    %v921 = vpop.f32.mrf.mxu0
    %v922 = vpop.f32.mrf.mxu0
    %v923 = vadd.f32 %v706, %v922
    %v924 = vpop.f32.mrf.mxu0
    %925 = vmatprep.mubr.bf16.mxu0 0
    %926 = vmatmul.mubr.bf16.gmra.mxu0 %v877
    %v927 = vpop.f32.mrf.mxu0
    %v928 = vadd.f32 %v707, %v927
    %v929 = vpop.f32.mrf.mxu0
    %v930 = vpop.f32.mrf.mxu0
    %v931 = vadd.f32 %v708, %v930
    %v932 = vpop.f32.mrf.mxu0
    %933 = vdwg.mxu0
    %v934 = vsel %vm311, %v920, -inf
    %935 = vmax.xlane.f32.xlu0 %v934
    %v936 = vpop.xlane.xlu0 %935
    %v937 = vsel %vm311, %v923, -inf
    %938 = vmax.xlane.f32.xlu0 %v937
    %v939 = vpop.xlane.xlu0 %938
    %v940 = vsel %vm311, %v928, -inf
    %941 = vmax.xlane.f32.xlu0 %v940
    %v942 = vpop.xlane.xlu0 %941
    %v943 = vsel %vm311, %v931, -inf
    %944 = vmax.xlane.f32.xlu0 %v943
    %v945 = vpop.xlane.xlu0 %944
    %v946 = vsub.f32 %v920, %v936
    %v947 = vsub.f32 %v923, %v939
    %v948 = vsub.f32 %v928, %v942
    %v949 = vsub.f32 %v931, %v945
    %v950 = vmul.f32 %v946, 1.442695
    %v951 = vpow.pop %v950
    %v952 = vmul.f32 %v947, 1.442695
    %v953 = vpow.pop %v952
    %v954 = vmul.f32 %v948, 1.442695
    %v955 = vpow.pop %v954
    %v956 = vmul.f32 %v949, 1.442695
    %v957 = vpow.pop %v956
    %v958 = vsel %vm311, %v951, 0.0
    %959 = vadd.xlane.f32.xlu0 %v958
    %v960 = vpop.xlane.xlu0 %959
    %v961 = vsel %vm311, %v953, 0.0
    %962 = vadd.xlane.f32.xlu0 %v961
    %v963 = vpop.xlane.xlu0 %962
    %v964 = vsel %vm311, %v955, 0.0
    %965 = vadd.xlane.f32.xlu0 %v964
    %v966 = vpop.xlane.xlu0 %965
    %v967 = vsel %vm311, %v957, 0.0
    %968 = vadd.xlane.f32.xlu0 %v967
    %v969 = vpop.xlane.xlu0 %968
    %v970 = vrcp.pop %v960
    %v971 = vrcp.pop %v963
    %v972 = vrcp.pop %v966
    %v973 = vrcp.pop %v969
    %v974 = vmul.f32 %v951, %v970
    %v975 = vmul.f32 %v953, %v971
    %v976 = vmul.f32 %v955, %v972
    %v977 = vmul.f32 %v957, %v973
    %v978 = vpack.c.bf16 %v975, %v974
    %v979 = vpack.c.bf16 %v977, %v976
    %980 = vrot.lane.b32.xlu0 %v864, 64
    %v981 = vpop.permute.xlu0 %980
    %982 = vrot.lane.b32.xlu0 %v865, 64
    %v983 = vpop.permute.xlu0 %982
    %v987 = vsel %vm311, %v978, 0
    %v990 = vsel %vm311, %v979, 0
    %992 = vmatprep.subr.bf16.mxu0 0
    %993 = vmatpush1.bf16.msra.mxu0 0
    %994 = vmatprep.subr.bf16.mxu0 0
    %995 = vmatpush1.bf16.msra.mxu0 0
    %996 = vmatprep.subr.bf16.mxu0 0
    %997 = vmatpush1.bf16.msra.mxu0 0
    %998 = vmatprep.subr.bf16.mxu0 0
    %999 = vmatpush1.bf16.msra.mxu0 0
    %1000 = vmatprep.subr.bf16.mxu0 0
    %1001 = vmatpush1.bf16.msra.mxu0 0
    %1002 = vmatprep.subr.bf16.mxu0 0
    %1003 = vmatpush1.bf16.msra.mxu0 0
    %1004 = vmatprep.subr.bf16.mxu0 0
    %1005 = vmatpush1.bf16.msra.mxu0 %v983
    %1006 = vmatprep.subr.bf16.mxu0 0
    %1007 = vmatpush1.bf16.msra.mxu0 %v981
    %1008 = vmatprep.subr.bf16.mxu0 0
    %1009 = vmatpush2.bf16.msra.mxu0 0
    %1010 = vmatprep.subr.bf16.mxu0 0
    %1011 = vmatpush2.bf16.msra.mxu0 0
    %1012 = vmatprep.subr.bf16.mxu0 0
    %1013 = vmatpush2.bf16.msra.mxu0 0
    %1014 = vmatprep.subr.bf16.mxu0 0
    %1015 = vmatpush2.bf16.msra.mxu0 0
    %1016 = vmatprep.subr.bf16.mxu0 0
    %1017 = vmatpush2.bf16.msra.mxu0 0
    %1018 = vmatprep.subr.bf16.mxu0 0
    %1019 = vmatpush2.bf16.msra.mxu0 0
    %1020 = vmatprep.subr.bf16.mxu0 0
    %1021 = vmatpush2.bf16.msra.mxu0 0
    %1022 = vmatprep.subr.bf16.mxu0 0
    %1023 = vmatpush2.bf16.msra.mxu0 0
    %1024 = vmatprep.mubr.bf16.mxu0 0
    %1025 = vmatmul.mubr.bf16.gmra.mxu0 %v987
    %v1026 = vpop.f32.mrf.mxu0
    %v1027 = vadd.f32 0.0, %v1026
    %v1028 = vpop.f32.mrf.mxu0
    %v1029 = vpop.f32.mrf.mxu0
    %v1030 = vadd.f32 0.0, %v1029
    %v1031 = vpop.f32.mrf.mxu0
    %1032 = vmatprep.mubr.bf16.mxu0 0
    %1033 = vmatmul.mubr.bf16.gmra.mxu0 %v990
    %v1034 = vpop.f32.mrf.mxu0
    %v1035 = vadd.f32 0.0, %v1034
    %v1036 = vpop.f32.mrf.mxu0
    %v1037 = vpop.f32.mrf.mxu0
    %v1038 = vadd.f32 0.0, %v1037
    %v1039 = vpop.f32.mrf.mxu0
    %1040 = vdwg.mxu0
    %v1041 = vpack.c.bf16 %v1030, %v1027
    %v1042 = vpack.c.bf16 %v1038, %v1035
    %v1043 = vld [vmem:[%s14] sm:$0xf]
    %v1044 = vld [vmem:[%s14 + $0x4] sm:$0xf]
    %1045 = vrot.lane.b32.xlu0 %v864, 112
    %v1046 = vpop.permute.xlu0 %1045
    %1047 = vrot.lane.b32.xlu0 %v865, 112
    %v1048 = vpop.permute.xlu0 %1047
    %1049 = vrot.lane.b32.xlu0 %v864, 80
    %v1050 = vpop.permute.xlu0 %1049
    %1051 = vrot.lane.b32.xlu0 %v865, 80
    %v1052 = vpop.permute.xlu0 %1051
    %v1054 = vsel %vm872, %v1046, 0
    %v1057 = vsel %vm872, %v1048, 0
    %v1060 = vsel %vm872, %v1050, 0
    %v1063 = vsel %vm872, %v1052, 0
    %1065 = vmatprep.subr.bf16.mxu0 0
    %1066 = vmatpush1.bf16.xpose.msra.mxu0 0
    %1067 = vmatprep.subr.bf16.mxu0 0
    %1068 = vmatpush1.bf16.xpose.msra.mxu0 0
    %1069 = vmatprep.subr.bf16.mxu0 0
    %1070 = vmatpush1.bf16.xpose.msra.mxu0 0
    %1071 = vmatprep.subr.bf16.mxu0 0
    %1072 = vmatpush1.bf16.xpose.msra.mxu0 0
    %1073 = vmatprep.subr.bf16.mxu0 0
    %1074 = vmatpush1.bf16.xpose.msra.mxu0 0
    %1075 = vmatprep.subr.bf16.mxu0 0
    %1076 = vmatpush1.bf16.xpose.msra.mxu0 0
    %1077 = vmatprep.subr.bf16.mxu0 0
    %1078 = vmatpush1.bf16.xpose.msra.mxu0 %v1063
    %1079 = vmatprep.subr.bf16.mxu0 0
    %1080 = vmatpush1.bf16.xpose.msra.mxu0 %v1060
    %1081 = vmatprep.subr.bf16.mxu0 0
    %1082 = vmatpush2.bf16.xpose.msra.mxu0 0
    %1083 = vmatprep.subr.bf16.mxu0 0
    %1084 = vmatpush2.bf16.xpose.msra.mxu0 0
    %1085 = vmatprep.subr.bf16.mxu0 0
    %1086 = vmatpush2.bf16.xpose.msra.mxu0 0
    %1087 = vmatprep.subr.bf16.mxu0 0
    %1088 = vmatpush2.bf16.xpose.msra.mxu0 0
    %1089 = vmatprep.subr.bf16.mxu0 0
    %1090 = vmatpush2.bf16.xpose.msra.mxu0 0
    %1091 = vmatprep.subr.bf16.mxu0 0
    %1092 = vmatpush2.bf16.xpose.msra.mxu0 0
    %1093 = vmatprep.subr.bf16.mxu0 0
    %1094 = vmatpush2.bf16.xpose.msra.mxu0 0
    %1095 = vmatprep.subr.bf16.mxu0 0
    %1096 = vmatpush2.bf16.xpose.msra.mxu0 0
    %1097 = vmatprep.mubr.bf16.mxu0 0
    %1098 = vmatmul.mubr.bf16.gmra.mxu0 %v1054
    %v1099 = vpop.f32.mrf.mxu0
    %v1100 = vadd.f32 %v705, %v1099
    %v1101 = vpop.f32.mrf.mxu0
    %v1102 = vpop.f32.mrf.mxu0
    %v1103 = vadd.f32 %v706, %v1102
    %v1104 = vpop.f32.mrf.mxu0
    %1105 = vmatprep.mubr.bf16.mxu0 0
    %1106 = vmatmul.mubr.bf16.gmra.mxu0 %v1057
    %v1107 = vpop.f32.mrf.mxu0
    %v1108 = vadd.f32 %v707, %v1107
    %v1109 = vpop.f32.mrf.mxu0
    %v1110 = vpop.f32.mrf.mxu0
    %v1111 = vadd.f32 %v708, %v1110
    %v1112 = vpop.f32.mrf.mxu0
    %1113 = vdwg.mxu0
    %v1114 = vsel %vm311, %v1100, -inf
    %1115 = vmax.xlane.f32.xlu0 %v1114
    %v1116 = vpop.xlane.xlu0 %1115
    %v1117 = vsel %vm311, %v1103, -inf
    %1118 = vmax.xlane.f32.xlu0 %v1117
    %v1119 = vpop.xlane.xlu0 %1118
    %v1120 = vsel %vm311, %v1108, -inf
    %1121 = vmax.xlane.f32.xlu0 %v1120
    %v1122 = vpop.xlane.xlu0 %1121
    %v1123 = vsel %vm311, %v1111, -inf
    %1124 = vmax.xlane.f32.xlu0 %v1123
    %v1125 = vpop.xlane.xlu0 %1124
    %v1126 = vsub.f32 %v1100, %v1116
    %v1127 = vsub.f32 %v1103, %v1119
    %v1128 = vsub.f32 %v1108, %v1122
    %v1129 = vsub.f32 %v1111, %v1125
    %v1130 = vmul.f32 %v1126, 1.442695
    %v1131 = vpow.pop %v1130
    %v1132 = vmul.f32 %v1127, 1.442695
    %v1133 = vpow.pop %v1132
    %v1134 = vmul.f32 %v1128, 1.442695
    %v1135 = vpow.pop %v1134
    %v1136 = vmul.f32 %v1129, 1.442695
    %v1137 = vpow.pop %v1136
    %v1138 = vsel %vm311, %v1131, 0.0
    %1139 = vadd.xlane.f32.xlu0 %v1138
    %v1140 = vpop.xlane.xlu0 %1139
    %v1141 = vsel %vm311, %v1133, 0.0
    %1142 = vadd.xlane.f32.xlu0 %v1141
    %v1143 = vpop.xlane.xlu0 %1142
    %v1144 = vsel %vm311, %v1135, 0.0
    %1145 = vadd.xlane.f32.xlu0 %v1144
    %v1146 = vpop.xlane.xlu0 %1145
    %v1147 = vsel %vm311, %v1137, 0.0
    %1148 = vadd.xlane.f32.xlu0 %v1147
    %v1149 = vpop.xlane.xlu0 %1148
    %v1150 = vrcp.pop %v1140
    %v1151 = vrcp.pop %v1143
    %v1152 = vrcp.pop %v1146
    %v1153 = vrcp.pop %v1149
    %v1154 = vmul.f32 %v1131, %v1150
    %v1155 = vmul.f32 %v1133, %v1151
    %v1156 = vmul.f32 %v1135, %v1152
    %v1157 = vmul.f32 %v1137, %v1153
    %v1158 = vpack.c.bf16 %v1155, %v1154
    %v1159 = vpack.c.bf16 %v1157, %v1156
    %1160 = vrot.lane.b32.xlu0 %v864, 48
    %v1161 = vpop.permute.xlu0 %1160
    %1162 = vrot.lane.b32.xlu0 %v865, 48
    %v1163 = vpop.permute.xlu0 %1162
    %v1167 = vsel %vm311, %v1158, 0
    %v1170 = vsel %vm311, %v1159, 0
    %1172 = vmatprep.subr.bf16.mxu0 0
    %1173 = vmatpush1.bf16.msra.mxu0 0
    %1174 = vmatprep.subr.bf16.mxu0 0
    %1175 = vmatpush1.bf16.msra.mxu0 0
    %1176 = vmatprep.subr.bf16.mxu0 0
    %1177 = vmatpush1.bf16.msra.mxu0 0
    %1178 = vmatprep.subr.bf16.mxu0 0
    %1179 = vmatpush1.bf16.msra.mxu0 0
    %1180 = vmatprep.subr.bf16.mxu0 0
    %1181 = vmatpush1.bf16.msra.mxu0 0
    %1182 = vmatprep.subr.bf16.mxu0 0
    %1183 = vmatpush1.bf16.msra.mxu0 0
    %1184 = vmatprep.subr.bf16.mxu0 0
    %1185 = vmatpush1.bf16.msra.mxu0 %v1163
    %1186 = vmatprep.subr.bf16.mxu0 0
    %1187 = vmatpush1.bf16.msra.mxu0 %v1161
    %1188 = vmatprep.subr.bf16.mxu0 0
    %1189 = vmatpush2.bf16.msra.mxu0 0
    %1190 = vmatprep.subr.bf16.mxu0 0
    %1191 = vmatpush2.bf16.msra.mxu0 0
    %1192 = vmatprep.subr.bf16.mxu0 0
    %1193 = vmatpush2.bf16.msra.mxu0 0
    %1194 = vmatprep.subr.bf16.mxu0 0
    %1195 = vmatpush2.bf16.msra.mxu0 0
    %1196 = vmatprep.subr.bf16.mxu0 0
    %1197 = vmatpush2.bf16.msra.mxu0 0
    %1198 = vmatprep.subr.bf16.mxu0 0
    %1199 = vmatpush2.bf16.msra.mxu0 0
    %1200 = vmatprep.subr.bf16.mxu0 0
    %1201 = vmatpush2.bf16.msra.mxu0 0
    %1202 = vmatprep.subr.bf16.mxu0 0
    %1203 = vmatpush2.bf16.msra.mxu0 0
    %1204 = vmatprep.mubr.bf16.mxu0 0
    %1205 = vmatmul.mubr.bf16.gmra.mxu0 %v1167
    %v1206 = vpop.f32.mrf.mxu0
    %v1207 = vadd.f32 0.0, %v1206
    %v1208 = vpop.f32.mrf.mxu0
    %v1209 = vpop.f32.mrf.mxu0
    %v1210 = vadd.f32 0.0, %v1209
    %v1211 = vpop.f32.mrf.mxu0
    %1212 = vmatprep.mubr.bf16.mxu0 0
    %1213 = vmatmul.mubr.bf16.gmra.mxu0 %v1170
    %v1214 = vpop.f32.mrf.mxu0
    %v1215 = vadd.f32 0.0, %v1214
    %v1216 = vpop.f32.mrf.mxu0
    %v1217 = vpop.f32.mrf.mxu0
    %v1218 = vadd.f32 0.0, %v1217
    %v1219 = vpop.f32.mrf.mxu0
    %1220 = vdwg.mxu0
    %v1221 = vpack.c.bf16 %v1210, %v1207
    %v1222 = vpack.c.bf16 %v1218, %v1215
    %s1223 = scalar_lea.vmem %s14, 8
    %v1224 = vld [vmem:[%s1223] sm:$0xf]
    %v1225 = vld [vmem:[%s1223 + $0x4] sm:$0xf]
    %v1228 = vunpack.c.l.b16 %v1224
    %v1229 = vunpack.c.l.b16 %v1225
    %v1230 = vpack.c.b16 %v1229, %v1228
    %v1233 = vsel %vm872, %v1221, 0
    %v1236 = vsel %vm872, %v1222, 0
    %1238 = vmatprep.subr.bf16.mxu0 0
    %1239 = vmatpush1.bf16.msra.mxu0 0
    %1240 = vmatprep.subr.bf16.mxu0 0
    %1241 = vmatpush1.bf16.msra.mxu0 0
    %1242 = vmatprep.subr.bf16.mxu0 0
    %1243 = vmatpush1.bf16.msra.mxu0 0
    %1244 = vmatprep.subr.bf16.mxu0 0
    %1245 = vmatpush1.bf16.msra.mxu0 0
    %1246 = vmatprep.subr.bf16.mxu0 0
    %1247 = vmatpush1.bf16.msra.mxu0 0
    %1248 = vmatprep.subr.bf16.mxu0 0
    %1249 = vmatpush1.bf16.msra.mxu0 0
    %1250 = vmatprep.subr.bf16.mxu0 0
    %1251 = vmatpush1.bf16.msra.mxu0 0
    %1252 = vmatprep.subr.bf16.mxu0 0
    %1253 = vmatpush1.bf16.msra.mxu0 %v1230
    %1254 = vmatprep.subr.bf16.mxu0 0
    %1255 = vmatpush2.bf16.msra.mxu0 0
    %1256 = vmatprep.subr.bf16.mxu0 0
    %1257 = vmatpush2.bf16.msra.mxu0 0
    %1258 = vmatprep.subr.bf16.mxu0 0
    %1259 = vmatpush2.bf16.msra.mxu0 0
    %1260 = vmatprep.subr.bf16.mxu0 0
    %1261 = vmatpush2.bf16.msra.mxu0 0
    %1262 = vmatprep.subr.bf16.mxu0 0
    %1263 = vmatpush2.bf16.msra.mxu0 0
    %1264 = vmatprep.subr.bf16.mxu0 0
    %1265 = vmatpush2.bf16.msra.mxu0 0
    %1266 = vmatprep.subr.bf16.mxu0 0
    %1267 = vmatpush2.bf16.msra.mxu0 0
    %1268 = vmatprep.subr.bf16.mxu0 0
    %1269 = vmatpush2.bf16.msra.mxu0 0
    %1270 = vmatprep.mubr.bf16.mxu0 0
    %1271 = vmatmul.mubr.bf16.gmra.mxu0 %v1233
    %v1272 = vpop.f32.mrf.mxu0
    %v1273 = vadd.f32 0.0, %v1272
    %v1274 = vpop.f32.mrf.mxu0
    %v1275 = vpop.f32.mrf.mxu0
    %v1276 = vadd.f32 0.0, %v1275
    %v1277 = vpop.f32.mrf.mxu0
    %1278 = vmatprep.mubr.bf16.mxu0 0
    %1279 = vmatmul.mubr.bf16.gmra.mxu0 %v1236
    %v1280 = vpop.f32.mrf.mxu0
    %v1281 = vadd.f32 0.0, %v1280
    %v1282 = vpop.f32.mrf.mxu0
    %v1283 = vpop.f32.mrf.mxu0
    %v1284 = vadd.f32 0.0, %v1283
    %v1285 = vpop.f32.mrf.mxu0
    %1286 = vdwg.mxu0
    %v1289 = vunpack.c.l.b16 %v1043
    %v1290 = vunpack.c.l.b16 %v1044
    %v1291 = vpack.c.b16 %v1290, %v1289
    %v1294 = vsel %vm872, %v1041, 0
    %v1297 = vsel %vm872, %v1042, 0
    %1299 = vmatprep.subr.bf16.mxu0 0
    %1300 = vmatpush1.bf16.msra.mxu0 0
    %1301 = vmatprep.subr.bf16.mxu0 0
    %1302 = vmatpush1.bf16.msra.mxu0 0
    %1303 = vmatprep.subr.bf16.mxu0 0
    %1304 = vmatpush1.bf16.msra.mxu0 0
    %1305 = vmatprep.subr.bf16.mxu0 0
    %1306 = vmatpush1.bf16.msra.mxu0 0
    %1307 = vmatprep.subr.bf16.mxu0 0
    %1308 = vmatpush1.bf16.msra.mxu0 0
    %1309 = vmatprep.subr.bf16.mxu0 0
    %1310 = vmatpush1.bf16.msra.mxu0 0
    %1311 = vmatprep.subr.bf16.mxu0 0
    %1312 = vmatpush1.bf16.msra.mxu0 0
    %1313 = vmatprep.subr.bf16.mxu0 0
    %1314 = vmatpush1.bf16.msra.mxu0 %v1291
    %1315 = vmatprep.subr.bf16.mxu0 0
    %1316 = vmatpush2.bf16.msra.mxu0 0
    %1317 = vmatprep.subr.bf16.mxu0 0
    %1318 = vmatpush2.bf16.msra.mxu0 0
    %1319 = vmatprep.subr.bf16.mxu0 0
    %1320 = vmatpush2.bf16.msra.mxu0 0
    %1321 = vmatprep.subr.bf16.mxu0 0
    %1322 = vmatpush2.bf16.msra.mxu0 0
    %1323 = vmatprep.subr.bf16.mxu0 0
    %1324 = vmatpush2.bf16.msra.mxu0 0
    %1325 = vmatprep.subr.bf16.mxu0 0
    %1326 = vmatpush2.bf16.msra.mxu0 0
    %1327 = vmatprep.subr.bf16.mxu0 0
    %1328 = vmatpush2.bf16.msra.mxu0 0
    %1329 = vmatprep.subr.bf16.mxu0 0
    %1330 = vmatpush2.bf16.msra.mxu0 0
    %1331 = vmatprep.mubr.bf16.mxu0 0
    %1332 = vmatmul.mubr.bf16.gmra.mxu0 %v1294
    %v1333 = vpop.f32.mrf.mxu0
    %v1334 = vadd.f32 %v1273, %v1333
    %v1335 = vpop.f32.mrf.mxu0
    %v1336 = vpop.f32.mrf.mxu0
    %v1337 = vadd.f32 %v1276, %v1336
    %v1338 = vpop.f32.mrf.mxu0
    %1339 = vmatprep.mubr.bf16.mxu0 0
    %1340 = vmatmul.mubr.bf16.gmra.mxu0 %v1297
    %v1341 = vpop.f32.mrf.mxu0
    %v1342 = vadd.f32 %v1281, %v1341
    %v1343 = vpop.f32.mrf.mxu0
    %v1344 = vpop.f32.mrf.mxu0
    %v1345 = vadd.f32 %v1284, %v1344
    %v1346 = vpop.f32.mrf.mxu0
    %1347 = vdwg.mxu0
    %v1348 = vadd.f32 %v701, %v1334
    %v1349 = vadd.f32 %v702, %v1337
    %v1350 = vadd.f32 %v703, %v1342
    %v1351 = vadd.f32 %v704, %v1345
    %v1352 = vld [vmem:[#allocation17] sm:$0x1]
    %v1354 = vlaneseq
    %v1355 = vshrl.u32 %v1354, 7
    %v1356 = vsub.s32 0, %v1355
    %v1357 = vrot.slane %v1352, %v1356
    %v1359 = vadd.f32 %v1348, %v1357
    %v1360 = vadd.f32 %v1349, %v1357
    %v1361 = vadd.f32 %v1350, %v1357
    %v1362 = vadd.f32 %v1351, %v1357
    %v1363 = vld [vmem:[#allocation18] sm:$0x1]
    %v1364 = vld [vmem:[#allocation20] sm:$0x1]
    %v1365 = vsel %vm311, %v1359, 0.0
    %1366 = vadd.xlane.f32.xlu0 %v1365
    %v1367 = vpop.xlane.xlu0 %1366
    %v1368 = vsel %vm311, %v1360, 0.0
    %1369 = vadd.xlane.f32.xlu0 %v1368
    %v1370 = vpop.xlane.xlu0 %1369
    %v1371 = vsel %vm311, %v1361, 0.0
    %1372 = vadd.xlane.f32.xlu0 %v1371
    %v1373 = vpop.xlane.xlu0 %1372
    %v1374 = vsel %vm311, %v1362, 0.0
    %1375 = vadd.xlane.f32.xlu0 %v1374
    %v1376 = vpop.xlane.xlu0 %1375
    %v1377 = vmul.f32 %v1367, %v723
    %v1378 = vmul.f32 %v1370, %v723
    %v1379 = vmul.f32 %v1373, %v723
    %v1380 = vmul.f32 %v1376, %v723
    %v1381 = vsub.f32 %v1359, %v1377
    %v1382 = vsub.f32 %v1360, %v1378
    %v1383 = vsub.f32 %v1361, %v1379
    %v1384 = vsub.f32 %v1362, %v1380
    %v1385 = vmul.f32 %v1381, %v1381
    %v1386 = vmul.f32 %v1382, %v1382
    %v1387 = vmul.f32 %v1383, %v1383
    %v1388 = vmul.f32 %v1384, %v1384
    %v1389 = vsel %vm311, %v1385, 0.0
    %1390 = vadd.xlane.f32.xlu0 %v1389
    %v1391 = vpop.xlane.xlu0 %1390
    %v1392 = vsel %vm311, %v1386, 0.0
    %1393 = vadd.xlane.f32.xlu0 %v1392
    %v1394 = vpop.xlane.xlu0 %1393
    %v1395 = vsel %vm311, %v1387, 0.0
    %1396 = vadd.xlane.f32.xlu0 %v1395
    %v1397 = vpop.xlane.xlu0 %1396
    %v1398 = vsel %vm311, %v1388, 0.0
    %1399 = vadd.xlane.f32.xlu0 %v1398
    %v1400 = vpop.xlane.xlu0 %1399
    %v1401 = vmul.f32 %v1391, %v723
    %v1402 = vmul.f32 %v1394, %v723
    %v1403 = vmul.f32 %v1397, %v723
    %v1404 = vmul.f32 %v1400, %v723
    %v1405 = vadd.f32 %v1401, 1e-05
    %v1406 = vadd.f32 %v1402, 1e-05
    %v1407 = vadd.f32 %v1403, 1e-05
    %v1408 = vadd.f32 %v1404, 1e-05
    %v1409 = vrsqrt.pop %v1405
    %v1410 = vrsqrt.pop %v1406
    %v1411 = vrsqrt.pop %v1407
    %v1412 = vrsqrt.pop %v1408
    %v1413 = vmul.f32 %v1381, %v1409
    %v1414 = vmul.f32 %v1382, %v1410
    %v1415 = vmul.f32 %v1383, %v1411
    %v1416 = vmul.f32 %v1384, %v1412
    %v1418 = vlaneseq
    %v1419 = vshrl.u32 %v1418, 7
    %v1420 = vsub.s32 0, %v1419
    %v1421 = vrot.slane %v1363, %v1420
    %v1423 = vmul.f32 %v1413, %v1421
    %v1424 = vmul.f32 %v1414, %v1421
    %v1425 = vmul.f32 %v1415, %v1421
    %v1426 = vmul.f32 %v1416, %v1421
    %v1428 = vlaneseq
    %v1429 = vshrl.u32 %v1428, 7
    %v1430 = vsub.s32 0, %v1429
    %v1431 = vrot.slane %v1364, %v1430
    %v1433 = vadd.f32 %v1423, %v1431
    %v1434 = vadd.f32 %v1424, %v1431
    %v1435 = vadd.f32 %v1425, %v1431
    %v1436 = vadd.f32 %v1426, %v1431
    %v1437 = vpack.c.bf16 %v1434, %v1433
    %v1438 = vpack.c.bf16 %v1436, %v1435
    %v1439 = vld [vmem:[#allocation21] sm:$0xf]
    %v1440 = vld [vmem:[#allocation21 + $0x4] sm:$0xf]
    %v1441 = vld [vmem:[#allocation21 + $0x8] sm:$0xf]
    %v1442 = vld [vmem:[#allocation21 + $0xc] sm:$0xf]
    %v1443 = vld [vmem:[#allocation23] sm:$0x1]
    %v1445 = vlaneseq
    %v1446 = vshrl.u32 %v1445, 7
    %v1447 = vsub.s32 0, %v1446
    %v1448 = vrot.slane %v1443, %v1447
    %v1454 = vunpack.c.l.b16 %v1439
    %v1455 = vunpack.c.l.b16 %v1440
    %v1456 = vunpack.c.l.b16 %v1441
    %v1457 = vunpack.c.l.b16 %v1442
    %v1458 = vpack.c.b16 %v1455, %v1454
    %v1459 = vpack.c.b16 %v1457, %v1456
    %v1463 = vsel %vm311, %v1437, 0
    %v1466 = vsel %vm311, %v1438, 0
    %1468 = vmatprep.subr.bf16.mxu0 0
    %1469 = vmatpush1.bf16.msra.mxu0 0
    %1470 = vmatprep.subr.bf16.mxu0 0
    %1471 = vmatpush1.bf16.msra.mxu0 0
    %1472 = vmatprep.subr.bf16.mxu0 0
    %1473 = vmatpush1.bf16.msra.mxu0 0
    %1474 = vmatprep.subr.bf16.mxu0 0
    %1475 = vmatpush1.bf16.msra.mxu0 0
    %1476 = vmatprep.subr.bf16.mxu0 0
    %1477 = vmatpush1.bf16.msra.mxu0 0
    %1478 = vmatprep.subr.bf16.mxu0 0
    %1479 = vmatpush1.bf16.msra.mxu0 0
    %1480 = vmatprep.subr.bf16.mxu0 0
    %1481 = vmatpush1.bf16.msra.mxu0 %v1459
    %1482 = vmatprep.subr.bf16.mxu0 0
    %1483 = vmatpush1.bf16.msra.mxu0 %v1458
    %1484 = vmatprep.subr.bf16.mxu0 0
    %1485 = vmatpush2.bf16.msra.mxu0 0
    %1486 = vmatprep.subr.bf16.mxu0 0
    %1487 = vmatpush2.bf16.msra.mxu0 0
    %1488 = vmatprep.subr.bf16.mxu0 0
    %1489 = vmatpush2.bf16.msra.mxu0 0
    %1490 = vmatprep.subr.bf16.mxu0 0
    %1491 = vmatpush2.bf16.msra.mxu0 0
    %1492 = vmatprep.subr.bf16.mxu0 0
    %1493 = vmatpush2.bf16.msra.mxu0 0
    %1494 = vmatprep.subr.bf16.mxu0 0
    %1495 = vmatpush2.bf16.msra.mxu0 0
    %1496 = vmatprep.subr.bf16.mxu0 0
    %1497 = vmatpush2.bf16.msra.mxu0 0
    %1498 = vmatprep.subr.bf16.mxu0 0
    %1499 = vmatpush2.bf16.msra.mxu0 0
    %1500 = vmatprep.mubr.bf16.mxu0 0
    %1501 = vmatmul.mubr.bf16.gmra.mxu0 %v1463
    %v1502 = vpop.f32.mrf.mxu0
    %v1503 = vadd.f32 %v1448, %v1502
    %v1504 = vpop.f32.mrf.mxu0
    %v1505 = vpop.f32.mrf.mxu0
    %v1506 = vadd.f32 %v1448, %v1505
    %v1507 = vpop.f32.mrf.mxu0
    %1508 = vmatprep.mubr.bf16.mxu0 0
    %1509 = vmatmul.mubr.bf16.gmra.mxu0 %v1466
    %v1510 = vpop.f32.mrf.mxu0
    %v1511 = vadd.f32 %v1448, %v1510
    %v1512 = vpop.f32.mrf.mxu0
    %v1513 = vpop.f32.mrf.mxu0
    %v1514 = vadd.f32 %v1448, %v1513
    %v1515 = vpop.f32.mrf.mxu0
    %1516 = vdwg.mxu0
    %v1517 = vmul.f32 %v1503, 0.5
    %v1518 = vmul.f32 %v1506, 0.5
    %v1519 = vmul.f32 %v1511, 0.5
    %v1520 = vmul.f32 %v1514, 0.5
    %v1521 = vmul.f32 %v1503, 0.044715
    %v1522 = vmul.f32 %v1506, 0.044715
    %v1523 = vmul.f32 %v1511, 0.044715
    %v1524 = vmul.f32 %v1514, 0.044715
    %v1525 = vmul.f32 %v1521, %v1503
    %v1526 = vmul.f32 %v1522, %v1506
    %v1527 = vmul.f32 %v1523, %v1511
    %v1528 = vmul.f32 %v1524, %v1514
    %v1529 = vmul.f32 %v1525, %v1503
    %v1530 = vmul.f32 %v1526, %v1506
    %v1531 = vmul.f32 %v1527, %v1511
    %v1532 = vmul.f32 %v1528, %v1514
    %v1533 = vadd.f32 %v1503, %v1529
    %v1534 = vadd.f32 %v1506, %v1530
    %v1535 = vadd.f32 %v1511, %v1531
    %v1536 = vadd.f32 %v1514, %v1532
    %v1537 = vmul.f32 %v1533, 0.7978846
    %v1538 = vmul.f32 %v1534, 0.7978846
    %v1539 = vmul.f32 %v1535, 0.7978846
    %v1540 = vmul.f32 %v1536, 0.7978846
    %v1541 = vtanh.pop %v1537
    %v1542 = vtanh.pop %v1538
    %v1543 = vtanh.pop %v1539
    %v1544 = vtanh.pop %v1540
    %v1545 = vadd.f32 %v1541, 1.0
    %v1546 = vadd.f32 %v1542, 1.0
    %v1547 = vadd.f32 %v1543, 1.0
    %v1548 = vadd.f32 %v1544, 1.0
    %v1549 = vmul.f32 %v1517, %v1545
    %v1550 = vmul.f32 %v1518, %v1546
    %v1551 = vmul.f32 %v1519, %v1547
    %v1552 = vmul.f32 %v1520, %v1548
    %v1553 = vpack.c.bf16 %v1550, %v1549
    %v1554 = vpack.c.bf16 %v1552, %v1551
    %v1555 = vld [vmem:[%s20] sm:$0xf]
    %v1556 = vld [vmem:[%s20 + $0x4] sm:$0xf]
    %v1557 = vld [vmem:[%s20 + $0x8] sm:$0xf]
    %v1558 = vld [vmem:[%s20 + $0xc] sm:$0xf]
    %v1559 = vld [vmem:[%s20 + $0x10] sm:$0xf]
    %v1560 = vld [vmem:[%s20 + $0x14] sm:$0xf]
    %v1561 = vld [vmem:[%s20 + $0x18] sm:$0xf]
    %v1562 = vld [vmem:[%s20 + $0x1c] sm:$0xf]
    %v1563 = vld [vmem:[%s20 + $0x20] sm:$0xf]
    %v1564 = vld [vmem:[%s20 + $0x24] sm:$0xf]
    %v1565 = vld [vmem:[%s20 + $0x28] sm:$0xf]
    %v1566 = vld [vmem:[%s20 + $0x2c] sm:$0xf]
    %v1567 = vld [vmem:[%s20 + $0x30] sm:$0xf]
    %v1568 = vld [vmem:[%s20 + $0x34] sm:$0xf]
    %v1569 = vld [vmem:[%s20 + $0x38] sm:$0xf]
    %v1570 = vld [vmem:[%s20 + $0x3c] sm:$0xf]
    %v1571 = vld [vmem:[#allocation24] sm:$0x1]
    %v1573 = vlaneseq
    %v1574 = vshrl.u32 %v1573, 7
    %v1575 = vsub.s32 0, %v1574
    %v1576 = vrot.slane %v1571, %v1575
    %v1594 = vunpack.c.l.b16 %v1555
    %v1595 = vunpack.c.l.b16 %v1556
    %v1596 = vunpack.c.l.b16 %v1557
    %v1597 = vunpack.c.l.b16 %v1558
    %v1598 = vunpack.c.l.b16 %v1559
    %v1599 = vunpack.c.l.b16 %v1560
    %v1600 = vunpack.c.l.b16 %v1561
    %v1601 = vunpack.c.l.b16 %v1562
    %v1602 = vunpack.c.l.b16 %v1563
    %v1603 = vunpack.c.l.b16 %v1564
    %v1604 = vunpack.c.l.b16 %v1565
    %v1605 = vunpack.c.l.b16 %v1566
    %v1606 = vunpack.c.l.b16 %v1567
    %v1607 = vunpack.c.l.b16 %v1568
    %v1608 = vunpack.c.l.b16 %v1569
    %v1609 = vunpack.c.l.b16 %v1570
    %v1610 = vpack.c.b16 %v1595, %v1594
    %v1611 = vpack.c.b16 %v1597, %v1596
    %v1612 = vpack.c.b16 %v1599, %v1598
    %v1613 = vpack.c.b16 %v1601, %v1600
    %v1614 = vpack.c.b16 %v1603, %v1602
    %v1615 = vpack.c.b16 %v1605, %v1604
    %v1616 = vpack.c.b16 %v1607, %v1606
    %v1617 = vpack.c.b16 %v1609, %v1608
    %1626 = vmatprep.subr.bf16.mxu0 0
    %1627 = vmatpush1.bf16.msra.mxu0 %v1617
    %1628 = vmatprep.subr.bf16.mxu0 0
    %1629 = vmatpush1.bf16.msra.mxu0 %v1616
    %1630 = vmatprep.subr.bf16.mxu0 0
    %1631 = vmatpush1.bf16.msra.mxu0 %v1615
    %1632 = vmatprep.subr.bf16.mxu0 0
    %1633 = vmatpush1.bf16.msra.mxu0 %v1614
    %1634 = vmatprep.subr.bf16.mxu0 0
    %1635 = vmatpush1.bf16.msra.mxu0 %v1613
    %1636 = vmatprep.subr.bf16.mxu0 0
    %1637 = vmatpush1.bf16.msra.mxu0 %v1612
    %1638 = vmatprep.subr.bf16.mxu0 0
    %1639 = vmatpush1.bf16.msra.mxu0 %v1611
    %1640 = vmatprep.subr.bf16.mxu0 0
    %1641 = vmatpush1.bf16.msra.mxu0 %v1610
    %1642 = vmatprep.subr.bf16.mxu0 0
    %1643 = vmatpush2.bf16.msra.mxu0 0
    %1644 = vmatprep.subr.bf16.mxu0 0
    %1645 = vmatpush2.bf16.msra.mxu0 0
    %1646 = vmatprep.subr.bf16.mxu0 0
    %1647 = vmatpush2.bf16.msra.mxu0 0
    %1648 = vmatprep.subr.bf16.mxu0 0
    %1649 = vmatpush2.bf16.msra.mxu0 0
    %1650 = vmatprep.subr.bf16.mxu0 0
    %1651 = vmatpush2.bf16.msra.mxu0 0
    %1652 = vmatprep.subr.bf16.mxu0 0
    %1653 = vmatpush2.bf16.msra.mxu0 0
    %1654 = vmatprep.subr.bf16.mxu0 0
    %1655 = vmatpush2.bf16.msra.mxu0 0
    %1656 = vmatprep.subr.bf16.mxu0 0
    %1657 = vmatpush2.bf16.msra.mxu0 0
    %1658 = vmatprep.mubr.bf16.mxu0 0
    %1659 = vmatmul.mubr.bf16.gmra.mxu0 %v1553
    %v1660 = vpop.f32.mrf.mxu0
    %v1661 = vadd.f32 %v1576, %v1660
    %v1662 = vpop.f32.mrf.mxu0
    %v1663 = vpop.f32.mrf.mxu0
    %v1664 = vadd.f32 %v1576, %v1663
    %v1665 = vpop.f32.mrf.mxu0
    %1666 = vmatprep.mubr.bf16.mxu0 0
    %1667 = vmatmul.mubr.bf16.gmra.mxu0 %v1554
    %v1668 = vpop.f32.mrf.mxu0
    %v1669 = vadd.f32 %v1576, %v1668
    %v1670 = vpop.f32.mrf.mxu0
    %v1671 = vpop.f32.mrf.mxu0
    %v1672 = vadd.f32 %v1576, %v1671
    %v1673 = vpop.f32.mrf.mxu0
    %1674 = vdwg.mxu0
    %v1675 = vadd.f32 %v1359, %v1661
    %v1676 = vadd.f32 %v1360, %v1664
    %v1677 = vadd.f32 %v1361, %v1669
    %v1678 = vadd.f32 %v1362, %v1672
    %s1679 = scalar_lea.vmem [#allocation12], 1
    %v1680 = vld [vmem:[%s1679] sm:$0x1]
    %s1681 = scalar_lea.vmem [#allocation14], 1
    %v1682 = vld [vmem:[%s1681] sm:$0x1]
    %v1683 = vsel %vm311, %v1675, 0.0
    %1684 = vadd.xlane.f32.xlu0 %v1683
    %v1685 = vpop.xlane.xlu0 %1684
    %v1686 = vsel %vm311, %v1676, 0.0
    %1687 = vadd.xlane.f32.xlu0 %v1686
    %v1688 = vpop.xlane.xlu0 %1687
    %v1689 = vsel %vm311, %v1677, 0.0
    %1690 = vadd.xlane.f32.xlu0 %v1689
    %v1691 = vpop.xlane.xlu0 %1690
    %v1692 = vsel %vm311, %v1678, 0.0
    %1693 = vadd.xlane.f32.xlu0 %v1692
    %v1694 = vpop.xlane.xlu0 %1693
    %v1695 = vmul.f32 %v1685, %v723
    %v1696 = vmul.f32 %v1688, %v723
    %v1697 = vmul.f32 %v1691, %v723
    %v1698 = vmul.f32 %v1694, %v723
    %v1699 = vsub.f32 %v1675, %v1695
    %v1700 = vsub.f32 %v1676, %v1696
    %v1701 = vsub.f32 %v1677, %v1697
    %v1702 = vsub.f32 %v1678, %v1698
    %v1703 = vmul.f32 %v1699, %v1699
    %v1704 = vmul.f32 %v1700, %v1700
    %v1705 = vmul.f32 %v1701, %v1701
    %v1706 = vmul.f32 %v1702, %v1702
    %v1707 = vsel %vm311, %v1703, 0.0
    %1708 = vadd.xlane.f32.xlu0 %v1707
    %v1709 = vpop.xlane.xlu0 %1708
    %v1710 = vsel %vm311, %v1704, 0.0
    %1711 = vadd.xlane.f32.xlu0 %v1710
    %v1712 = vpop.xlane.xlu0 %1711
    %v1713 = vsel %vm311, %v1705, 0.0
    %1714 = vadd.xlane.f32.xlu0 %v1713
    %v1715 = vpop.xlane.xlu0 %1714
    %v1716 = vsel %vm311, %v1706, 0.0
    %1717 = vadd.xlane.f32.xlu0 %v1716
    %v1718 = vpop.xlane.xlu0 %1717
    %v1719 = vmul.f32 %v1709, %v723
    %v1720 = vmul.f32 %v1712, %v723
    %v1721 = vmul.f32 %v1715, %v723
    %v1722 = vmul.f32 %v1718, %v723
    %v1723 = vadd.f32 %v1719, 1e-05
    %v1724 = vadd.f32 %v1720, 1e-05
    %v1725 = vadd.f32 %v1721, 1e-05
    %v1726 = vadd.f32 %v1722, 1e-05
    %v1727 = vrsqrt.pop %v1723
    %v1728 = vrsqrt.pop %v1724
    %v1729 = vrsqrt.pop %v1725
    %v1730 = vrsqrt.pop %v1726
    %v1731 = vmul.f32 %v1699, %v1727
    %v1732 = vmul.f32 %v1700, %v1728
    %v1733 = vmul.f32 %v1701, %v1729
    %v1734 = vmul.f32 %v1702, %v1730
    %v1736 = vlaneseq
    %v1737 = vshrl.u32 %v1736, 7
    %v1738 = vsub.s32 0, %v1737
    %v1739 = vrot.slane %v1680, %v1738
    %v1741 = vmul.f32 %v1731, %v1739
    %v1742 = vmul.f32 %v1732, %v1739
    %v1743 = vmul.f32 %v1733, %v1739
    %v1744 = vmul.f32 %v1734, %v1739
    %v1746 = vlaneseq
    %v1747 = vshrl.u32 %v1746, 7
    %v1748 = vsub.s32 0, %v1747
    %v1749 = vrot.slane %v1682, %v1748
    %v1751 = vadd.f32 %v1741, %v1749
    %v1752 = vadd.f32 %v1742, %v1749
    %v1753 = vadd.f32 %v1743, %v1749
    %v1754 = vadd.f32 %v1744, %v1749
    %v1755 = vpack.c.bf16 %v1752, %v1751
    %v1756 = vpack.c.bf16 %v1754, %v1753
    %s1757 = scalar_lea.vmem %s12, 16
    %v1758 = vld [vmem:[%s1757] sm:$0xf]
    %v1759 = vld [vmem:[%s1757 + $0x4] sm:$0xf]
    %v1760 = vld [vmem:[%s1757 + $0x8] sm:$0xf]
    %v1761 = vld [vmem:[%s1757 + $0xc] sm:$0xf]
    %s1762 = scalar_lea.vmem [#allocation15], 1
    %v1763 = vld [vmem:[%s1762] sm:$0x1]
    %v1765 = vlaneseq
    %v1766 = vshrl.u32 %v1765, 7
    %v1767 = vsub.s32 0, %v1766
    %v1768 = vrot.slane %v1763, %v1767
    %v1774 = vunpack.c.l.b16 %v1758
    %v1775 = vunpack.c.l.b16 %v1759
    %v1776 = vunpack.c.l.b16 %v1760
    %v1777 = vunpack.c.l.b16 %v1761
    %v1778 = vpack.c.b16 %v1775, %v1774
    %v1779 = vpack.c.b16 %v1777, %v1776
    %v1783 = vsel %vm311, %v1755, 0
    %v1786 = vsel %vm311, %v1756, 0
    %1788 = vmatprep.subr.bf16.mxu0 0
    %1789 = vmatpush1.bf16.msra.mxu0 0
    %1790 = vmatprep.subr.bf16.mxu0 0
    %1791 = vmatpush1.bf16.msra.mxu0 0
    %1792 = vmatprep.subr.bf16.mxu0 0
    %1793 = vmatpush1.bf16.msra.mxu0 0
    %1794 = vmatprep.subr.bf16.mxu0 0
    %1795 = vmatpush1.bf16.msra.mxu0 0
    %1796 = vmatprep.subr.bf16.mxu0 0
    %1797 = vmatpush1.bf16.msra.mxu0 0
    %1798 = vmatprep.subr.bf16.mxu0 0
    %1799 = vmatpush1.bf16.msra.mxu0 0
    %1800 = vmatprep.subr.bf16.mxu0 0
    %1801 = vmatpush1.bf16.msra.mxu0 %v1779
    %1802 = vmatprep.subr.bf16.mxu0 0
    %1803 = vmatpush1.bf16.msra.mxu0 %v1778
    %1804 = vmatprep.subr.bf16.mxu0 0
    %1805 = vmatpush2.bf16.msra.mxu0 0
    %1806 = vmatprep.subr.bf16.mxu0 0
    %1807 = vmatpush2.bf16.msra.mxu0 0
    %1808 = vmatprep.subr.bf16.mxu0 0
    %1809 = vmatpush2.bf16.msra.mxu0 0
    %1810 = vmatprep.subr.bf16.mxu0 0
    %1811 = vmatpush2.bf16.msra.mxu0 0
    %1812 = vmatprep.subr.bf16.mxu0 0
    %1813 = vmatpush2.bf16.msra.mxu0 0
    %1814 = vmatprep.subr.bf16.mxu0 0
    %1815 = vmatpush2.bf16.msra.mxu0 0
    %1816 = vmatprep.subr.bf16.mxu0 0
    %1817 = vmatpush2.bf16.msra.mxu0 0
    %1818 = vmatprep.subr.bf16.mxu0 0
    %1819 = vmatpush2.bf16.msra.mxu0 0
    %1820 = vmatprep.mubr.bf16.mxu0 0
    %1821 = vmatmul.mubr.bf16.gmra.mxu0 %v1783
    %v1822 = vpop.f32.mrf.mxu0
    %v1823 = vadd.f32 %v1768, %v1822
    %v1824 = vpop.f32.mrf.mxu0
    %v1825 = vpop.f32.mrf.mxu0
    %v1826 = vadd.f32 %v1768, %v1825
    %v1827 = vpop.f32.mrf.mxu0
    %1828 = vmatprep.mubr.bf16.mxu0 0
    %1829 = vmatmul.mubr.bf16.gmra.mxu0 %v1786
    %v1830 = vpop.f32.mrf.mxu0
    %v1831 = vadd.f32 %v1768, %v1830
    %v1832 = vpop.f32.mrf.mxu0
    %v1833 = vpop.f32.mrf.mxu0
    %v1834 = vadd.f32 %v1768, %v1833
    %v1835 = vpop.f32.mrf.mxu0
    %1836 = vdwg.mxu0
    %v1837 = vpack.c.bf16 %v1826, %v1823
    %v1838 = vpack.c.bf16 %v1834, %v1831
    %1841 = vrot.lane.b32.xlu0 %v1837, 96
    %v1842 = vpop.permute.xlu0 %1841
    %1843 = vrot.lane.b32.xlu0 %v1838, 96
    %v1844 = vpop.permute.xlu0 %1843
    %v1846 = vsel %vm872, %v1837, 0
    %v1849 = vsel %vm872, %v1838, 0
    %v1852 = vsel %vm872, %v1842, 0
    %v1855 = vsel %vm872, %v1844, 0
    %1857 = vmatprep.subr.bf16.mxu0 0
    %1858 = vmatpush1.bf16.xpose.msra.mxu0 0
    %1859 = vmatprep.subr.bf16.mxu0 0
    %1860 = vmatpush1.bf16.xpose.msra.mxu0 0
    %1861 = vmatprep.subr.bf16.mxu0 0
    %1862 = vmatpush1.bf16.xpose.msra.mxu0 0
    %1863 = vmatprep.subr.bf16.mxu0 0
    %1864 = vmatpush1.bf16.xpose.msra.mxu0 0
    %1865 = vmatprep.subr.bf16.mxu0 0
    %1866 = vmatpush1.bf16.xpose.msra.mxu0 0
    %1867 = vmatprep.subr.bf16.mxu0 0
    %1868 = vmatpush1.bf16.xpose.msra.mxu0 0
    %1869 = vmatprep.subr.bf16.mxu0 0
    %1870 = vmatpush1.bf16.xpose.msra.mxu0 %v1855
    %1871 = vmatprep.subr.bf16.mxu0 0
    %1872 = vmatpush1.bf16.xpose.msra.mxu0 %v1852
    %1873 = vmatprep.subr.bf16.mxu0 0
    %1874 = vmatpush2.bf16.xpose.msra.mxu0 0
    %1875 = vmatprep.subr.bf16.mxu0 0
    %1876 = vmatpush2.bf16.xpose.msra.mxu0 0
    %1877 = vmatprep.subr.bf16.mxu0 0
    %1878 = vmatpush2.bf16.xpose.msra.mxu0 0
    %1879 = vmatprep.subr.bf16.mxu0 0
    %1880 = vmatpush2.bf16.xpose.msra.mxu0 0
    %1881 = vmatprep.subr.bf16.mxu0 0
    %1882 = vmatpush2.bf16.xpose.msra.mxu0 0
    %1883 = vmatprep.subr.bf16.mxu0 0
    %1884 = vmatpush2.bf16.xpose.msra.mxu0 0
    %1885 = vmatprep.subr.bf16.mxu0 0
    %1886 = vmatpush2.bf16.xpose.msra.mxu0 0
    %1887 = vmatprep.subr.bf16.mxu0 0
    %1888 = vmatpush2.bf16.xpose.msra.mxu0 0
    %1889 = vmatprep.mubr.bf16.mxu0 0
    %1890 = vmatmul.mubr.bf16.gmra.mxu0 %v1846
    %v1891 = vpop.f32.mrf.mxu0
    %v1892 = vadd.f32 %v705, %v1891
    %v1893 = vpop.f32.mrf.mxu0
    %v1894 = vpop.f32.mrf.mxu0
    %v1895 = vadd.f32 %v706, %v1894
    %v1896 = vpop.f32.mrf.mxu0
    %1897 = vmatprep.mubr.bf16.mxu0 0
    %1898 = vmatmul.mubr.bf16.gmra.mxu0 %v1849
    %v1899 = vpop.f32.mrf.mxu0
    %v1900 = vadd.f32 %v707, %v1899
    %v1901 = vpop.f32.mrf.mxu0
    %v1902 = vpop.f32.mrf.mxu0
    %v1903 = vadd.f32 %v708, %v1902
    %v1904 = vpop.f32.mrf.mxu0
    %1905 = vdwg.mxu0
    %v1906 = vsel %vm311, %v1892, -inf
    %1907 = vmax.xlane.f32.xlu0 %v1906
    %v1908 = vpop.xlane.xlu0 %1907
    %v1909 = vsel %vm311, %v1895, -inf
    %1910 = vmax.xlane.f32.xlu0 %v1909
    %v1911 = vpop.xlane.xlu0 %1910
    %v1912 = vsel %vm311, %v1900, -inf
    %1913 = vmax.xlane.f32.xlu0 %v1912
    %v1914 = vpop.xlane.xlu0 %1913
    %v1915 = vsel %vm311, %v1903, -inf
    %1916 = vmax.xlane.f32.xlu0 %v1915
    %v1917 = vpop.xlane.xlu0 %1916
    %v1918 = vsub.f32 %v1892, %v1908
    %v1919 = vsub.f32 %v1895, %v1911
    %v1920 = vsub.f32 %v1900, %v1914
    %v1921 = vsub.f32 %v1903, %v1917
    %v1922 = vmul.f32 %v1918, 1.442695
    %v1923 = vpow.pop %v1922
    %v1924 = vmul.f32 %v1919, 1.442695
    %v1925 = vpow.pop %v1924
    %v1926 = vmul.f32 %v1920, 1.442695
    %v1927 = vpow.pop %v1926
    %v1928 = vmul.f32 %v1921, 1.442695
    %v1929 = vpow.pop %v1928
    %v1930 = vsel %vm311, %v1923, 0.0
    %1931 = vadd.xlane.f32.xlu0 %v1930
    %v1932 = vpop.xlane.xlu0 %1931
    %v1933 = vsel %vm311, %v1925, 0.0
    %1934 = vadd.xlane.f32.xlu0 %v1933
    %v1935 = vpop.xlane.xlu0 %1934
    %v1936 = vsel %vm311, %v1927, 0.0
    %1937 = vadd.xlane.f32.xlu0 %v1936
    %v1938 = vpop.xlane.xlu0 %1937
    %v1939 = vsel %vm311, %v1929, 0.0
    %1940 = vadd.xlane.f32.xlu0 %v1939
    %v1941 = vpop.xlane.xlu0 %1940
    %v1942 = vrcp.pop %v1932
    %v1943 = vrcp.pop %v1935
    %v1944 = vrcp.pop %v1938
    %v1945 = vrcp.pop %v1941
    %v1946 = vmul.f32 %v1923, %v1942
    %v1947 = vmul.f32 %v1925, %v1943
    %v1948 = vmul.f32 %v1927, %v1944
    %v1949 = vmul.f32 %v1929, %v1945
    %v1950 = vpack.c.bf16 %v1947, %v1946
    %v1951 = vpack.c.bf16 %v1949, %v1948
    %1952 = vrot.lane.b32.xlu0 %v1837, 64
    %v1953 = vpop.permute.xlu0 %1952
    %1954 = vrot.lane.b32.xlu0 %v1838, 64
    %v1955 = vpop.permute.xlu0 %1954
    %v1959 = vsel %vm311, %v1950, 0
    %v1962 = vsel %vm311, %v1951, 0
    %1964 = vmatprep.subr.bf16.mxu0 0
    %1965 = vmatpush1.bf16.msra.mxu0 0
    %1966 = vmatprep.subr.bf16.mxu0 0
    %1967 = vmatpush1.bf16.msra.mxu0 0
    %1968 = vmatprep.subr.bf16.mxu0 0
    %1969 = vmatpush1.bf16.msra.mxu0 0
    %1970 = vmatprep.subr.bf16.mxu0 0
    %1971 = vmatpush1.bf16.msra.mxu0 0
    %1972 = vmatprep.subr.bf16.mxu0 0
    %1973 = vmatpush1.bf16.msra.mxu0 0
    %1974 = vmatprep.subr.bf16.mxu0 0
    %1975 = vmatpush1.bf16.msra.mxu0 0
    %1976 = vmatprep.subr.bf16.mxu0 0
    %1977 = vmatpush1.bf16.msra.mxu0 %v1955
    %1978 = vmatprep.subr.bf16.mxu0 0
    %1979 = vmatpush1.bf16.msra.mxu0 %v1953
    %1980 = vmatprep.subr.bf16.mxu0 0
    %1981 = vmatpush2.bf16.msra.mxu0 0
    %1982 = vmatprep.subr.bf16.mxu0 0
    %1983 = vmatpush2.bf16.msra.mxu0 0
    %1984 = vmatprep.subr.bf16.mxu0 0
    %1985 = vmatpush2.bf16.msra.mxu0 0
    %1986 = vmatprep.subr.bf16.mxu0 0
    %1987 = vmatpush2.bf16.msra.mxu0 0
    %1988 = vmatprep.subr.bf16.mxu0 0
    %1989 = vmatpush2.bf16.msra.mxu0 0
    %1990 = vmatprep.subr.bf16.mxu0 0
    %1991 = vmatpush2.bf16.msra.mxu0 0
    %1992 = vmatprep.subr.bf16.mxu0 0
    %1993 = vmatpush2.bf16.msra.mxu0 0
    %1994 = vmatprep.subr.bf16.mxu0 0
    %1995 = vmatpush2.bf16.msra.mxu0 0
    %1996 = vmatprep.mubr.bf16.mxu0 0
    %1997 = vmatmul.mubr.bf16.gmra.mxu0 %v1959
    %v1998 = vpop.f32.mrf.mxu0
    %v1999 = vadd.f32 0.0, %v1998
    %v2000 = vpop.f32.mrf.mxu0
    %v2001 = vpop.f32.mrf.mxu0
    %v2002 = vadd.f32 0.0, %v2001
    %v2003 = vpop.f32.mrf.mxu0
    %2004 = vmatprep.mubr.bf16.mxu0 0
    %2005 = vmatmul.mubr.bf16.gmra.mxu0 %v1962
    %v2006 = vpop.f32.mrf.mxu0
    %v2007 = vadd.f32 0.0, %v2006
    %v2008 = vpop.f32.mrf.mxu0
    %v2009 = vpop.f32.mrf.mxu0
    %v2010 = vadd.f32 0.0, %v2009
    %v2011 = vpop.f32.mrf.mxu0
    %2012 = vdwg.mxu0
    %v2013 = vpack.c.bf16 %v2002, %v1999
    %v2014 = vpack.c.bf16 %v2010, %v2007
    %s2015 = scalar_lea.vmem %s14, 16
    %v2016 = vld [vmem:[%s2015] sm:$0xf]
    %v2017 = vld [vmem:[%s2015 + $0x4] sm:$0xf]
    %2018 = vrot.lane.b32.xlu0 %v1837, 112
    %v2019 = vpop.permute.xlu0 %2018
    %2020 = vrot.lane.b32.xlu0 %v1838, 112
    %v2021 = vpop.permute.xlu0 %2020
    %2022 = vrot.lane.b32.xlu0 %v1837, 80
    %v2023 = vpop.permute.xlu0 %2022
    %2024 = vrot.lane.b32.xlu0 %v1838, 80
    %v2025 = vpop.permute.xlu0 %2024
    %v2027 = vsel %vm872, %v2019, 0
    %v2030 = vsel %vm872, %v2021, 0
    %v2033 = vsel %vm872, %v2023, 0
    %v2036 = vsel %vm872, %v2025, 0
    %2038 = vmatprep.subr.bf16.mxu0 0
    %2039 = vmatpush1.bf16.xpose.msra.mxu0 0
    %2040 = vmatprep.subr.bf16.mxu0 0
    %2041 = vmatpush1.bf16.xpose.msra.mxu0 0
    %2042 = vmatprep.subr.bf16.mxu0 0
    %2043 = vmatpush1.bf16.xpose.msra.mxu0 0
    %2044 = vmatprep.subr.bf16.mxu0 0
    %2045 = vmatpush1.bf16.xpose.msra.mxu0 0
    %2046 = vmatprep.subr.bf16.mxu0 0
    %2047 = vmatpush1.bf16.xpose.msra.mxu0 0
    %2048 = vmatprep.subr.bf16.mxu0 0
    %2049 = vmatpush1.bf16.xpose.msra.mxu0 0
    %2050 = vmatprep.subr.bf16.mxu0 0
    %2051 = vmatpush1.bf16.xpose.msra.mxu0 %v2036
    %2052 = vmatprep.subr.bf16.mxu0 0
    %2053 = vmatpush1.bf16.xpose.msra.mxu0 %v2033
    %2054 = vmatprep.subr.bf16.mxu0 0
    %2055 = vmatpush2.bf16.xpose.msra.mxu0 0
    %2056 = vmatprep.subr.bf16.mxu0 0
    %2057 = vmatpush2.bf16.xpose.msra.mxu0 0
    %2058 = vmatprep.subr.bf16.mxu0 0
    %2059 = vmatpush2.bf16.xpose.msra.mxu0 0
    %2060 = vmatprep.subr.bf16.mxu0 0
    %2061 = vmatpush2.bf16.xpose.msra.mxu0 0
    %2062 = vmatprep.subr.bf16.mxu0 0
    %2063 = vmatpush2.bf16.xpose.msra.mxu0 0
    %2064 = vmatprep.subr.bf16.mxu0 0
    %2065 = vmatpush2.bf16.xpose.msra.mxu0 0
    %2066 = vmatprep.subr.bf16.mxu0 0
    %2067 = vmatpush2.bf16.xpose.msra.mxu0 0
    %2068 = vmatprep.subr.bf16.mxu0 0
    %2069 = vmatpush2.bf16.xpose.msra.mxu0 0
    %2070 = vmatprep.mubr.bf16.mxu0 0
    %2071 = vmatmul.mubr.bf16.gmra.mxu0 %v2027
    %v2072 = vpop.f32.mrf.mxu0
    %v2073 = vadd.f32 %v705, %v2072
    %v2074 = vpop.f32.mrf.mxu0
    %v2075 = vpop.f32.mrf.mxu0
    %v2076 = vadd.f32 %v706, %v2075
    %v2077 = vpop.f32.mrf.mxu0
    %2078 = vmatprep.mubr.bf16.mxu0 0
    %2079 = vmatmul.mubr.bf16.gmra.mxu0 %v2030
    %v2080 = vpop.f32.mrf.mxu0
    %v2081 = vadd.f32 %v707, %v2080
    %v2082 = vpop.f32.mrf.mxu0
    %v2083 = vpop.f32.mrf.mxu0
    %v2084 = vadd.f32 %v708, %v2083
    %v2085 = vpop.f32.mrf.mxu0
    %2086 = vdwg.mxu0
    %v2087 = vsel %vm311, %v2073, -inf
    %2088 = vmax.xlane.f32.xlu0 %v2087
    %v2089 = vpop.xlane.xlu0 %2088
    %v2090 = vsel %vm311, %v2076, -inf
    %2091 = vmax.xlane.f32.xlu0 %v2090
    %v2092 = vpop.xlane.xlu0 %2091
    %v2093 = vsel %vm311, %v2081, -inf
    %2094 = vmax.xlane.f32.xlu0 %v2093
    %v2095 = vpop.xlane.xlu0 %2094
    %v2096 = vsel %vm311, %v2084, -inf
    %2097 = vmax.xlane.f32.xlu0 %v2096
    %v2098 = vpop.xlane.xlu0 %2097
    %v2099 = vsub.f32 %v2073, %v2089
    %v2100 = vsub.f32 %v2076, %v2092
    %v2101 = vsub.f32 %v2081, %v2095
    %v2102 = vsub.f32 %v2084, %v2098
    %v2103 = vmul.f32 %v2099, 1.442695
    %v2104 = vpow.pop %v2103
    %v2105 = vmul.f32 %v2100, 1.442695
    %v2106 = vpow.pop %v2105
    %v2107 = vmul.f32 %v2101, 1.442695
    %v2108 = vpow.pop %v2107
    %v2109 = vmul.f32 %v2102, 1.442695
    %v2110 = vpow.pop %v2109
    %v2111 = vsel %vm311, %v2104, 0.0
    %2112 = vadd.xlane.f32.xlu0 %v2111
    %v2113 = vpop.xlane.xlu0 %2112
    %v2114 = vsel %vm311, %v2106, 0.0
    %2115 = vadd.xlane.f32.xlu0 %v2114
    %v2116 = vpop.xlane.xlu0 %2115
    %v2117 = vsel %vm311, %v2108, 0.0
    %2118 = vadd.xlane.f32.xlu0 %v2117
    %v2119 = vpop.xlane.xlu0 %2118
    %v2120 = vsel %vm311, %v2110, 0.0
    %2121 = vadd.xlane.f32.xlu0 %v2120
    %v2122 = vpop.xlane.xlu0 %2121
    %v2123 = vrcp.pop %v2113
    %v2124 = vrcp.pop %v2116
    %v2125 = vrcp.pop %v2119
    %v2126 = vrcp.pop %v2122
    %v2127 = vmul.f32 %v2104, %v2123
    %v2128 = vmul.f32 %v2106, %v2124
    %v2129 = vmul.f32 %v2108, %v2125
    %v2130 = vmul.f32 %v2110, %v2126
    %v2131 = vpack.c.bf16 %v2128, %v2127
    %v2132 = vpack.c.bf16 %v2130, %v2129
    %2133 = vrot.lane.b32.xlu0 %v1837, 48
    %v2134 = vpop.permute.xlu0 %2133
    %2135 = vrot.lane.b32.xlu0 %v1838, 48
    %v2136 = vpop.permute.xlu0 %2135
    %v2140 = vsel %vm311, %v2131, 0
    %v2143 = vsel %vm311, %v2132, 0
    %2145 = vmatprep.subr.bf16.mxu0 0
    %2146 = vmatpush1.bf16.msra.mxu0 0
    %2147 = vmatprep.subr.bf16.mxu0 0
    %2148 = vmatpush1.bf16.msra.mxu0 0
    %2149 = vmatprep.subr.bf16.mxu0 0
    %2150 = vmatpush1.bf16.msra.mxu0 0
    %2151 = vmatprep.subr.bf16.mxu0 0
    %2152 = vmatpush1.bf16.msra.mxu0 0
    %2153 = vmatprep.subr.bf16.mxu0 0
    %2154 = vmatpush1.bf16.msra.mxu0 0
    %2155 = vmatprep.subr.bf16.mxu0 0
    %2156 = vmatpush1.bf16.msra.mxu0 0
    %2157 = vmatprep.subr.bf16.mxu0 0
    %2158 = vmatpush1.bf16.msra.mxu0 %v2136
    %2159 = vmatprep.subr.bf16.mxu0 0
    %2160 = vmatpush1.bf16.msra.mxu0 %v2134
    %2161 = vmatprep.subr.bf16.mxu0 0
    %2162 = vmatpush2.bf16.msra.mxu0 0
    %2163 = vmatprep.subr.bf16.mxu0 0
    %2164 = vmatpush2.bf16.msra.mxu0 0
    %2165 = vmatprep.subr.bf16.mxu0 0
    %2166 = vmatpush2.bf16.msra.mxu0 0
    %2167 = vmatprep.subr.bf16.mxu0 0
    %2168 = vmatpush2.bf16.msra.mxu0 0
    %2169 = vmatprep.subr.bf16.mxu0 0
    %2170 = vmatpush2.bf16.msra.mxu0 0
    %2171 = vmatprep.subr.bf16.mxu0 0
    %2172 = vmatpush2.bf16.msra.mxu0 0
    %2173 = vmatprep.subr.bf16.mxu0 0
    %2174 = vmatpush2.bf16.msra.mxu0 0
    %2175 = vmatprep.subr.bf16.mxu0 0
    %2176 = vmatpush2.bf16.msra.mxu0 0
    %2177 = vmatprep.mubr.bf16.mxu0 0
    %2178 = vmatmul.mubr.bf16.gmra.mxu0 %v2140
    %v2179 = vpop.f32.mrf.mxu0
    %v2180 = vadd.f32 0.0, %v2179
    %v2181 = vpop.f32.mrf.mxu0
    %v2182 = vpop.f32.mrf.mxu0
    %v2183 = vadd.f32 0.0, %v2182
    %v2184 = vpop.f32.mrf.mxu0
    %2185 = vmatprep.mubr.bf16.mxu0 0
    %2186 = vmatmul.mubr.bf16.gmra.mxu0 %v2143
    %v2187 = vpop.f32.mrf.mxu0
    %v2188 = vadd.f32 0.0, %v2187
    %v2189 = vpop.f32.mrf.mxu0
    %v2190 = vpop.f32.mrf.mxu0
    %v2191 = vadd.f32 0.0, %v2190
    %v2192 = vpop.f32.mrf.mxu0
    %2193 = vdwg.mxu0
    %v2194 = vpack.c.bf16 %v2183, %v2180
    %v2195 = vpack.c.bf16 %v2191, %v2188
    %s2196 = scalar_lea.vmem %s14, 24
    %v2197 = vld [vmem:[%s2196] sm:$0xf]
    %v2198 = vld [vmem:[%s2196 + $0x4] sm:$0xf]
    %v2201 = vunpack.c.l.b16 %v2197
    %v2202 = vunpack.c.l.b16 %v2198
    %v2203 = vpack.c.b16 %v2202, %v2201
    %v2206 = vsel %vm872, %v2194, 0
    %v2209 = vsel %vm872, %v2195, 0
    %2211 = vmatprep.subr.bf16.mxu0 0
    %2212 = vmatpush1.bf16.msra.mxu0 0
    %2213 = vmatprep.subr.bf16.mxu0 0
    %2214 = vmatpush1.bf16.msra.mxu0 0
    %2215 = vmatprep.subr.bf16.mxu0 0
    %2216 = vmatpush1.bf16.msra.mxu0 0
    %2217 = vmatprep.subr.bf16.mxu0 0
    %2218 = vmatpush1.bf16.msra.mxu0 0
    %2219 = vmatprep.subr.bf16.mxu0 0
    %2220 = vmatpush1.bf16.msra.mxu0 0
    %2221 = vmatprep.subr.bf16.mxu0 0
    %2222 = vmatpush1.bf16.msra.mxu0 0
    %2223 = vmatprep.subr.bf16.mxu0 0
    %2224 = vmatpush1.bf16.msra.mxu0 0
    %2225 = vmatprep.subr.bf16.mxu0 0
    %2226 = vmatpush1.bf16.msra.mxu0 %v2203
    %2227 = vmatprep.subr.bf16.mxu0 0
    %2228 = vmatpush2.bf16.msra.mxu0 0
    %2229 = vmatprep.subr.bf16.mxu0 0
    %2230 = vmatpush2.bf16.msra.mxu0 0
    %2231 = vmatprep.subr.bf16.mxu0 0
    %2232 = vmatpush2.bf16.msra.mxu0 0
    %2233 = vmatprep.subr.bf16.mxu0 0
    %2234 = vmatpush2.bf16.msra.mxu0 0
    %2235 = vmatprep.subr.bf16.mxu0 0
    %2236 = vmatpush2.bf16.msra.mxu0 0
    %2237 = vmatprep.subr.bf16.mxu0 0
    %2238 = vmatpush2.bf16.msra.mxu0 0
    %2239 = vmatprep.subr.bf16.mxu0 0
    %2240 = vmatpush2.bf16.msra.mxu0 0
    %2241 = vmatprep.subr.bf16.mxu0 0
    %2242 = vmatpush2.bf16.msra.mxu0 0
    %2243 = vmatprep.mubr.bf16.mxu0 0
    %2244 = vmatmul.mubr.bf16.gmra.mxu0 %v2206
    %v2245 = vpop.f32.mrf.mxu0
    %v2246 = vadd.f32 0.0, %v2245
    %v2247 = vpop.f32.mrf.mxu0
    %v2248 = vpop.f32.mrf.mxu0
    %v2249 = vadd.f32 0.0, %v2248
    %v2250 = vpop.f32.mrf.mxu0
    %2251 = vmatprep.mubr.bf16.mxu0 0
    %2252 = vmatmul.mubr.bf16.gmra.mxu0 %v2209
    %v2253 = vpop.f32.mrf.mxu0
    %v2254 = vadd.f32 0.0, %v2253
    %v2255 = vpop.f32.mrf.mxu0
    %v2256 = vpop.f32.mrf.mxu0
    %v2257 = vadd.f32 0.0, %v2256
    %v2258 = vpop.f32.mrf.mxu0
    %2259 = vdwg.mxu0
    %v2262 = vunpack.c.l.b16 %v2016
    %v2263 = vunpack.c.l.b16 %v2017
    %v2264 = vpack.c.b16 %v2263, %v2262
    %v2267 = vsel %vm872, %v2013, 0
    %v2270 = vsel %vm872, %v2014, 0
    %2272 = vmatprep.subr.bf16.mxu0 0
    %2273 = vmatpush1.bf16.msra.mxu0 0
    %2274 = vmatprep.subr.bf16.mxu0 0
    %2275 = vmatpush1.bf16.msra.mxu0 0
    %2276 = vmatprep.subr.bf16.mxu0 0
    %2277 = vmatpush1.bf16.msra.mxu0 0
    %2278 = vmatprep.subr.bf16.mxu0 0
    %2279 = vmatpush1.bf16.msra.mxu0 0
    %2280 = vmatprep.subr.bf16.mxu0 0
    %2281 = vmatpush1.bf16.msra.mxu0 0
    %2282 = vmatprep.subr.bf16.mxu0 0
    %2283 = vmatpush1.bf16.msra.mxu0 0
    %2284 = vmatprep.subr.bf16.mxu0 0
    %2285 = vmatpush1.bf16.msra.mxu0 0
    %2286 = vmatprep.subr.bf16.mxu0 0
    %2287 = vmatpush1.bf16.msra.mxu0 %v2264
    %2288 = vmatprep.subr.bf16.mxu0 0
    %2289 = vmatpush2.bf16.msra.mxu0 0
    %2290 = vmatprep.subr.bf16.mxu0 0
    %2291 = vmatpush2.bf16.msra.mxu0 0
    %2292 = vmatprep.subr.bf16.mxu0 0
    %2293 = vmatpush2.bf16.msra.mxu0 0
    %2294 = vmatprep.subr.bf16.mxu0 0
    %2295 = vmatpush2.bf16.msra.mxu0 0
    %2296 = vmatprep.subr.bf16.mxu0 0
    %2297 = vmatpush2.bf16.msra.mxu0 0
    %2298 = vmatprep.subr.bf16.mxu0 0
    %2299 = vmatpush2.bf16.msra.mxu0 0
    %2300 = vmatprep.subr.bf16.mxu0 0
    %2301 = vmatpush2.bf16.msra.mxu0 0
    %2302 = vmatprep.subr.bf16.mxu0 0
    %2303 = vmatpush2.bf16.msra.mxu0 0
    %2304 = vmatprep.mubr.bf16.mxu0 0
    %2305 = vmatmul.mubr.bf16.gmra.mxu0 %v2267
    %v2306 = vpop.f32.mrf.mxu0
    %v2307 = vadd.f32 %v2246, %v2306
    %v2308 = vpop.f32.mrf.mxu0
    %v2309 = vpop.f32.mrf.mxu0
    %v2310 = vadd.f32 %v2249, %v2309
    %v2311 = vpop.f32.mrf.mxu0
    %2312 = vmatprep.mubr.bf16.mxu0 0
    %2313 = vmatmul.mubr.bf16.gmra.mxu0 %v2270
    %v2314 = vpop.f32.mrf.mxu0
    %v2315 = vadd.f32 %v2254, %v2314
    %v2316 = vpop.f32.mrf.mxu0
    %v2317 = vpop.f32.mrf.mxu0
    %v2318 = vadd.f32 %v2257, %v2317
    %v2319 = vpop.f32.mrf.mxu0
    %2320 = vdwg.mxu0
    %v2321 = vadd.f32 %v1675, %v2307
    %v2322 = vadd.f32 %v1676, %v2310
    %v2323 = vadd.f32 %v1677, %v2315
    %v2324 = vadd.f32 %v1678, %v2318
    %s2325 = scalar_lea.vmem [#allocation17], 1
    %v2326 = vld [vmem:[%s2325] sm:$0x1]
    %v2328 = vlaneseq
    %v2329 = vshrl.u32 %v2328, 7
    %v2330 = vsub.s32 0, %v2329
    %v2331 = vrot.slane %v2326, %v2330
    %v2333 = vadd.f32 %v2321, %v2331
    %v2334 = vadd.f32 %v2322, %v2331
    %v2335 = vadd.f32 %v2323, %v2331
    %v2336 = vadd.f32 %v2324, %v2331
    %s2337 = scalar_lea.vmem [#allocation18], 1
    %v2338 = vld [vmem:[%s2337] sm:$0x1]
    %s2339 = scalar_lea.vmem [#allocation20], 1
    %v2340 = vld [vmem:[%s2339] sm:$0x1]
    %v2341 = vsel %vm311, %v2333, 0.0
    %2342 = vadd.xlane.f32.xlu0 %v2341
    %v2343 = vpop.xlane.xlu0 %2342
    %v2344 = vsel %vm311, %v2334, 0.0
    %2345 = vadd.xlane.f32.xlu0 %v2344
    %v2346 = vpop.xlane.xlu0 %2345
    %v2347 = vsel %vm311, %v2335, 0.0
    %2348 = vadd.xlane.f32.xlu0 %v2347
    %v2349 = vpop.xlane.xlu0 %2348
    %v2350 = vsel %vm311, %v2336, 0.0
    %2351 = vadd.xlane.f32.xlu0 %v2350
    %v2352 = vpop.xlane.xlu0 %2351
    %v2353 = vmul.f32 %v2343, %v723
    %v2354 = vmul.f32 %v2346, %v723
    %v2355 = vmul.f32 %v2349, %v723
    %v2356 = vmul.f32 %v2352, %v723
    %v2357 = vsub.f32 %v2333, %v2353
    %v2358 = vsub.f32 %v2334, %v2354
    %v2359 = vsub.f32 %v2335, %v2355
    %v2360 = vsub.f32 %v2336, %v2356
    %v2361 = vmul.f32 %v2357, %v2357
    %v2362 = vmul.f32 %v2358, %v2358
    %v2363 = vmul.f32 %v2359, %v2359
    %v2364 = vmul.f32 %v2360, %v2360
    %v2365 = vsel %vm311, %v2361, 0.0
    %2366 = vadd.xlane.f32.xlu0 %v2365
    %v2367 = vpop.xlane.xlu0 %2366
    %v2368 = vsel %vm311, %v2362, 0.0
    %2369 = vadd.xlane.f32.xlu0 %v2368
    %v2370 = vpop.xlane.xlu0 %2369
    %v2371 = vsel %vm311, %v2363, 0.0
    %2372 = vadd.xlane.f32.xlu0 %v2371
    %v2373 = vpop.xlane.xlu0 %2372
    %v2374 = vsel %vm311, %v2364, 0.0
    %2375 = vadd.xlane.f32.xlu0 %v2374
    %v2376 = vpop.xlane.xlu0 %2375
    %v2377 = vmul.f32 %v2367, %v723
    %v2378 = vmul.f32 %v2370, %v723
    %v2379 = vmul.f32 %v2373, %v723
    %v2380 = vmul.f32 %v2376, %v723
    %v2381 = vadd.f32 %v2377, 1e-05
    %v2382 = vadd.f32 %v2378, 1e-05
    %v2383 = vadd.f32 %v2379, 1e-05
    %v2384 = vadd.f32 %v2380, 1e-05
    %v2385 = vrsqrt.pop %v2381
    %v2386 = vrsqrt.pop %v2382
    %v2387 = vrsqrt.pop %v2383
    %v2388 = vrsqrt.pop %v2384
    %v2389 = vmul.f32 %v2357, %v2385
    %v2390 = vmul.f32 %v2358, %v2386
    %v2391 = vmul.f32 %v2359, %v2387
    %v2392 = vmul.f32 %v2360, %v2388
    %v2394 = vlaneseq
    %v2395 = vshrl.u32 %v2394, 7
    %v2396 = vsub.s32 0, %v2395
    %v2397 = vrot.slane %v2338, %v2396
    %v2399 = vmul.f32 %v2389, %v2397
    %v2400 = vmul.f32 %v2390, %v2397
    %v2401 = vmul.f32 %v2391, %v2397
    %v2402 = vmul.f32 %v2392, %v2397
    %v2404 = vlaneseq
    %v2405 = vshrl.u32 %v2404, 7
    %v2406 = vsub.s32 0, %v2405
    %v2407 = vrot.slane %v2340, %v2406
    %v2409 = vadd.f32 %v2399, %v2407
    %v2410 = vadd.f32 %v2400, %v2407
    %v2411 = vadd.f32 %v2401, %v2407
    %v2412 = vadd.f32 %v2402, %v2407
    %v2413 = vpack.c.bf16 %v2410, %v2409
    %v2414 = vpack.c.bf16 %v2412, %v2411
    %s2415 = scalar_lea.vmem [#allocation21], 16
    %v2416 = vld [vmem:[%s2415] sm:$0xf]
    %v2417 = vld [vmem:[%s2415 + $0x4] sm:$0xf]
    %v2418 = vld [vmem:[%s2415 + $0x8] sm:$0xf]
    %v2419 = vld [vmem:[%s2415 + $0xc] sm:$0xf]
    %s2420 = scalar_lea.vmem [#allocation23], 1
    %v2421 = vld [vmem:[%s2420] sm:$0x1]
    %v2423 = vlaneseq
    %v2424 = vshrl.u32 %v2423, 7
    %v2425 = vsub.s32 0, %v2424
    %v2426 = vrot.slane %v2421, %v2425
    %v2432 = vunpack.c.l.b16 %v2416
    %v2433 = vunpack.c.l.b16 %v2417
    %v2434 = vunpack.c.l.b16 %v2418
    %v2435 = vunpack.c.l.b16 %v2419
    %v2436 = vpack.c.b16 %v2433, %v2432
    %v2437 = vpack.c.b16 %v2435, %v2434
    %v2441 = vsel %vm311, %v2413, 0
    %v2444 = vsel %vm311, %v2414, 0
    %2446 = vmatprep.subr.bf16.mxu0 0
    %2447 = vmatpush1.bf16.msra.mxu0 0
    %2448 = vmatprep.subr.bf16.mxu0 0
    %2449 = vmatpush1.bf16.msra.mxu0 0
    %2450 = vmatprep.subr.bf16.mxu0 0
    %2451 = vmatpush1.bf16.msra.mxu0 0
    %2452 = vmatprep.subr.bf16.mxu0 0
    %2453 = vmatpush1.bf16.msra.mxu0 0
    %2454 = vmatprep.subr.bf16.mxu0 0
    %2455 = vmatpush1.bf16.msra.mxu0 0
    %2456 = vmatprep.subr.bf16.mxu0 0
    %2457 = vmatpush1.bf16.msra.mxu0 0
    %2458 = vmatprep.subr.bf16.mxu0 0
    %2459 = vmatpush1.bf16.msra.mxu0 %v2437
    %2460 = vmatprep.subr.bf16.mxu0 0
    %2461 = vmatpush1.bf16.msra.mxu0 %v2436
    %2462 = vmatprep.subr.bf16.mxu0 0
    %2463 = vmatpush2.bf16.msra.mxu0 0
    %2464 = vmatprep.subr.bf16.mxu0 0
    %2465 = vmatpush2.bf16.msra.mxu0 0
    %2466 = vmatprep.subr.bf16.mxu0 0
    %2467 = vmatpush2.bf16.msra.mxu0 0
    %2468 = vmatprep.subr.bf16.mxu0 0
    %2469 = vmatpush2.bf16.msra.mxu0 0
    %2470 = vmatprep.subr.bf16.mxu0 0
    %2471 = vmatpush2.bf16.msra.mxu0 0
    %2472 = vmatprep.subr.bf16.mxu0 0
    %2473 = vmatpush2.bf16.msra.mxu0 0
    %2474 = vmatprep.subr.bf16.mxu0 0
    %2475 = vmatpush2.bf16.msra.mxu0 0
    %2476 = vmatprep.subr.bf16.mxu0 0
    %2477 = vmatpush2.bf16.msra.mxu0 0
    %2478 = vmatprep.mubr.bf16.mxu0 0
    %2479 = vmatmul.mubr.bf16.gmra.mxu0 %v2441
    %v2480 = vpop.f32.mrf.mxu0
    %v2481 = vadd.f32 %v2426, %v2480
    %v2482 = vpop.f32.mrf.mxu0
    %v2483 = vpop.f32.mrf.mxu0
    %v2484 = vadd.f32 %v2426, %v2483
    %v2485 = vpop.f32.mrf.mxu0
    %2486 = vmatprep.mubr.bf16.mxu0 0
    %2487 = vmatmul.mubr.bf16.gmra.mxu0 %v2444
    %v2488 = vpop.f32.mrf.mxu0
    %v2489 = vadd.f32 %v2426, %v2488
    %v2490 = vpop.f32.mrf.mxu0
    %v2491 = vpop.f32.mrf.mxu0
    %v2492 = vadd.f32 %v2426, %v2491
    %v2493 = vpop.f32.mrf.mxu0
    %2494 = vdwg.mxu0
    %v2495 = vmul.f32 %v2481, 0.5
    %v2496 = vmul.f32 %v2484, 0.5
    %v2497 = vmul.f32 %v2489, 0.5
    %v2498 = vmul.f32 %v2492, 0.5
    %v2499 = vmul.f32 %v2481, 0.044715
    %v2500 = vmul.f32 %v2484, 0.044715
    %v2501 = vmul.f32 %v2489, 0.044715
    %v2502 = vmul.f32 %v2492, 0.044715
    %v2503 = vmul.f32 %v2499, %v2481
    %v2504 = vmul.f32 %v2500, %v2484
    %v2505 = vmul.f32 %v2501, %v2489
    %v2506 = vmul.f32 %v2502, %v2492
    %v2507 = vmul.f32 %v2503, %v2481
    %v2508 = vmul.f32 %v2504, %v2484
    %v2509 = vmul.f32 %v2505, %v2489
    %v2510 = vmul.f32 %v2506, %v2492
    %v2511 = vadd.f32 %v2481, %v2507
    %v2512 = vadd.f32 %v2484, %v2508
    %v2513 = vadd.f32 %v2489, %v2509
    %v2514 = vadd.f32 %v2492, %v2510
    %v2515 = vmul.f32 %v2511, 0.7978846
    %v2516 = vmul.f32 %v2512, 0.7978846
    %v2517 = vmul.f32 %v2513, 0.7978846
    %v2518 = vmul.f32 %v2514, 0.7978846
    %v2519 = vtanh.pop %v2515
    %v2520 = vtanh.pop %v2516
    %v2521 = vtanh.pop %v2517
    %v2522 = vtanh.pop %v2518
    %v2523 = vadd.f32 %v2519, 1.0
    %v2524 = vadd.f32 %v2520, 1.0
    %v2525 = vadd.f32 %v2521, 1.0
    %v2526 = vadd.f32 %v2522, 1.0
    %v2527 = vmul.f32 %v2495, %v2523
    %v2528 = vmul.f32 %v2496, %v2524
    %v2529 = vmul.f32 %v2497, %v2525
    %v2530 = vmul.f32 %v2498, %v2526
    %v2531 = vpack.c.bf16 %v2528, %v2527
    %v2532 = vpack.c.bf16 %v2530, %v2529
    %s2533 = scalar_lea.vmem %s20, 64
    %v2534 = vld [vmem:[%s2533] sm:$0xf]
    %v2535 = vld [vmem:[%s2533 + $0x4] sm:$0xf]
    %v2536 = vld [vmem:[%s2533 + $0x8] sm:$0xf]
    %v2537 = vld [vmem:[%s2533 + $0xc] sm:$0xf]
    %v2538 = vld [vmem:[%s2533 + $0x10] sm:$0xf]
    %v2539 = vld [vmem:[%s2533 + $0x14] sm:$0xf]
    %v2540 = vld [vmem:[%s2533 + $0x18] sm:$0xf]
    %v2541 = vld [vmem:[%s2533 + $0x1c] sm:$0xf]
    %v2542 = vld [vmem:[%s2533 + $0x20] sm:$0xf]
    %v2543 = vld [vmem:[%s2533 + $0x24] sm:$0xf]
    %v2544 = vld [vmem:[%s2533 + $0x28] sm:$0xf]
    %v2545 = vld [vmem:[%s2533 + $0x2c] sm:$0xf]
    %v2546 = vld [vmem:[%s2533 + $0x30] sm:$0xf]
    %v2547 = vld [vmem:[%s2533 + $0x34] sm:$0xf]
    %v2548 = vld [vmem:[%s2533 + $0x38] sm:$0xf]
    %v2549 = vld [vmem:[%s2533 + $0x3c] sm:$0xf]
    %s2550 = scalar_lea.vmem [#allocation24], 1
    %v2551 = vld [vmem:[%s2550] sm:$0x1]
    %v2553 = vlaneseq
    %v2554 = vshrl.u32 %v2553, 7
    %v2555 = vsub.s32 0, %v2554
    %v2556 = vrot.slane %v2551, %v2555
    %v2574 = vunpack.c.l.b16 %v2534
    %v2575 = vunpack.c.l.b16 %v2535
    %v2576 = vunpack.c.l.b16 %v2536
    %v2577 = vunpack.c.l.b16 %v2537
    %v2578 = vunpack.c.l.b16 %v2538
    %v2579 = vunpack.c.l.b16 %v2539
    %v2580 = vunpack.c.l.b16 %v2540
    %v2581 = vunpack.c.l.b16 %v2541
    %v2582 = vunpack.c.l.b16 %v2542
    %v2583 = vunpack.c.l.b16 %v2543
    %v2584 = vunpack.c.l.b16 %v2544
    %v2585 = vunpack.c.l.b16 %v2545
    %v2586 = vunpack.c.l.b16 %v2546
    %v2587 = vunpack.c.l.b16 %v2547
    %v2588 = vunpack.c.l.b16 %v2548
    %v2589 = vunpack.c.l.b16 %v2549
    %v2590 = vpack.c.b16 %v2575, %v2574
    %v2591 = vpack.c.b16 %v2577, %v2576
    %v2592 = vpack.c.b16 %v2579, %v2578
    %v2593 = vpack.c.b16 %v2581, %v2580
    %v2594 = vpack.c.b16 %v2583, %v2582
    %v2595 = vpack.c.b16 %v2585, %v2584
    %v2596 = vpack.c.b16 %v2587, %v2586
    %v2597 = vpack.c.b16 %v2589, %v2588
    %2606 = vmatprep.subr.bf16.mxu0 0
    %2607 = vmatpush1.bf16.msra.mxu0 %v2597
    %2608 = vmatprep.subr.bf16.mxu0 0
    %2609 = vmatpush1.bf16.msra.mxu0 %v2596
    %2610 = vmatprep.subr.bf16.mxu0 0
    %2611 = vmatpush1.bf16.msra.mxu0 %v2595
    %2612 = vmatprep.subr.bf16.mxu0 0
    %2613 = vmatpush1.bf16.msra.mxu0 %v2594
    %2614 = vmatprep.subr.bf16.mxu0 0
    %2615 = vmatpush1.bf16.msra.mxu0 %v2593
    %2616 = vmatprep.subr.bf16.mxu0 0
    %2617 = vmatpush1.bf16.msra.mxu0 %v2592
    %2618 = vmatprep.subr.bf16.mxu0 0
    %2619 = vmatpush1.bf16.msra.mxu0 %v2591
    %2620 = vmatprep.subr.bf16.mxu0 0
    %2621 = vmatpush1.bf16.msra.mxu0 %v2590
    %2622 = vmatprep.subr.bf16.mxu0 0
    %2623 = vmatpush2.bf16.msra.mxu0 0
    %2624 = vmatprep.subr.bf16.mxu0 0
    %2625 = vmatpush2.bf16.msra.mxu0 0
    %2626 = vmatprep.subr.bf16.mxu0 0
    %2627 = vmatpush2.bf16.msra.mxu0 0
    %2628 = vmatprep.subr.bf16.mxu0 0
    %2629 = vmatpush2.bf16.msra.mxu0 0
    %2630 = vmatprep.subr.bf16.mxu0 0
    %2631 = vmatpush2.bf16.msra.mxu0 0
    %2632 = vmatprep.subr.bf16.mxu0 0
    %2633 = vmatpush2.bf16.msra.mxu0 0
    %2634 = vmatprep.subr.bf16.mxu0 0
    %2635 = vmatpush2.bf16.msra.mxu0 0
    %2636 = vmatprep.subr.bf16.mxu0 0
    %2637 = vmatpush2.bf16.msra.mxu0 0
    %2638 = vmatprep.mubr.bf16.mxu0 0
    %2639 = vmatmul.mubr.bf16.gmra.mxu0 %v2531
    %v2640 = vpop.f32.mrf.mxu0
    %v2641 = vadd.f32 %v2556, %v2640
    %v2642 = vpop.f32.mrf.mxu0
    %v2643 = vpop.f32.mrf.mxu0
    %v2644 = vadd.f32 %v2556, %v2643
    %v2645 = vpop.f32.mrf.mxu0
    %2646 = vmatprep.mubr.bf16.mxu0 0
    %2647 = vmatmul.mubr.bf16.gmra.mxu0 %v2532
    %v2648 = vpop.f32.mrf.mxu0
    %v2649 = vadd.f32 %v2556, %v2648
    %v2650 = vpop.f32.mrf.mxu0
    %v2651 = vpop.f32.mrf.mxu0
    %v2652 = vadd.f32 %v2556, %v2651
    %v2653 = vpop.f32.mrf.mxu0
    %2654 = vdwg.mxu0
    %v2655 = vadd.f32 %v2333, %v2641
    %v2656 = vadd.f32 %v2334, %v2644
    %v2657 = vadd.f32 %v2335, %v2649
    %v2658 = vadd.f32 %v2336, %v2652
    %v2659 = vld [vmem:[#allocation26] sm:$0x1]
    %v2660 = vld [vmem:[#allocation27] sm:$0x1]
    %v2661 = vsel %vm311, %v2655, 0.0
    %2662 = vadd.xlane.f32.xlu0 %v2661
    %v2663 = vpop.xlane.xlu0 %2662
    %v2664 = vsel %vm311, %v2656, 0.0
    %2665 = vadd.xlane.f32.xlu0 %v2664
    %v2666 = vpop.xlane.xlu0 %2665
    %v2667 = vsel %vm311, %v2657, 0.0
    %2668 = vadd.xlane.f32.xlu0 %v2667
    %v2669 = vpop.xlane.xlu0 %2668
    %v2670 = vsel %vm311, %v2658, 0.0
    %2671 = vadd.xlane.f32.xlu0 %v2670
    %v2672 = vpop.xlane.xlu0 %2671
    %v2673 = vmul.f32 %v2663, %v723
    %v2674 = vmul.f32 %v2666, %v723
    %v2675 = vmul.f32 %v2669, %v723
    %v2676 = vmul.f32 %v2672, %v723
    %v2677 = vsub.f32 %v2655, %v2673
    %v2678 = vsub.f32 %v2656, %v2674
    %v2679 = vsub.f32 %v2657, %v2675
    %v2680 = vsub.f32 %v2658, %v2676
    %v2681 = vmul.f32 %v2677, %v2677
    %v2682 = vmul.f32 %v2678, %v2678
    %v2683 = vmul.f32 %v2679, %v2679
    %v2684 = vmul.f32 %v2680, %v2680
    %v2685 = vsel %vm311, %v2681, 0.0
    %2686 = vadd.xlane.f32.xlu0 %v2685
    %v2687 = vpop.xlane.xlu0 %2686
    %v2688 = vsel %vm311, %v2682, 0.0
    %2689 = vadd.xlane.f32.xlu0 %v2688
    %v2690 = vpop.xlane.xlu0 %2689
    %v2691 = vsel %vm311, %v2683, 0.0
    %2692 = vadd.xlane.f32.xlu0 %v2691
    %v2693 = vpop.xlane.xlu0 %2692
    %v2694 = vsel %vm311, %v2684, 0.0
    %2695 = vadd.xlane.f32.xlu0 %v2694
    %v2696 = vpop.xlane.xlu0 %2695
    %v2697 = vmul.f32 %v2687, %v723
    %v2698 = vmul.f32 %v2690, %v723
    %v2699 = vmul.f32 %v2693, %v723
    %v2700 = vmul.f32 %v2696, %v723
    %v2701 = vadd.f32 %v2697, 1e-05
    %v2702 = vadd.f32 %v2698, 1e-05
    %v2703 = vadd.f32 %v2699, 1e-05
    %v2704 = vadd.f32 %v2700, 1e-05
    %v2705 = vrsqrt.pop %v2701
    %v2706 = vrsqrt.pop %v2702
    %v2707 = vrsqrt.pop %v2703
    %v2708 = vrsqrt.pop %v2704
    %v2709 = vmul.f32 %v2677, %v2705
    %v2710 = vmul.f32 %v2678, %v2706
    %v2711 = vmul.f32 %v2679, %v2707
    %v2712 = vmul.f32 %v2680, %v2708
    %v2714 = vlaneseq
    %v2715 = vshrl.u32 %v2714, 7
    %v2716 = vsub.s32 0, %v2715
    %v2717 = vrot.slane %v2659, %v2716
    %v2719 = vmul.f32 %v2709, %v2717
    %v2720 = vmul.f32 %v2710, %v2717
    %v2721 = vmul.f32 %v2711, %v2717
    %v2722 = vmul.f32 %v2712, %v2717
    %v2724 = vlaneseq
    %v2725 = vshrl.u32 %v2724, 7
    %v2726 = vsub.s32 0, %v2725
    %v2727 = vrot.slane %v2660, %v2726
    %v2729 = vadd.f32 %v2719, %v2727
    %v2730 = vadd.f32 %v2720, %v2727
    %v2731 = vadd.f32 %v2721, %v2727
    %v2732 = vadd.f32 %v2722, %v2727
    %v2733 = vpack.c.bf16 %v2730, %v2729
    %v2734 = vpack.c.bf16 %v2732, %v2731
    %v2735 = vld [vmem:[#allocation11] sm:$0xf]
    %v2736 = vld [vmem:[#allocation11 + $0x4] sm:$0xf]
    %v2737 = vld [vmem:[#allocation11 + $0x8] sm:$0xf]
    %v2738 = vld [vmem:[#allocation11 + $0xc] sm:$0xf]
    %v2743 = vunpack.c.l.b16 %v2735
    %v2744 = vunpack.c.l.b16 %v2736
    %v2745 = vunpack.c.l.b16 %v2737
    %v2746 = vunpack.c.l.b16 %v2738
    %v2747 = vpack.c.b16 %v2744, %v2743
    %v2748 = vpack.c.b16 %v2746, %v2745
    %v2752 = vsel %vm311, %v2733, 0
    %v2755 = vsel %vm311, %v2734, 0
    %2757 = vmatprep.subr.bf16.mxu0 0
    %2758 = vmatpush1.bf16.msra.mxu0 0
    %2759 = vmatprep.subr.bf16.mxu0 0
    %2760 = vmatpush1.bf16.msra.mxu0 0
    %2761 = vmatprep.subr.bf16.mxu0 0
    %2762 = vmatpush1.bf16.msra.mxu0 0
    %2763 = vmatprep.subr.bf16.mxu0 0
    %2764 = vmatpush1.bf16.msra.mxu0 0
    %2765 = vmatprep.subr.bf16.mxu0 0
    %2766 = vmatpush1.bf16.msra.mxu0 0
    %2767 = vmatprep.subr.bf16.mxu0 0
    %2768 = vmatpush1.bf16.msra.mxu0 0
    %2769 = vmatprep.subr.bf16.mxu0 0
    %2770 = vmatpush1.bf16.msra.mxu0 %v2748
    %2771 = vmatprep.subr.bf16.mxu0 0
    %2772 = vmatpush1.bf16.msra.mxu0 %v2747
    %2773 = vmatprep.subr.bf16.mxu0 0
    %2774 = vmatpush2.bf16.msra.mxu0 0
    %2775 = vmatprep.subr.bf16.mxu0 0
    %2776 = vmatpush2.bf16.msra.mxu0 0
    %2777 = vmatprep.subr.bf16.mxu0 0
    %2778 = vmatpush2.bf16.msra.mxu0 0
    %2779 = vmatprep.subr.bf16.mxu0 0
    %2780 = vmatpush2.bf16.msra.mxu0 0
    %2781 = vmatprep.subr.bf16.mxu0 0
    %2782 = vmatpush2.bf16.msra.mxu0 0
    %2783 = vmatprep.subr.bf16.mxu0 0
    %2784 = vmatpush2.bf16.msra.mxu0 0
    %2785 = vmatprep.subr.bf16.mxu0 0
    %2786 = vmatpush2.bf16.msra.mxu0 0
    %2787 = vmatprep.subr.bf16.mxu0 0
    %2788 = vmatpush2.bf16.msra.mxu0 0
    %2789 = vmatprep.mubr.bf16.mxu0 0
    %2790 = vmatmul.mubr.bf16.gmra.mxu0 %v2752
    %v2791 = vpop.f32.mrf.mxu0
    %v2792 = vadd.f32 0.0, %v2791
    %v2793 = vpop.f32.mrf.mxu0
    %v2794 = vpop.f32.mrf.mxu0
    %v2795 = vadd.f32 0.0, %v2794
    %v2796 = vpop.f32.mrf.mxu0
    %2797 = vmatprep.mubr.bf16.mxu0 0
    %2798 = vmatmul.mubr.bf16.gmra.mxu0 %v2755
    %v2799 = vpop.f32.mrf.mxu0
    %v2800 = vadd.f32 0.0, %v2799
    %v2801 = vpop.f32.mrf.mxu0
    %v2802 = vpop.f32.mrf.mxu0
    %v2803 = vadd.f32 0.0, %v2802
    %v2804 = vpop.f32.mrf.mxu0
    %2805 = vdwg.mxu0
    %2806 = vst [vmem:[#allocation29] sm:$0xff] %v2792
    %2807 = vst [vmem:[#allocation29 + $0x8] sm:$0xff] %v2795
    %2808 = vst [vmem:[#allocation29 + $0x10] sm:$0xff] %v2800
    %2809 = vst [vmem:[#allocation29 + $0x18] sm:$0xff] %v2803
    // Predicated region
    $region162: #{clipcap_forward.1} parent=1 // pred_check
      _
    $region163: #{clipcap_forward.1} parent=1 // pred_check_branch
      %2811 = sbr.rel (0) target = $region165
    $region164: #{clipcap_forward.1} parent=1 // pred_region
      %s2813 = ssub.s32 512, 512
      %2814 = vsyncadd [#allocation5], %s2813
      %s2815 = sshll.u32 [#allocation29], 4
      %s2816 = int_to_ptr.vmem [resolvable:$true] %s2815
      %2821 = dma.vmem_to_hbm [thread:$0]  %s2816, 512, %s24, [#allocation5], 128, 128, 8
    $region165: #{clipcap_forward.1} parent=1 // pred_fallthru
      _
    // Predicated region
    $region166: #{clipcap_forward.1} parent=1 // pred_check
      _
    $region167: #{clipcap_forward.1} parent=1 // pred_check_branch
      %2823 = sbr.rel (0) target = $region169
    $region168: #{clipcap_forward.1} parent=1 // pred_region
      %2824 = dma.done [#allocation5], 512
    $region169: #{clipcap_forward.1} parent=1 // pred_fallthru
      _
    %2825 = vsyncpa [#allocation4], 1
    %2826 = vsyncpa [#allocation7], 1
    %2827 = vsyncpa [#allocation10], 1
    %2828 = vsyncpa [#allocation13], 1
    %2829 = vsyncpa [#allocation16], 1
    %2830 = vsyncpa [#allocation19], 1
    %2831 = vsyncpa [#allocation22], 1
    %2832 = vsyncpa [#allocation25], 1
    %2833 = vsyncpa [#allocation28], 1
    %2834 = vsyncpa [#allocation5], 1

</llo_original>
